<compile_context>
chip_gen: v7x
topology: tpu7x:2x2x1
jax: 0.10.0
libtpu: 0.0.40
codegen_flags: <defaults>
</compile_context>

<pallas_src>
import functools

import jax
import jax.numpy as jnp
import numpy as np
from jax import lax
from jax.experimental import pallas as pl
from jax.experimental.pallas import tpu as pltpu

EPS = 1e-5
LANE = 128


# ------------------------------ small helpers ------------------------------ #

def _round_up(x, m):
    return ((x + m - 1) // m) * m


def _pick_tile(dim, candidates):
    for c in candidates:
        if dim % c == 0:
            return c
    return dim


def _pad1(v, n):
    return v if v.shape[0] == n else jnp.pad(v, (0, n - v.shape[0]))


def _pad2(a, r, c):
    if a.shape == (r, c):
        return a
    return jnp.pad(a, ((0, r - a.shape[0]), (0, c - a.shape[1])))


def _vmem_limit_bytes():
    """Per-generation VMEM budget: v4/v5/v6 have 128 MiB, v7x only 64 MiB."""
    try:
        kind = jax.devices()[0].device_kind.lower()
    except Exception:
        return None
    if "v2" in kind or "v3" in kind:
        return None
    if any(t in kind for t in ("v4", "v5", "v6")):
        return 96 * 1024 * 1024
    return 44 * 1024 * 1024          # v7x and unknown: stay under 64 MiB


def _compiler_params(sem):
    return pltpu.CompilerParams(dimension_semantics=sem,
                                vmem_limit_bytes=_vmem_limit_bytes())


# ------------------- fused 1x1-conv / matmul + BN + act -------------------- #

def _matmul_bn_act_kernel(x_ref, w_ref, scale_ref, bias_ref, *rest,
                          apply_relu, has_residual):
    """o = act((x @ w) * scale + bias [+ res]); full-K, no accumulator scratch."""
    if has_residual:
        res_ref, o_ref = rest
    else:
        (o_ref,) = rest
    a = x_ref[...]
    if a.dtype != jnp.bfloat16:          # fold the f32->bf16 cast into the kernel
        a = a.astype(jnp.bfloat16)
    y = jnp.dot(a, w_ref[...], preferred_element_type=jnp.float32)
    y = y * scale_ref[...] + bias_ref[...]
    if has_residual:
        y = y + res_ref[...].astype(jnp.float32)
    if apply_relu:
        y = jnp.maximum(y, 0.0)
    o_ref[...] = y.astype(o_ref.dtype)


def fused_matmul_bn_act(x2d, w2d, scale, bias, *, residual=None, apply_relu,
                        out_dtype=jnp.float32):
    """(M, K) @ (K, C) + folded-BN affine (+ residual + ReLU) epilogue."""
    M, K = x2d.shape
    K2, C = w2d.shape
    assert K == K2, (x2d.shape, w2d.shape)
    # TODO(synk): a K-tiled accumulator variant would be needed for K > ~4096.
    tn = _pick_tile(C, (512, 256, 128))
    tm = 512 if M >= 512 else _round_up(M, 16)   # 16 rows: bf16 sublane packing
    Mp = _round_up(M, tm)

    xb, res = x2d, residual
    if Mp != M:
        xb = jnp.pad(xb, ((0, Mp - M), (0, 0)))
        if res is not None:
            res = jnp.pad(res, ((0, Mp - M), (0, 0)))
    wb = w2d.astype(jnp.bfloat16)
    scale2 = scale.reshape(1, C).astype(jnp.float32)
    bias2 = bias.reshape(1, C).astype(jnp.float32)

    grid = (Mp // tm, C // tn)
    in_specs = [
        pl.BlockSpec((tm, K), lambda i, j: (i, 0)),
        pl.BlockSpec((K, tn), lambda i, j: (0, j)),
        pl.BlockSpec((1, tn), lambda i, j: (0, j)),
        pl.BlockSpec((1, tn), lambda i, j: (0, j)),
    ]
    args = [xb, wb, scale2, bias2]
    if res is not None:
        in_specs.append(pl.BlockSpec((tm, tn), lambda i, j: (i, j)))
        args.append(res)

    x_b = jnp.dtype(xb.dtype).itemsize
    out_b = jnp.dtype(out_dtype).itemsize
    bytes_accessed = Mp * K * x_b + K * C * 2 * (Mp // tm) + Mp * C * out_b
    if res is not None:
        bytes_accessed += Mp * C * jnp.dtype(res.dtype).itemsize

    kern = functools.partial(_matmul_bn_act_kernel, apply_relu=apply_relu,
                             has_residual=res is not None)
    out = pl.pallas_call(
        kern,
        out_shape=jax.ShapeDtypeStruct((Mp, C), out_dtype),
        grid_spec=pltpu.PrefetchScalarGridSpec(
            num_scalar_prefetch=0,
            grid=grid,
            in_specs=in_specs,
            out_specs=pl.BlockSpec((tm, tn), lambda i, j: (i, j)),
        ),
        compiler_params=_compiler_params(("parallel", "parallel")),
        cost_estimate=pl.CostEstimate(flops=2 * Mp * K * C, transcendentals=0,
                                      bytes_accessed=bytes_accessed),
    )(*args)
    return out[:M] if Mp != M else out


# -------------------- 3x3 conv, stride 1, pad 1 (in-VMEM) ------------------ #

def _conv3x3_s1_kernel(x_ref, w_ref, scale_ref, bias_ref, o_ref, *, RT, Wp, Wo):
    """One RT-row output tile of a 3x3/stride-1/pad-1 conv + BN + ReLU.

    x_ref : (1, Hp*Wp, Cin) flattened zero-padded image (Wp % 8 == 0)
    w_ref : (3, 3, Cin, tn); o_ref: (1, RT, Wo, tn)
    The dw shift is applied to the matmul *result* via pltpu.roll (XLU slot),
    so no shifted copy of the activation is ever materialized.
    """
    tn = o_ref.shape[3]
    rs = pl.program_id(2) * RT
    n_flat = RT * Wp
    acc = jnp.zeros((n_flat, tn), jnp.float32)
    for dh in range(3):
        start = pl.multiple_of((rs + dh) * Wp, 8)
        rows = x_ref[0, pl.ds(start, n_flat), :]               # (RT*Wp, Cin)
        for dw in range(3):
            y = jnp.dot(rows, w_ref[dh, dw],
                        preferred_element_type=jnp.float32)
            if dw:
                y = pltpu.roll(y, n_flat - dw, axis=0)         # y[i] <- y[i+dw]
            acc = acc + y
    y = acc * scale_ref[...] + bias_ref[...]
    y = jnp.maximum(y, 0.0)
    o_ref[0] = y.reshape(RT, Wp, tn)[:, :Wo, :].astype(o_ref.dtype)


def conv3x3_s1_bn_relu(z1, w4d, scale, bias, *, out_dtype=jnp.bfloat16):
    N, H, W, Cin = z1.shape
    Cout = w4d.shape[3]
    Ho, Wo = H, W
    Hp = H + 2
    Wp = _round_up(W + 2, 8)          # extra zero cols keep reshapes layout-free
    RT = _pick_tile(Ho, (8, 16, 7, 4, 2, 1))
    tn = _pick_tile(Cout, (256, 128))

    xpad = jnp.pad(z1, ((0, 0), (1, 1), (1, Wp - W - 1), (0, 0)))
    xflat = xpad.reshape(N, Hp * Wp, Cin).astype(jnp.bfloat16)
    wb = w4d.astype(jnp.bfloat16)

    kern = functools.partial(_conv3x3_s1_kernel, RT=RT, Wp=Wp, Wo=Wo)
    bytes_accessed = (N * Hp * Wp * Cin * 2 * (Cout // tn)
                      + 9 * Cin * Cout * 2
                      + N * Ho * Wo * Cout * jnp.dtype(out_dtype).itemsize)
    return pl.pallas_call(
        kern,
        out_shape=jax.ShapeDtypeStruct((N, Ho, Wo, Cout), out_dtype),
        grid_spec=pltpu.PrefetchScalarGridSpec(
            num_scalar_prefetch=0,
            grid=(Cout // tn, N, Ho // RT),     # weight resident across (n, r)
            in_specs=[
                pl.BlockSpec((1, Hp * Wp, Cin), lambda j, n, r: (n, 0, 0)),
                pl.BlockSpec((3, 3, Cin, tn), lambda j, n, r: (0, 0, 0, j)),
                pl.BlockSpec((1, tn), lambda j, n, r: (0, j)),
                pl.BlockSpec((1, tn), lambda j, n, r: (0, j)),
            ],
            out_specs=pl.BlockSpec((1, RT, Wo, tn), lambda j, n, r: (n, r, 0, j)),
        ),
        compiler_params=_compiler_params(("parallel", "parallel", "parallel")),
        cost_estimate=pl.CostEstimate(
            flops=2 * N * Ho * Wp * 9 * Cin * Cout, transcendentals=0,
            bytes_accessed=bytes_accessed),
    )(xflat, wb, scale.reshape(1, -1).astype(jnp.float32),
      bias.reshape(1, -1).astype(jnp.float32))


# -------------------- 3x3 conv, stride 2, pad 1 (in-VMEM) ------------------ #

def _conv3x3_s2_kernel(x_ref, w_ref, scale_ref, bias_ref, o_ref, *,
                       RT, Hp1, Wop, Wo):
    """One RT-row output tile of a 3x3/stride-2/pad-1 conv + BN + ReLU.

    x_ref : (1, 6*Hp1, Wop, Cin) - six parity/tap planes stacked along rows,
            plane p = dw*2 + row_parity, each (Hp1, Wop, Cin).
    Every tap is a plain contiguous-row matmul (no HBM im2col, no gather).
    """
    cin = x_ref.shape[3]
    tn = o_ref.shape[3]
    rs = pl.program_id(2) * RT
    acc = jnp.zeros((RT * Wop, tn), jnp.float32)
    # (dh, row-parity plane, row offset): padded rows 2h + dh.
    for dh, parity, roff in ((0, 0, 0), (1, 1, 0), (2, 0, 1)):
        for dw in range(3):
            p = dw * 2 + parity
            rows = x_ref[0, pl.ds(p * Hp1 + rs + roff, RT), :, :]  # (RT,Wop,Cin)
            acc = acc + jnp.dot(rows.reshape(RT * Wop, cin), w_ref[dh, dw],
                                preferred_element_type=jnp.float32)
    y = acc * scale_ref[...] + bias_ref[...]
    y = jnp.maximum(y, 0.0)
    o_ref[0] = y.reshape(RT, Wop, tn)[:, :Wo, :].astype(o_ref.dtype)


def conv3x3_s2_bn_relu(z1, w4d, scale, bias, *, out_dtype=jnp.bfloat16):
    N, H, W, Cin = z1.shape
    Cout = w4d.shape[3]
    Ho = (H - 1) // 2 + 1
    Wo = (W - 1) // 2 + 1
    Hp1 = Ho + 1
    Wop = _round_up(Wo, 8)
    RT = _pick_tile(Ho, (8, 16, 7, 4, 2, 1))
    tn = _pick_tile(Cout, (256, 128))

    xpad = jnp.pad(z1, ((0, 0), (1, 1), (1, 1), (0, 0))).astype(jnp.bfloat16)
    planes = []
    for dw in range(3):
        cols = xpad[:, :, dw::2, :][:, :, :Wo, :]          # padded cols 2w + dw
        for parity in range(2):
            rows = cols[:, parity::2, :, :][:, :Hp1, :, :]
            if rows.shape[1] < Hp1:                        # odd H: pad one row
                rows = jnp.pad(rows, ((0, 0), (0, Hp1 - rows.shape[1]),
                                      (0, 0), (0, 0)))
            planes.append(rows)
    stacked = jnp.stack(planes, axis=1)                    # (N, 6, Hp1, Wo, Cin)
    stacked = jnp.pad(stacked,
                      ((0, 0), (0, 0), (0, 0), (0, Wop - Wo), (0, 0)))
    xplanes = stacked.reshape(N, 6 * Hp1, Wop, Cin)
    wb = w4d.astype(jnp.bfloat16)

    kern = functools.partial(_conv3x3_s2_kernel, RT=RT, Hp1=Hp1, Wop=Wop, Wo=Wo)
    bytes_accessed = (N * 6 * Hp1 * Wop * Cin * 2 * (Cout // tn)
                      + 9 * Cin * Cout * 2
                      + N * Ho * Wo * Cout * jnp.dtype(out_dtype).itemsize)
    return pl.pallas_call(
        kern,
        out_shape=jax.ShapeDtypeStruct((N, Ho, Wo, Cout), out_dtype),
        grid_spec=pltpu.PrefetchScalarGridSpec(
            num_scalar_prefetch=0,
            grid=(Cout // tn, N, Ho // RT),
            in_specs=[
                pl.BlockSpec((1, 6 * Hp1, Wop, Cin),
                             lambda j, n, r: (n, 0, 0, 0)),
                pl.BlockSpec((3, 3, Cin, tn), lambda j, n, r: (0, 0, 0, j)),
                pl.BlockSpec((1, tn), lambda j, n, r: (0, j)),
                pl.BlockSpec((1, tn), lambda j, n, r: (0, j)),
            ],
            out_specs=pl.BlockSpec((1, RT, Wo, tn), lambda j, n, r: (n, r, 0, j)),
        ),
        compiler_params=_compiler_params(("parallel", "parallel", "parallel")),
        cost_estimate=pl.CostEstimate(
            flops=2 * N * Ho * Wop * 9 * Cin * Cout, transcendentals=0,
            bytes_accessed=bytes_accessed),
    )(xplanes, wb, scale.reshape(1, -1).astype(jnp.float32),
      bias.reshape(1, -1).astype(jnp.float32))


# ------------------------------ JAX glue ----------------------------------- #

def fold_bn(conv_bias, bn):
    """Fold conv bias + eval-mode BatchNorm into per-channel (scale, bias)."""
    scale = bn["gamma"] / jnp.sqrt(bn["var"] + EPS)
    bias = (conv_bias - bn["mean"]) * scale + bn["beta"]
    return scale, bias


def bottleneck_forward(x_nchw, p, stride, has_downsample):
    # TODO(synk): the NCHW<->NHWC relayouts at the block boundary are still
    # XLA-level passes; a whole-network NHWC layout would remove them.
    x = jnp.transpose(x_nchw, (0, 2, 3, 1)).astype(jnp.float32)   # NHWC, f32
    N, H, W, Cin = x.shape
    out_c = p["w1"].shape[0]
    exp_c = 4 * out_c

    c1_p = _round_up(out_c, LANE)
    if exp_c % LANE == 0:
        c3_p = exp_c
    else:
        c3_p = _round_up(exp_c, LANE) if has_downsample else exp_c

    # conv1 (1x1) + BN1 + ReLU   (input channels unpadded; f32->bf16 in-kernel)
    s1, b1 = fold_bn(p["b1"], p["bn1"])
    w1 = _pad2(jnp.transpose(p["w1"][:, :, 0, 0], (1, 0)), Cin, c1_p)
    z1 = fused_matmul_bn_act(x.reshape(N * H * W, Cin), w1,
                             _pad1(s1, c1_p), _pad1(b1, c1_p),
                             apply_relu=True, out_dtype=jnp.bfloat16)
    z1 = z1.reshape(N, H, W, c1_p)

    # conv2 (3x3, stride, pad=1) + BN2 + ReLU  (fully in-kernel for both strides)
    s2, b2 = fold_bn(p["b2"], p["bn2"])
    w2 = jnp.transpose(p["w2"], (2, 3, 1, 0))                    # (kh,kw,in,out)
    w2 = jnp.pad(w2, ((0, 0), (0, 0), (0, c1_p - out_c), (0, c1_p - out_c)))
    s2p, b2p = _pad1(s2, c1_p), _pad1(b2, c1_p)
    if stride == 1:
        z2 = conv3x3_s1_bn_relu(z1, w2, s2p, b2p)
    else:
        z2 = conv3x3_s2_bn_relu(z1, w2, s2p, b2p)
    _, Ho, Wo, _ = z2.shape
    M2 = N * Ho * Wo
    z2 = z2.reshape(M2, c1_p)

    # identity / downsample residual (kept bf16 when produced by a kernel)
    if has_downsample:
        sd, bd = fold_bn(p["bd"], p["bnd"])
        wd = _pad2(jnp.transpose(p["wd"][:, :, 0, 0], (1, 0)), Cin, c3_p)
        xid = x[:, ::stride, ::stride, :].reshape(M2, Cin)
        identity = fused_matmul_bn_act(xid, wd, _pad1(sd, c3_p), _pad1(bd, c3_p),
                                       apply_relu=False, out_dtype=jnp.bfloat16)
    else:
        assert stride == 1 and Cin == exp_c == c3_p, "identity needs same shape"
        identity = x.reshape(M2, Cin)       # f32, cast lazily in the epilogue

    # conv3 (1x1) + BN3 + residual add + ReLU (all fused into one epilogue)
    s3, b3 = fold_bn(p["b3"], p["bn3"])
    w3 = _pad2(jnp.transpose(p["w3"][:, :, 0, 0], (1, 0)), c1_p, c3_p)
    z = fused_matmul_bn_act(z2, w3, _pad1(s3, c3_p), _pad1(b3, c3_p),
                            residual=identity, apply_relu=True,
                            out_dtype=jnp.float32)

    z = z[:, :exp_c].reshape(N, Ho, Wo, exp_c)
    return jnp.transpose(z, (0, 3, 1, 2))                        # back to NCHW


# ----------------------- pure-JAX reference (NCHW) -------------------------- #

def ref_forward(x, p, stride, has_downsample):
    dn = ("NCHW", "OIHW", "NCHW")

    def conv(xx, w, b, s, pad):
        y = lax.conv_general_dilated(xx, w, (s, s), pad, dimension_numbers=dn,
                                     precision=lax.Precision.HIGHEST)
        return y + b[None, :, None, None]

    def bn(y, d):
        inv = d["gamma"] / jnp.sqrt(d["var"] + EPS)
        return (y - d["mean"][None, :, None, None]) * inv[None, :, None, None] \
            + d["beta"][None, :, None, None]

    z1 = jax.nn.relu(bn(conv(x, p["w1"], p["b1"], 1, "VALID"), p["bn1"]))
    z2 = jax.nn.relu(bn(conv(z1, p["w2"], p["b2"], stride, [(1, 1), (1, 1)]),
                        p["bn2"]))
    z3 = bn(conv(z2, p["w3"], p["b3"], 1, "VALID"), p["bn3"])
    if has_downsample:
        identity = bn(conv(x, p["wd"], p["bd"], stride, "VALID"), p["bnd"])
    else:
        identity = x
    return jax.nn.relu(z3 + identity)


# ------------------------------ parameters ---------------------------------- #

def init_params(key, in_c, out_c):
    ks = jax.random.split(key, 12)

    def conv_w(k, shape):
        return 0.1 * jax.random.normal(k, shape, jnp.float32)

    def bn_params(k, c):
        k1, k2, k3, k4 = jax.random.split(k, 4)
        return dict(
            gamma=1.0 + 0.1 * jax.random.normal(k1, (c,), jnp.float32),
            beta=0.1 * jax.random.normal(k2, (c,), jnp.float32),
            mean=0.1 * jax.random.normal(k3, (c,), jnp.float32),
            var=1.0 + 0.1 * jnp.abs(jax.random.normal(k4, (c,), jnp.float32)),
        )

    p = {}
    p["w1"], p["b1"] = conv_w(ks[0], (out_c, in_c, 1, 1)), conv_w(ks[1], (out_c,))
    p["bn1"] = bn_params(ks[2], out_c)
    p["w2"], p["b2"] = conv_w(ks[3], (out_c, out_c, 3, 3)), conv_w(ks[4], (out_c,))
    p["bn2"] = bn_params(ks[5], out_c)
    p["w3"], p["b3"] = (conv_w(ks[6], (out_c * 4, out_c, 1, 1)),
                        conv_w(ks[7], (out_c * 4,)))
    p["bn3"] = bn_params(ks[8], out_c * 4)
    # downsample = Conv2d(in_c, out_c*4, kernel_size=1, stride=stride) + BN
    p["wd"], p["bd"] = (conv_w(ks[9], (out_c * 4, in_c, 1, 1)),
                        conv_w(ks[10], (out_c * 4,)))
    p["bnd"] = bn_params(ks[11], out_c * 4)
    return p


if __name__ == "__main__":
    key = jax.random.PRNGKey(0)
    fwd = jax.jit(bottleneck_forward, static_argnums=(2, 3))

    configs = [
        # (N, in_c, H, W, out_c, stride, has_downsample)
        (2, 64, 16, 16, 16, 1, True),   # stride-1: roll-based 3x3 kernel
        (2, 64, 16, 16, 16, 2, True),   # stride-2: in-kernel parity-plane conv
        (2, 64, 16, 16, 16, 1, False),  # plain identity fused as residual
    ]
    for (N, in_c, H, W, out_c, stride, has_ds) in configs:
        kx, kp, key = jax.random.split(key, 3)
        x = jax.random.normal(kx, (N, in_c, H, W), jnp.float32)
        params = init_params(kp, in_c, out_c)

        out = jax.block_until_ready(fwd(x, params, stride, has_ds))
        ref = jax.block_until_ready(ref_forward(x, params, stride, has_ds))

        Ho = (H + 2 - 3) // stride + 1
        assert out.shape == (N, out_c * 4, Ho, Ho), out.shape
        # bf16 MXU operands / bf16 intermediates vs f32 HIGHEST reference
        np.testing.assert_allclose(np.asarray(out), np.asarray(ref),
                                   rtol=5e-2, atol=5e-2)
    print("KERNEL_OK")
</pallas_src>

<mosaic_0001>
module attributes {stable_mosaic.version = 11 : i64} {
  func.func @_matmul_bn_act_kernel(%arg0: i32, %arg1: i32, %arg2: memref<512x64xf32, #tpu.memory_space<vmem>>, %arg3: memref<64x128xbf16, #tpu.memory_space<vmem>>, %arg4: memref<1x128xf32, #tpu.memory_space<vmem>>, %arg5: memref<1x128xf32, #tpu.memory_space<vmem>>, %arg6: memref<512x128xbf16, #tpu.memory_space<vmem>>) attributes {dimension_semantics = [#tpu.dimension_semantics<parallel>, #tpu.dimension_semantics<parallel>], iteration_bounds = array<i64: 1, 1>, scalar_prefetch = 0 : i64, scratch_operands = 0 : i64, tpu.core_type = #tpu.core_type<tc>, window_params = [{transform_indices = @transform_0, window_bounds = array<i64: 512, 64>}, {transform_indices = @transform_1, window_bounds = array<i64: 64, 128>}, {transform_indices = @transform_2, window_bounds = array<i64: 1, 128>}, {transform_indices = @transform_3, window_bounds = array<i64: 1, 128>}, {transform_indices = @transform_4, window_bounds = array<i64: 512, 128>}]} {
    %c0 = arith.constant 0 : index
    %c0_0 = arith.constant 0 : index
    %0 = vector.load %arg2[%c0, %c0_0] : memref<512x64xf32, #tpu.memory_space<vmem>>, vector<512x64xf32>
    %1 = arith.truncf %0 : vector<512x64xf32> to vector<512x64xbf16>
    %c0_1 = arith.constant 0 : index
    %c0_2 = arith.constant 0 : index
    %2 = vector.load %arg3[%c0_1, %c0_2] : memref<64x128xbf16, #tpu.memory_space<vmem>>, vector<64x128xbf16>
    %cst = arith.constant dense<0.000000e+00> : vector<512x128xf32>
    %3 = tpu.matmul %1, %2, %cst {dimension_numbers = #tpu.dot_dimension_numbers<[1], [0], [0], [1], [0, 0, 1, 1], [], []>} : vector<512x64xbf16>, vector<64x128xbf16>, vector<512x128xf32> -> vector<512x128xf32>
    %c0_3 = arith.constant 0 : index
    %c0_4 = arith.constant 0 : index
    %4 = vector.load %arg4[%c0_3, %c0_4] : memref<1x128xf32, #tpu.memory_space<vmem>>, vector<1x128xf32>
    %5 = vector.broadcast %4 : vector<1x128xf32> to vector<512x128xf32>
    %6 = arith.mulf %3, %5 : vector<512x128xf32>
    %c0_5 = arith.constant 0 : index
    %c0_6 = arith.constant 0 : index
    %7 = vector.load %arg5[%c0_5, %c0_6] : memref<1x128xf32, #tpu.memory_space<vmem>>, vector<1x128xf32>
    %8 = vector.broadcast %7 : vector<1x128xf32> to vector<512x128xf32>
    %9 = arith.addf %6, %8 : vector<512x128xf32>
    %cst_7 = arith.constant 0.000000e+00 : f32
    %10 = vector.broadcast %cst_7 : f32 to vector<512x128xf32>
    %11 = arith.maximumf %9, %10 : vector<512x128xf32>
    %12 = arith.truncf %11 : vector<512x128xf32> to vector<512x128xbf16>
    %c0_8 = arith.constant 0 : index
    %c0_9 = arith.constant 0 : index
    %13 = vector.load %arg6[%c0_8, %c0_9] : memref<512x128xbf16, #tpu.memory_space<vmem>>, vector<512x128xbf16>
    tpu.vector_store %arg6[%c0_8, %c0_9], %12 {strides = array<i32>} : memref<512x128xbf16, #tpu.memory_space<vmem>>, vector<512x128xbf16>,
    return
  }
  func.func @transform_0(%arg0: i32, %arg1: i32) -> (i32, i32) {
    %c0_i32 = arith.constant 0 : i32
    %c0_i32_0 = arith.constant 0 : i32
    return %arg0, %c0_i32 : i32, i32
  }
  func.func @transform_1(%arg0: i32, %arg1: i32) -> (i32, i32) {
    %c0_i32 = arith.constant 0 : i32
    %c0_i32_0 = arith.constant 0 : i32
    return %c0_i32, %arg1 : i32, i32
  }
  func.func @transform_2(%arg0: i32, %arg1: i32) -> (i32, i32) {
    %c0_i32 = arith.constant 0 : i32
    %c0_i32_0 = arith.constant 0 : i32
    return %c0_i32, %arg1 : i32, i32
  }
  func.func @transform_3(%arg0: i32, %arg1: i32) -> (i32, i32) {
    %c0_i32 = arith.constant 0 : i32
    %c0_i32_0 = arith.constant 0 : i32
    return %c0_i32, %arg1 : i32, i32
  }
  func.func @transform_4(%arg0: i32, %arg1: i32) -> (i32, i32) {
    %c0_i32 = arith.constant 0 : i32
    return %arg0, %arg1 : i32, i32
  }
}

module attributes {stable_mosaic.version = 11 : i64} {
  func.func @_conv3x3_s1_kernel(%arg0: i32, %arg1: i32, %arg2: i32, %arg3: memref<1x432x128xbf16, #tpu.memory_space<vmem>>, %arg4: memref<3x3x128x128xbf16, #tpu.memory_space<vmem>>, %arg5: memref<1x128xf32, #tpu.memory_space<vmem>>, %arg6: memref<1x128xf32, #tpu.memory_space<vmem>>, %arg7: memref<1x8x16x128xbf16, #tpu.memory_space<vmem>>) attributes {dimension_semantics = [#tpu.dimension_semantics<parallel>, #tpu.dimension_semantics<parallel>, #tpu.dimension_semantics<parallel>], iteration_bounds = array<i64: 1, 2, 2>, scalar_prefetch = 0 : i64, scratch_operands = 0 : i64, tpu.core_type = #tpu.core_type<tc>, window_params = [{transform_indices = @transform_0, window_bounds = array<i64: 1, 432, 128>}, {transform_indices = @transform_1, window_bounds = array<i64: 3, 3, 128, 128>}, {transform_indices = @transform_2, window_bounds = array<i64: 1, 128>}, {transform_indices = @transform_3, window_bounds = array<i64: 1, 128>}, {transform_indices = @transform_4, window_bounds = array<i64: 1, 8, 16, 128>}]} {
    %c8_i32 = arith.constant 8 : i32
    %0 = arith.muli %arg2, %c8_i32 : i32
    %cst = arith.constant 0.000000e+00 : f32
    %1 = vector.broadcast %cst : f32 to vector<192x128xf32>
    %c0_i32 = arith.constant 0 : i32
    %2 = arith.addi %0, %c0_i32 : i32
    %c24_i32 = arith.constant 24 : i32
    %3 = arith.muli %2, %c24_i32 : i32
    %4 = tpu.assume_multiple %3, 8 : i32
    %c0 = arith.constant 0 : index
    %5 = arith.index_cast %4 : i32 to index
    %c0_0 = arith.constant 0 : index
    %6 = vector.load %arg3[%c0, %5, %c0_0] : memref<1x432x128xbf16, #tpu.memory_space<vmem>>, vector<1x192x128xbf16>
    %7 = vector.shape_cast %6 : vector<1x192x128xbf16> to vector<192x128xbf16>
    %c0_1 = arith.constant 0 : index
    %c0_2 = arith.constant 0 : index
    %c0_3 = arith.constant 0 : index
    %c0_4 = arith.constant 0 : index
    %8 = vector.load %arg4[%c0_1, %c0_2, %c0_3, %c0_4] : memref<3x3x128x128xbf16, #tpu.memory_space<vmem>>, vector<1x1x128x128xbf16>
    %9 = vector.shape_cast %8 : vector<1x1x128x128xbf16> to vector<128x128xbf16>
    %cst_5 = arith.constant dense<0.000000e+00> : vector<192x128xf32>
    %10 = tpu.matmul %7, %9, %cst_5 {dimension_numbers = #tpu.dot_dimension_numbers<[1], [0], [0], [1], [0, 0, 1, 1], [], []>} : vector<192x128xbf16>, vector<128x128xbf16>, vector<192x128xf32> -> vector<192x128xf32>
    %11 = arith.addf %1, %10 : vector<192x128xf32>
    %c0_6 = arith.constant 0 : index
    %c1 = arith.constant 1 : index
    %c0_7 = arith.constant 0 : index
    %c0_8 = arith.constant 0 : index
    %12 = vector.load %arg4[%c0_6, %c1, %c0_7, %c0_8] : memref<3x3x128x128xbf16, #tpu.memory_space<vmem>>, vector<1x1x128x128xbf16>
    %13 = vector.shape_cast %12 : vector<1x1x128x128xbf16> to vector<128x128xbf16>
    %cst_9 = arith.constant dense<0.000000e+00> : vector<192x128xf32>
    %14 = tpu.matmul %7, %13, %cst_9 {dimension_numbers = #tpu.dot_dimension_numbers<[1], [0], [0], [1], [0, 0, 1, 1], [], []>} : vector<192x128xbf16>, vector<128x128xbf16>, vector<192x128xf32> -> vector<192x128xf32>
    %c191_i32 = arith.constant 191 : i32
    %15 = tpu.dynamic_rotate %14 by %c191_i32 dim 0 : vector<192x128xf32>, i32 -> vector<192x128xf32>
    %16 = arith.addf %11, %15 : vector<192x128xf32>
    %c0_10 = arith.constant 0 : index
    %c2 = arith.constant 2 : index
    %c0_11 = arith.constant 0 : index
    %c0_12 = arith.constant 0 : index
    %17 = vector.load %arg4[%c0_10, %c2, %c0_11, %c0_12] : memref<3x3x128x128xbf16, #tpu.memory_space<vmem>>, vector<1x1x128x128xbf16>
    %18 = vector.shape_cast %17 : vector<1x1x128x128xbf16> to vector<128x128xbf16>
    %cst_13 = arith.constant dense<0.000000e+00> : vector<192x128xf32>
    %19 = tpu.matmul %7, %18, %cst_13 {dimension_numbers = #tpu.dot_dimension_numbers<[1], [0], [0], [1], [0, 0, 1, 1], [], []>} : vector<192x128xbf16>, vector<128x128xbf16>, vector<192x128xf32> -> vector<192x128xf32>
    %c190_i32 = arith.constant 190 : i32
    %20 = tpu.dynamic_rotate %19 by %c190_i32 dim 0 : vector<192x128xf32>, i32 -> vector<192x128xf32>
    %21 = arith.addf %16, %20 : vector<192x128xf32>
    %c1_i32 = arith.constant 1 : i32
    %22 = arith.addi %0, %c1_i32 : i32
    %c24_i32_14 = arith.constant 24 : i32
    %23 = arith.muli %22, %c24_i32_14 : i32
    %24 = tpu.assume_multiple %23, 8 : i32
    %c0_15 = arith.constant 0 : index
    %25 = arith.index_cast %24 : i32 to index
    %c0_16 = arith.constant 0 : index
    %26 = vector.load %arg3[%c0_15, %25, %c0_16] : memref<1x432x128xbf16, #tpu.memory_space<vmem>>, vector<1x192x128xbf16>
    %27 = vector.shape_cast %26 : vector<1x192x128xbf16> to vector<192x128xbf16>
    %c1_17 = arith.constant 1 : index
    %c0_18 = arith.constant 0 : index
    %c0_19 = arith.constant 0 : index
    %c0_20 = arith.constant 0 : index
    %28 = vector.load %arg4[%c1_17, %c0_18, %c0_19, %c0_20] : memref<3x3x128x128xbf16, #tpu.memory_space<vmem>>, vector<1x1x128x128xbf16>
    %29 = vector.shape_cast %28 : vector<1x1x128x128xbf16> to vector<128x128xbf16>
    %cst_21 = arith.constant dense<0.000000e+00> : vector<192x128xf32>
    %30 = tpu.matmul %27, %29, %cst_21 {dimension_numbers = #tpu.dot_dimension_numbers<[1], [0], [0], [1], [0, 0, 1, 1], [], []>} : vector<192x128xbf16>, vector<128x128xbf16>, vector<192x128xf32> -> vector<192x128xf32>
    %31 = arith.addf %21, %30 : vector<192x128xf32>
    %c1_22 = arith.constant 1 : index
    %c1_23 = arith.constant 1 : index
    %c0_24 = arith.constant 0 : index
    %c0_25 = arith.constant 0 : index
    %32 = vector.load %arg4[%c1_22, %c1_23, %c0_24, %c0_25] : memref<3x3x128x128xbf16, #tpu.memory_space<vmem>>, vector<1x1x128x128xbf16>
    %33 = vector.shape_cast %32 : vector<1x1x128x128xbf16> to vector<128x128xbf16>
    %cst_26 = arith.constant dense<0.000000e+00> : vector<192x128xf32>
    %34 = tpu.matmul %27, %33, %cst_26 {dimension_numbers = #tpu.dot_dimension_numbers<[1], [0], [0], [1], [0, 0, 1, 1], [], []>} : vector<192x128xbf16>, vector<128x128xbf16>, vector<192x128xf32> -> vector<192x128xf32>
    %c191_i32_27 = arith.constant 191 : i32
    %35 = tpu.dynamic_rotate %34 by %c191_i32_27 dim 0 : vector<192x128xf32>, i32 -> vector<192x128xf32>
    %36 = arith.addf %31, %35 : vector<192x128xf32>
    %c1_28 = arith.constant 1 : index
    %c2_29 = arith.constant 2 : index
    %c0_30 = arith.constant 0 : index
    %c0_31 = arith.constant 0 : index
    %37 = vector.load %arg4[%c1_28, %c2_29, %c0_30, %c0_31] : memref<3x3x128x128xbf16, #tpu.memory_space<vmem>>, vector<1x1x128x128xbf16>
    %38 = vector.shape_cast %37 : vector<1x1x128x128xbf16> to vector<128x128xbf16>
    %cst_32 = arith.constant dense<0.000000e+00> : vector<192x128xf32>
    %39 = tpu.matmul %27, %38, %cst_32 {dimension_numbers = #tpu.dot_dimension_numbers<[1], [0], [0], [1], [0, 0, 1, 1], [], []>} : vector<192x128xbf16>, vector<128x128xbf16>, vector<192x128xf32> -> vector<192x128xf32>
    %c190_i32_33 = arith.constant 190 : i32
    %40 = tpu.dynamic_rotate %39 by %c190_i32_33 dim 0 : vector<192x128xf32>, i32 -> vector<192x128xf32>
    %41 = arith.addf %36, %40 : vector<192x128xf32>
    %c2_i32 = arith.constant 2 : i32
    %42 = arith.addi %0, %c2_i32 : i32
    %c24_i32_34 = arith.constant 24 : i32
    %43 = arith.muli %42, %c24_i32_34 : i32
    %44 = tpu.assume_multiple %43, 8 : i32
    %c0_35 = arith.constant 0 : index
    %45 = arith.index_cast %44 : i32 to index
    %c0_36 = arith.constant 0 : index
    %46 = vector.load %arg3[%c0_35, %45, %c0_36] : memref<1x432x128xbf16, #tpu.memory_space<vmem>>, vector<1x192x128xbf16>
    %47 = vector.shape_cast %46 : vector<1x192x128xbf16> to vector<192x128xbf16>
    %c2_37 = arith.constant 2 : index
    %c0_38 = arith.constant 0 : index
    %c0_39 = arith.constant 0 : index
    %c0_40 = arith.constant 0 : index
    %48 = vector.load %arg4[%c2_37, %c0_38, %c0_39, %c0_40] : memref<3x3x128x128xbf16, #tpu.memory_space<vmem>>, vector<1x1x128x128xbf16>
    %49 = vector.shape_cast %48 : vector<1x1x128x128xbf16> to vector<128x128xbf16>
    %cst_41 = arith.constant dense<0.000000e+00> : vector<192x128xf32>
    %50 = tpu.matmul %47, %49, %cst_41 {dimension_numbers = #tpu.dot_dimension_numbers<[1], [0], [0], [1], [0, 0, 1, 1], [], []>} : vector<192x128xbf16>, vector<128x128xbf16>, vector<192x128xf32> -> vector<192x128xf32>
    %51 = arith.addf %41, %50 : vector<192x128xf32>
    %c2_42 = arith.constant 2 : index
    %c1_43 = arith.constant 1 : index
    %c0_44 = arith.constant 0 : index
    %c0_45 = arith.constant 0 : index
    %52 = vector.load %arg4[%c2_42, %c1_43, %c0_44, %c0_45] : memref<3x3x128x128xbf16, #tpu.memory_space<vmem>>, vector<1x1x128x128xbf16>
    %53 = vector.shape_cast %52 : vector<1x1x128x128xbf16> to vector<128x128xbf16>
    %cst_46 = arith.constant dense<0.000000e+00> : vector<192x128xf32>
    %54 = tpu.matmul %47, %53, %cst_46 {dimension_numbers = #tpu.dot_dimension_numbers<[1], [0], [0], [1], [0, 0, 1, 1], [], []>} : vector<192x128xbf16>, vector<128x128xbf16>, vector<192x128xf32> -> vector<192x128xf32>
    %c191_i32_47 = arith.constant 191 : i32
    %55 = tpu.dynamic_rotate %54 by %c191_i32_47 dim 0 : vector<192x128xf32>, i32 -> vector<192x128xf32>
    %56 = arith.addf %51, %55 : vector<192x128xf32>
    %c2_48 = arith.constant 2 : index
    %c2_49 = arith.constant 2 : index
    %c0_50 = arith.constant 0 : index
    %c0_51 = arith.constant 0 : index
    %57 = vector.load %arg4[%c2_48, %c2_49, %c0_50, %c0_51] : memref<3x3x128x128xbf16, #tpu.memory_space<vmem>>, vector<1x1x128x128xbf16>
    %58 = vector.shape_cast %57 : vector<1x1x128x128xbf16> to vector<128x128xbf16>
    %cst_52 = arith.constant dense<0.000000e+00> : vector<192x128xf32>
    %59 = tpu.matmul %47, %58, %cst_52 {dimension_numbers = #tpu.dot_dimension_numbers<[1], [0], [0], [1], [0, 0, 1, 1], [], []>} : vector<192x128xbf16>, vector<128x128xbf16>, vector<192x128xf32> -> vector<192x128xf32>
    %c190_i32_53 = arith.constant 190 : i32
    %60 = tpu.dynamic_rotate %59 by %c190_i32_53 dim 0 : vector<192x128xf32>, i32 -> vector<192x128xf32>
    %61 = arith.addf %56, %60 : vector<192x128xf32>
    %c0_54 = arith.constant 0 : index
    %c0_55 = arith.constant 0 : index
    %62 = vector.load %arg5[%c0_54, %c0_55] : memref<1x128xf32, #tpu.memory_space<vmem>>, vector<1x128xf32>
    %63 = vector.broadcast %62 : vector<1x128xf32> to vector<192x128xf32>
    %64 = arith.mulf %61, %63 : vector<192x128xf32>
    %c0_56 = arith.constant 0 : index
    %c0_57 = arith.constant 0 : index
    %65 = vector.load %arg6[%c0_56, %c0_57] : memref<1x128xf32, #tpu.memory_space<vmem>>, vector<1x128xf32>
    %66 = vector.broadcast %65 : vector<1x128xf32> to vector<192x128xf32>
    %67 = arith.addf %64, %66 : vector<192x128xf32>
    %cst_58 = arith.constant 0.000000e+00 : f32
    %68 = vector.broadcast %cst_58 : f32 to vector<192x128xf32>
    %69 = arith.maximumf %67, %68 : vector<192x128xf32>
    %70 = vector.shape_cast %69 : vector<192x128xf32> to vector<8x24x128xf32>
    %71 = vector.extract_strided_slice %70 {offsets = [0, 0, 0], sizes = [8, 16, 128], strides = [1, 1, 1]} : vector<8x24x128xf32> to vector<8x16x128xf32>
    %72 = arith.truncf %71 : vector<8x16x128xf32> to vector<8x16x128xbf16>
    %c0_59 = arith.constant 0 : index
    %c0_60 = arith.constant 0 : index
    %c0_61 = arith.constant 0 : index
    %c0_62 = arith.constant 0 : index
    %73 = vector.load %arg7[%c0_59, %c0_60, %c0_61, %c0_62] : memref<1x8x16x128xbf16, #tpu.memory_space<vmem>>, vector<1x8x16x128xbf16>
    %74 = vector.shape_cast %73 : vector<1x8x16x128xbf16> to vector<8x16x128xbf16>
    %75 = vector.shape_cast %72 : vector<8x16x128xbf16> to vector<1x8x16x128xbf16>
    tpu.vector_store %arg7[%c0_59, %c0_60, %c0_61, %c0_62], %75 {strides = array<i32>} : memref<1x8x16x128xbf16, #tpu.memory_space<vmem>>, vector<1x8x16x128xbf16>,
    return
  }
  func.func @transform_0(%arg0: i32, %arg1: i32, %arg2: i32) -> (i32, i32, i32) {
    %c0_i32 = arith.constant 0 : i32
    %c0_i32_0 = arith.constant 0 : i32
    %c0_i32_1 = arith.constant 0 : i32
    return %arg1, %c0_i32, %c0_i32_0 : i32, i32, i32
  }
  func.func @transform_1(%arg0: i32, %arg1: i32, %arg2: i32) -> (i32, i32, i32, i32) {
    %c0_i32 = arith.constant 0 : i32
    %c0_i32_0 = arith.constant 0 : i32
    %c0_i32_1 = arith.constant 0 : i32
    %c0_i32_2 = arith.constant 0 : i32
    return %c0_i32, %c0_i32_0, %c0_i32_1, %arg0 : i32, i32, i32, i32
  }
  func.func @transform_2(%arg0: i32, %arg1: i32, %arg2: i32) -> (i32, i32) {
    %c0_i32 = arith.constant 0 : i32
    %c0_i32_0 = arith.constant 0 : i32
    return %c0_i32, %arg0 : i32, i32
  }
  func.func @transform_3(%arg0: i32, %arg1: i32, %arg2: i32) -> (i32, i32) {
    %c0_i32 = arith.constant 0 : i32
    %c0_i32_0 = arith.constant 0 : i32
    return %c0_i32, %arg0 : i32, i32
  }
  func.func @transform_4(%arg0: i32, %arg1: i32, %arg2: i32) -> (i32, i32, i32, i32) {
    %c0_i32 = arith.constant 0 : i32
    %c0_i32_0 = arith.constant 0 : i32
    return %arg1, %arg2, %c0_i32, %arg0 : i32, i32, i32, i32
  }
}

module attributes {stable_mosaic.version = 11 : i64} {
  func.func @_matmul_bn_act_kernel(%arg0: i32, %arg1: i32, %arg2: memref<512x64xf32, #tpu.memory_space<vmem>>, %arg3: memref<64x128xbf16, #tpu.memory_space<vmem>>, %arg4: memref<1x128xf32, #tpu.memory_space<vmem>>, %arg5: memref<1x128xf32, #tpu.memory_space<vmem>>, %arg6: memref<512x128xbf16, #tpu.memory_space<vmem>>) attributes {dimension_semantics = [#tpu.dimension_semantics<parallel>, #tpu.dimension_semantics<parallel>], iteration_bounds = array<i64: 1, 1>, scalar_prefetch = 0 : i64, scratch_operands = 0 : i64, tpu.core_type = #tpu.core_type<tc>, window_params = [{transform_indices = @transform_0, window_bounds = array<i64: 512, 64>}, {transform_indices = @transform_1, window_bounds = array<i64: 64, 128>}, {transform_indices = @transform_2, window_bounds = array<i64: 1, 128>}, {transform_indices = @transform_3, window_bounds = array<i64: 1, 128>}, {transform_indices = @transform_4, window_bounds = array<i64: 512, 128>}]} {
    %c0 = arith.constant 0 : index
    %c0_0 = arith.constant 0 : index
    %0 = vector.load %arg2[%c0, %c0_0] : memref<512x64xf32, #tpu.memory_space<vmem>>, vector<512x64xf32>
    %1 = arith.truncf %0 : vector<512x64xf32> to vector<512x64xbf16>
    %c0_1 = arith.constant 0 : index
    %c0_2 = arith.constant 0 : index
    %2 = vector.load %arg3[%c0_1, %c0_2] : memref<64x128xbf16, #tpu.memory_space<vmem>>, vector<64x128xbf16>
    %cst = arith.constant dense<0.000000e+00> : vector<512x128xf32>
    %3 = tpu.matmul %1, %2, %cst {dimension_numbers = #tpu.dot_dimension_numbers<[1], [0], [0], [1], [0, 0, 1, 1], [], []>} : vector<512x64xbf16>, vector<64x128xbf16>, vector<512x128xf32> -> vector<512x128xf32>
    %c0_3 = arith.constant 0 : index
    %c0_4 = arith.constant 0 : index
    %4 = vector.load %arg4[%c0_3, %c0_4] : memref<1x128xf32, #tpu.memory_space<vmem>>, vector<1x128xf32>
    %5 = vector.broadcast %4 : vector<1x128xf32> to vector<512x128xf32>
    %6 = arith.mulf %3, %5 : vector<512x128xf32>
    %c0_5 = arith.constant 0 : index
    %c0_6 = arith.constant 0 : index
    %7 = vector.load %arg5[%c0_5, %c0_6] : memref<1x128xf32, #tpu.memory_space<vmem>>, vector<1x128xf32>
    %8 = vector.broadcast %7 : vector<1x128xf32> to vector<512x128xf32>
    %9 = arith.addf %6, %8 : vector<512x128xf32>
    %10 = arith.truncf %9 : vector<512x128xf32> to vector<512x128xbf16>
    %c0_7 = arith.constant 0 : index
    %c0_8 = arith.constant 0 : index
    %11 = vector.load %arg6[%c0_7, %c0_8] : memref<512x128xbf16, #tpu.memory_space<vmem>>, vector<512x128xbf16>
    tpu.vector_store %arg6[%c0_7, %c0_8], %10 {strides = array<i32>} : memref<512x128xbf16, #tpu.memory_space<vmem>>, vector<512x128xbf16>,
    return
  }
  func.func @transform_0(%arg0: i32, %arg1: i32) -> (i32, i32) {
    %c0_i32 = arith.constant 0 : i32
    %c0_i32_0 = arith.constant 0 : i32
    return %arg0, %c0_i32 : i32, i32
  }
  func.func @transform_1(%arg0: i32, %arg1: i32) -> (i32, i32) {
    %c0_i32 = arith.constant 0 : i32
    %c0_i32_0 = arith.constant 0 : i32
    return %c0_i32, %arg1 : i32, i32
  }
  func.func @transform_2(%arg0: i32, %arg1: i32) -> (i32, i32) {
    %c0_i32 = arith.constant 0 : i32
    %c0_i32_0 = arith.constant 0 : i32
    return %c0_i32, %arg1 : i32, i32
  }
  func.func @transform_3(%arg0: i32, %arg1: i32) -> (i32, i32) {
    %c0_i32 = arith.constant 0 : i32
    %c0_i32_0 = arith.constant 0 : i32
    return %c0_i32, %arg1 : i32, i32
  }
  func.func @transform_4(%arg0: i32, %arg1: i32) -> (i32, i32) {
    %c0_i32 = arith.constant 0 : i32
    return %arg0, %arg1 : i32, i32
  }
}

module attributes {stable_mosaic.version = 11 : i64} {
  func.func @_matmul_bn_act_kernel(%arg0: i32, %arg1: i32, %arg2: memref<512x128xbf16, #tpu.memory_space<vmem>>, %arg3: memref<128x128xbf16, #tpu.memory_space<vmem>>, %arg4: memref<1x128xf32, #tpu.memory_space<vmem>>, %arg5: memref<1x128xf32, #tpu.memory_space<vmem>>, %arg6: memref<512x128xbf16, #tpu.memory_space<vmem>>, %arg7: memref<512x128xf32, #tpu.memory_space<vmem>>) attributes {dimension_semantics = [#tpu.dimension_semantics<parallel>, #tpu.dimension_semantics<parallel>], iteration_bounds = array<i64: 1, 1>, scalar_prefetch = 0 : i64, scratch_operands = 0 : i64, tpu.core_type = #tpu.core_type<tc>, window_params = [{transform_indices = @transform_0, window_bounds = array<i64: 512, 128>}, {transform_indices = @transform_1, window_bounds = array<i64: 128, 128>}, {transform_indices = @transform_2, window_bounds = array<i64: 1, 128>}, {transform_indices = @transform_3, window_bounds = array<i64: 1, 128>}, {transform_indices = @transform_4, window_bounds = array<i64: 512, 128>}, {transform_indices = @transform_5, window_bounds = array<i64: 512, 128>}]} {
    %c0 = arith.constant 0 : index
    %c0_0 = arith.constant 0 : index
    %0 = vector.load %arg2[%c0, %c0_0] : memref<512x128xbf16, #tpu.memory_space<vmem>>, vector<512x128xbf16>
    %c0_1 = arith.constant 0 : index
    %c0_2 = arith.constant 0 : index
    %1 = vector.load %arg3[%c0_1, %c0_2] : memref<128x128xbf16, #tpu.memory_space<vmem>>, vector<128x128xbf16>
    %cst = arith.constant dense<0.000000e+00> : vector<512x128xf32>
    %2 = tpu.matmul %0, %1, %cst {dimension_numbers = #tpu.dot_dimension_numbers<[1], [0], [0], [1], [0, 0, 1, 1], [], []>} : vector<512x128xbf16>, vector<128x128xbf16>, vector<512x128xf32> -> vector<512x128xf32>
    %c0_3 = arith.constant 0 : index
    %c0_4 = arith.constant 0 : index
    %3 = vector.load %arg4[%c0_3, %c0_4] : memref<1x128xf32, #tpu.memory_space<vmem>>, vector<1x128xf32>
    %4 = vector.broadcast %3 : vector<1x128xf32> to vector<512x128xf32>
    %5 = arith.mulf %2, %4 : vector<512x128xf32>
    %c0_5 = arith.constant 0 : index
    %c0_6 = arith.constant 0 : index
    %6 = vector.load %arg5[%c0_5, %c0_6] : memref<1x128xf32, #tpu.memory_space<vmem>>, vector<1x128xf32>
    %7 = vector.broadcast %6 : vector<1x128xf32> to vector<512x128xf32>
    %8 = arith.addf %5, %7 : vector<512x128xf32>
    %c0_7 = arith.constant 0 : index
    %c0_8 = arith.constant 0 : index
    %9 = vector.load %arg6[%c0_7, %c0_8] : memref<512x128xbf16, #tpu.memory_space<vmem>>, vector<512x128xbf16>
    %10 = arith.extf %9 : vector<512x128xbf16> to vector<512x128xf32>
    %11 = arith.addf %8, %10 : vector<512x128xf32>
    %cst_9 = arith.constant 0.000000e+00 : f32
    %12 = vector.broadcast %cst_9 : f32 to vector<512x128xf32>
    %13 = arith.maximumf %11, %12 : vector<512x128xf32>
    %c0_10 = arith.constant 0 : index
    %c0_11 = arith.constant 0 : index
    %14 = vector.load %arg7[%c0_10, %c0_11] : memref<512x128xf32, #tpu.memory_space<vmem>>, vector<512x128xf32>
    tpu.vector_store %arg7[%c0_10, %c0_11], %13 {strides = array<i32>} : memref<512x128xf32, #tpu.memory_space<vmem>>, vector<512x128xf32>,
    return
  }
  func.func @transform_0(%arg0: i32, %arg1: i32) -> (i32, i32) {
    %c0_i32 = arith.constant 0 : i32
    %c0_i32_0 = arith.constant 0 : i32
    return %arg0, %c0_i32 : i32, i32
  }
  func.func @transform_1(%arg0: i32, %arg1: i32) -> (i32, i32) {
    %c0_i32 = arith.constant 0 : i32
    %c0_i32_0 = arith.constant 0 : i32
    return %c0_i32, %arg1 : i32, i32
  }
  func.func @transform_2(%arg0: i32, %arg1: i32) -> (i32, i32) {
    %c0_i32 = arith.constant 0 : i32
    %c0_i32_0 = arith.constant 0 : i32
    return %c0_i32, %arg1 : i32, i32
  }
  func.func @transform_3(%arg0: i32, %arg1: i32) -> (i32, i32) {
    %c0_i32 = arith.constant 0 : i32
    %c0_i32_0 = arith.constant 0 : i32
    return %c0_i32, %arg1 : i32, i32
  }
  func.func @transform_4(%arg0: i32, %arg1: i32) -> (i32, i32) {
    %c0_i32 = arith.constant 0 : i32
    return %arg0, %arg1 : i32, i32
  }
  func.func @transform_5(%arg0: i32, %arg1: i32) -> (i32, i32) {
    %c0_i32 = arith.constant 0 : i32
    return %arg0, %arg1 : i32, i32
  }
}

</mosaic_0001>

<llo_original>
// kernel: bottleneck_forward.4
$region0: #{bottleneck_forward.4}
  #allocation0 [shape = 'u32[]', space=smem, size = 0x4, offset = 0x4, fixed_abs, tag = 'smem constant byte address 0x4 - core index']
  #allocation1 [shape = 'u32[144,128]{1,0:T(1,128)}', space=vmem, size = 0x12000, scoped, tag = 'internal scratch']
  %s0 = inlined_call_operand.hbm [shape: f32[512,64], index: 0, kind: input, shape index: {}]
  %s1 = inlined_call_operand.vmem [shape: bf16[64,128], index: 1, kind: input, shape index: {}]
  %s2 = inlined_call_operand.vmem [shape: f32[1,128], index: 2, kind: input, shape index: {}]
  %s3 = inlined_call_operand.vmem [shape: f32[1,128], index: 3, kind: input, shape index: {}]
  %s4 = inlined_call_operand.vmem [shape: bf16[512,128], index: 4, kind: output, shape index: {}]
  %s5 = sld [smem:[#allocation0]]
  $region30: #{bottleneck_forward.4} parent=0
    _
  %s7 = ssub.s32 1, %s5
  %s8 = scalar_select 0, %s7, %s5
  $region1: #{bottleneck_forward.4} parent=0
    #allocation2 [shape = 'u8[262144]{0}', space=vmem, size = 0x40000, scoped, tag = 'input window, operand 0, single buffered']
    #allocation3 [shape = 's32[1]{0}', space=sflag, size = 0x4, scoped, tag = 'scoped memory for bottleneck_forward.4']
    %9 = vsyncpa [#allocation3], 0
    // Predicated region
    $region2: #{bottleneck_forward.4} parent=1 // pred_check
      _
    $region3: #{bottleneck_forward.4} parent=1 // pred_check_branch
      %11 = sbr.rel (0) target = $region5
    $region4: #{bottleneck_forward.4} parent=1 // pred_region
      %s13 = ssub.s32 8192, 8192
      %14 = vsyncadd [#allocation3], %s13
      %s15 = sshll.u32 [#allocation2], 4
      %s16 = int_to_ptr.vmem [resolvable:$true] %s15
      %21 = dma.hbm_to_vmem [thread:$0]  %s0, 8192, %s16, [#allocation3], 128, 128, 8
    $region5: #{bottleneck_forward.4} parent=1 // pred_fallthru
      _
    // Predicated region
    $region6: #{bottleneck_forward.4} parent=1 // pred_check
      _
    $region7: #{bottleneck_forward.4} parent=1 // pred_check_branch
      %23 = sbr.rel (0) target = $region9
    $region8: #{bottleneck_forward.4} parent=1 // pred_region
      _
    $region9: #{bottleneck_forward.4} parent=1 // pred_fallthru
      _
    // Predicated region
    $region10: #{bottleneck_forward.4} parent=1 // pred_check
      _
    $region11: #{bottleneck_forward.4} parent=1 // pred_check_branch
      %25 = sbr.rel (0) target = $region13
    $region12: #{bottleneck_forward.4} parent=1 // pred_region
      _
    $region13: #{bottleneck_forward.4} parent=1 // pred_fallthru
      _
    // Predicated region
    $region14: #{bottleneck_forward.4} parent=1 // pred_check
      _
    $region15: #{bottleneck_forward.4} parent=1 // pred_check_branch
      %27 = sbr.rel (0) target = $region17
    $region16: #{bottleneck_forward.4} parent=1 // pred_region
      _
    $region17: #{bottleneck_forward.4} parent=1 // pred_fallthru
      _
    // Predicated region
    $region18: #{bottleneck_forward.4} parent=1 // pred_check
      _
    $region19: #{bottleneck_forward.4} parent=1 // pred_check_branch
      %29 = sbr.rel (0) target = $region21
    $region20: #{bottleneck_forward.4} parent=1 // pred_region
      %30 = dma.done [#allocation3], 8192
    $region21: #{bottleneck_forward.4} parent=1 // pred_fallthru
      _
    %v32 = vld [vmem:[#allocation2] sm:$0xff]
    %v33 = vld [vmem:[#allocation2 + $0x8] sm:$0xff]
    %v34 = vld [vmem:[#allocation2 + $0x10] sm:$0xff]
    %v35 = vld [vmem:[#allocation2 + $0x18] sm:$0xff]
    %v36 = vld [vmem:[#allocation2 + $0x20] sm:$0xff]
    %v37 = vld [vmem:[#allocation2 + $0x28] sm:$0xff]
    %v38 = vld [vmem:[#allocation2 + $0x30] sm:$0xff]
    %v39 = vld [vmem:[#allocation2 + $0x38] sm:$0xff]
    %v40 = vld [vmem:[#allocation2 + $0x40] sm:$0xff]
    %v41 = vld [vmem:[#allocation2 + $0x48] sm:$0xff]
    %v42 = vld [vmem:[#allocation2 + $0x50] sm:$0xff]
    %v43 = vld [vmem:[#allocation2 + $0x58] sm:$0xff]
    %v44 = vld [vmem:[#allocation2 + $0x60] sm:$0xff]
    %v45 = vld [vmem:[#allocation2 + $0x68] sm:$0xff]
    %v46 = vld [vmem:[#allocation2 + $0x70] sm:$0xff]
    %v47 = vld [vmem:[#allocation2 + $0x78] sm:$0xff]
    %v48 = vld [vmem:[#allocation2 + $0x80] sm:$0xff]
    %v49 = vld [vmem:[#allocation2 + $0x88] sm:$0xff]
    %v50 = vld [vmem:[#allocation2 + $0x90] sm:$0xff]
    %v51 = vld [vmem:[#allocation2 + $0x98] sm:$0xff]
    %v52 = vld [vmem:[#allocation2 + $0xa0] sm:$0xff]
    %v53 = vld [vmem:[#allocation2 + $0xa8] sm:$0xff]
    %v54 = vld [vmem:[#allocation2 + $0xb0] sm:$0xff]
    %v55 = vld [vmem:[#allocation2 + $0xb8] sm:$0xff]
    %v56 = vld [vmem:[#allocation2 + $0xc0] sm:$0xff]
    %v57 = vld [vmem:[#allocation2 + $0xc8] sm:$0xff]
    %v58 = vld [vmem:[#allocation2 + $0xd0] sm:$0xff]
    %v59 = vld [vmem:[#allocation2 + $0xd8] sm:$0xff]
    %v60 = vld [vmem:[#allocation2 + $0xe0] sm:$0xff]
    %v61 = vld [vmem:[#allocation2 + $0xe8] sm:$0xff]
    %v62 = vld [vmem:[#allocation2 + $0xf0] sm:$0xff]
    %v63 = vld [vmem:[#allocation2 + $0xf8] sm:$0xff]
    %v64 = vld [vmem:[#allocation2 + $0x100] sm:$0xff]
    %v65 = vld [vmem:[#allocation2 + $0x108] sm:$0xff]
    %v66 = vld [vmem:[#allocation2 + $0x110] sm:$0xff]
    %v67 = vld [vmem:[#allocation2 + $0x118] sm:$0xff]
    %v68 = vld [vmem:[#allocation2 + $0x120] sm:$0xff]
    %v69 = vld [vmem:[#allocation2 + $0x128] sm:$0xff]
    %v70 = vld [vmem:[#allocation2 + $0x130] sm:$0xff]
    %v71 = vld [vmem:[#allocation2 + $0x138] sm:$0xff]
    %v72 = vld [vmem:[#allocation2 + $0x140] sm:$0xff]
    %v73 = vld [vmem:[#allocation2 + $0x148] sm:$0xff]
    %v74 = vld [vmem:[#allocation2 + $0x150] sm:$0xff]
    %v75 = vld [vmem:[#allocation2 + $0x158] sm:$0xff]
    %v76 = vld [vmem:[#allocation2 + $0x160] sm:$0xff]
    %v77 = vld [vmem:[#allocation2 + $0x168] sm:$0xff]
    %v78 = vld [vmem:[#allocation2 + $0x170] sm:$0xff]
    %v79 = vld [vmem:[#allocation2 + $0x178] sm:$0xff]
    %v80 = vld [vmem:[#allocation2 + $0x180] sm:$0xff]
    %v81 = vld [vmem:[#allocation2 + $0x188] sm:$0xff]
    %v82 = vld [vmem:[#allocation2 + $0x190] sm:$0xff]
    %v83 = vld [vmem:[#allocation2 + $0x198] sm:$0xff]
    %v84 = vld [vmem:[#allocation2 + $0x1a0] sm:$0xff]
    %v85 = vld [vmem:[#allocation2 + $0x1a8] sm:$0xff]
    %v86 = vld [vmem:[#allocation2 + $0x1b0] sm:$0xff]
    %v87 = vld [vmem:[#allocation2 + $0x1b8] sm:$0xff]
    %v88 = vld [vmem:[#allocation2 + $0x1c0] sm:$0xff]
    %v89 = vld [vmem:[#allocation2 + $0x1c8] sm:$0xff]
    %v90 = vld [vmem:[#allocation2 + $0x1d0] sm:$0xff]
    %v91 = vld [vmem:[#allocation2 + $0x1d8] sm:$0xff]
    %v92 = vld [vmem:[#allocation2 + $0x1e0] sm:$0xff]
    %v93 = vld [vmem:[#allocation2 + $0x1e8] sm:$0xff]
    %v94 = vld [vmem:[#allocation2 + $0x1f0] sm:$0xff]
    %v95 = vld [vmem:[#allocation2 + $0x1f8] sm:$0xff]
    %v96 = vpack.c.bf16 %v33, %v32
    %v97 = vpack.c.bf16 %v35, %v34
    %v98 = vpack.c.bf16 %v37, %v36
    %v99 = vpack.c.bf16 %v39, %v38
    %v100 = vpack.c.bf16 %v41, %v40
    %v101 = vpack.c.bf16 %v43, %v42
    %v102 = vpack.c.bf16 %v45, %v44
    %v103 = vpack.c.bf16 %v47, %v46
    %v104 = vpack.c.bf16 %v49, %v48
    %v105 = vpack.c.bf16 %v51, %v50
    %v106 = vpack.c.bf16 %v53, %v52
    %v107 = vpack.c.bf16 %v55, %v54
    %v108 = vpack.c.bf16 %v57, %v56
    %v109 = vpack.c.bf16 %v59, %v58
    %v110 = vpack.c.bf16 %v61, %v60
    %v111 = vpack.c.bf16 %v63, %v62
    %v112 = vpack.c.bf16 %v65, %v64
    %v113 = vpack.c.bf16 %v67, %v66
    %v114 = vpack.c.bf16 %v69, %v68
    %v115 = vpack.c.bf16 %v71, %v70
    %v116 = vpack.c.bf16 %v73, %v72
    %v117 = vpack.c.bf16 %v75, %v74
    %v118 = vpack.c.bf16 %v77, %v76
    %v119 = vpack.c.bf16 %v79, %v78
    %v120 = vpack.c.bf16 %v81, %v80
    %v121 = vpack.c.bf16 %v83, %v82
    %v122 = vpack.c.bf16 %v85, %v84
    %v123 = vpack.c.bf16 %v87, %v86
    %v124 = vpack.c.bf16 %v89, %v88
    %v125 = vpack.c.bf16 %v91, %v90
    %v126 = vpack.c.bf16 %v93, %v92
    %v127 = vpack.c.bf16 %v95, %v94
    %v128 = vld [vmem:[%s1] sm:$0xf]
    %v129 = vld [vmem:[%s1 + $0x4] sm:$0xf]
    %v130 = vld [vmem:[%s1 + $0x8] sm:$0xf]
    %v131 = vld [vmem:[%s1 + $0xc] sm:$0xf]
    %v132 = vld [vmem:[%s1 + $0x10] sm:$0xf]
    %v133 = vld [vmem:[%s1 + $0x14] sm:$0xf]
    %v134 = vld [vmem:[%s1 + $0x18] sm:$0xf]
    %v135 = vld [vmem:[%s1 + $0x1c] sm:$0xf]
    %v144 = vunpack.c.l.b16 %v128
    %v145 = vunpack.c.l.b16 %v129
    %v146 = vunpack.c.l.b16 %v130
    %v147 = vunpack.c.l.b16 %v131
    %v148 = vunpack.c.l.b16 %v132
    %v149 = vunpack.c.l.b16 %v133
    %v150 = vunpack.c.l.b16 %v134
    %v151 = vunpack.c.l.b16 %v135
    %v152 = vpack.c.b16 %v145, %v144
    %v153 = vpack.c.b16 %v147, %v146
    %v154 = vpack.c.b16 %v149, %v148
    %v155 = vpack.c.b16 %v151, %v150
    %vm160 = vcmask 523264
    %v162 = vsel %vm160, %v96, 0
    %v165 = vsel %vm160, %v97, 0
    %v168 = vsel %vm160, %v98, 0
    %v171 = vsel %vm160, %v99, 0
    %v174 = vsel %vm160, %v100, 0
    %v177 = vsel %vm160, %v101, 0
    %v180 = vsel %vm160, %v102, 0
    %v183 = vsel %vm160, %v103, 0
    %v186 = vsel %vm160, %v104, 0
    %v189 = vsel %vm160, %v105, 0
    %v192 = vsel %vm160, %v106, 0
    %v195 = vsel %vm160, %v107, 0
    %v198 = vsel %vm160, %v108, 0
    %v201 = vsel %vm160, %v109, 0
    %v204 = vsel %vm160, %v110, 0
    %v207 = vsel %vm160, %v111, 0
    %v210 = vsel %vm160, %v112, 0
    %v213 = vsel %vm160, %v113, 0
    %v216 = vsel %vm160, %v114, 0
    %v219 = vsel %vm160, %v115, 0
    %v222 = vsel %vm160, %v116, 0
    %v225 = vsel %vm160, %v117, 0
    %v228 = vsel %vm160, %v118, 0
    %v231 = vsel %vm160, %v119, 0
    %v234 = vsel %vm160, %v120, 0
    %v237 = vsel %vm160, %v121, 0
    %v240 = vsel %vm160, %v122, 0
    %v243 = vsel %vm160, %v123, 0
    %v246 = vsel %vm160, %v124, 0
    %v249 = vsel %vm160, %v125, 0
    %v252 = vsel %vm160, %v126, 0
    %v255 = vsel %vm160, %v127, 0
    %257 = vmatprep.subr.bf16.mxu0 0
    %258 = vmatpush1.bf16.msra.mxu0 %v152
    %259 = vmatprep.subr.bf16.mxu0 0
    %260 = vmatpush1.bf16.msra.mxu0 %v153
    %261 = vmatprep.subr.bf16.mxu0 0
    %262 = vmatpush1.bf16.msra.mxu0 %v154
    %263 = vmatprep.subr.bf16.mxu0 0
    %264 = vmatpush1.bf16.msra.mxu0 %v155
    %265 = vmatprep.subr.bf16.mxu0 0
    %266 = vmatpush1.bf16.msra.mxu0 0
    %267 = vmatprep.subr.bf16.mxu0 0
    %268 = vmatpush1.bf16.msra.mxu0 0
    %269 = vmatprep.subr.bf16.mxu0 0
    %270 = vmatpush1.bf16.msra.mxu0 0
    %271 = vmatprep.subr.bf16.mxu0 0
    %272 = vmatpush1.bf16.msra.mxu0 0
    %273 = vmatprep.subr.bf16.mxu0 0
    %274 = vmatpush1.bf16.msra.mxu0 0
    %275 = vmatprep.subr.bf16.mxu0 0
    %276 = vmatpush1.bf16.msra.mxu0 0
    %277 = vmatprep.subr.bf16.mxu0 0
    %278 = vmatpush1.bf16.msra.mxu0 0
    %279 = vmatprep.subr.bf16.mxu0 0
    %280 = vmatpush1.bf16.msra.mxu0 0
    %281 = vmatprep.subr.bf16.mxu0 0
    %282 = vmatpush1.bf16.msra.mxu0 0
    %283 = vmatprep.subr.bf16.mxu0 0
    %284 = vmatpush1.bf16.msra.mxu0 0
    %285 = vmatprep.subr.bf16.mxu0 0
    %286 = vmatpush1.bf16.msra.mxu0 0
    %287 = vmatprep.subr.bf16.mxu0 0
    %288 = vmatpush1.bf16.msra.mxu0 0
    %289 = vmatprep.mubr.bf16.mxu0 0
    %290 = vmatmul.mubr.bf16.gmra.mrb[0].mxu0 %v162
    %v291 = vpop.f32.mrb[0].mxu0
    %v292 = vadd.f32 0.0, %v291
    %v293 = vpop.f32.mrb[0].mxu0
    %v294 = vpop.f32.mrb[0].mxu0
    %v295 = vadd.f32 0.0, %v294
    %v296 = vpop.f32.mrb[0].mxu0
    %297 = vmatprep.mubr.bf16.mxu0 0
    %298 = vmatmul.mubr.bf16.gmra.mrb[0].mxu0 %v165
    %v299 = vpop.f32.mrb[0].mxu0
    %v300 = vadd.f32 0.0, %v299
    %v301 = vpop.f32.mrb[0].mxu0
    %v302 = vpop.f32.mrb[0].mxu0
    %v303 = vadd.f32 0.0, %v302
    %v304 = vpop.f32.mrb[0].mxu0
    %305 = vmatprep.mubr.bf16.mxu0 0
    %306 = vmatmul.mubr.bf16.gmra.mrb[0].mxu0 %v168
    %v307 = vpop.f32.mrb[0].mxu0
    %v308 = vadd.f32 0.0, %v307
    %v309 = vpop.f32.mrb[0].mxu0
    %v310 = vpop.f32.mrb[0].mxu0
    %v311 = vadd.f32 0.0, %v310
    %v312 = vpop.f32.mrb[0].mxu0
    %313 = vmatprep.mubr.bf16.mxu0 0
    %314 = vmatmul.mubr.bf16.gmra.mrb[0].mxu0 %v171
    %v315 = vpop.f32.mrb[0].mxu0
    %v316 = vadd.f32 0.0, %v315
    %v317 = vpop.f32.mrb[0].mxu0
    %v318 = vpop.f32.mrb[0].mxu0
    %v319 = vadd.f32 0.0, %v318
    %v320 = vpop.f32.mrb[0].mxu0
    %321 = vmatprep.mubr.bf16.mxu0 0
    %322 = vmatmul.mubr.bf16.gmra.mrb[0].mxu0 %v174
    %v323 = vpop.f32.mrb[0].mxu0
    %v324 = vadd.f32 0.0, %v323
    %v325 = vpop.f32.mrb[0].mxu0
    %v326 = vpop.f32.mrb[0].mxu0
    %v327 = vadd.f32 0.0, %v326
    %v328 = vpop.f32.mrb[0].mxu0
    %329 = vmatprep.mubr.bf16.mxu0 0
    %330 = vmatmul.mubr.bf16.gmra.mrb[0].mxu0 %v177
    %v331 = vpop.f32.mrb[0].mxu0
    %v332 = vadd.f32 0.0, %v331
    %v333 = vpop.f32.mrb[0].mxu0
    %v334 = vpop.f32.mrb[0].mxu0
    %v335 = vadd.f32 0.0, %v334
    %v336 = vpop.f32.mrb[0].mxu0
    %337 = vmatprep.mubr.bf16.mxu0 0
    %338 = vmatmul.mubr.bf16.gmra.mrb[0].mxu0 %v180
    %v339 = vpop.f32.mrb[0].mxu0
    %v340 = vadd.f32 0.0, %v339
    %v341 = vpop.f32.mrb[0].mxu0
    %v342 = vpop.f32.mrb[0].mxu0
    %v343 = vadd.f32 0.0, %v342
    %v344 = vpop.f32.mrb[0].mxu0
    %345 = vmatprep.mubr.bf16.mxu0 0
    %346 = vmatmul.mubr.bf16.gmra.mrb[0].mxu0 %v183
    %v347 = vpop.f32.mrb[0].mxu0
    %v348 = vadd.f32 0.0, %v347
    %v349 = vpop.f32.mrb[0].mxu0
    %v350 = vpop.f32.mrb[0].mxu0
    %v351 = vadd.f32 0.0, %v350
    %v352 = vpop.f32.mrb[0].mxu0
    %353 = vmatprep.mubr.bf16.mxu0 0
    %354 = vmatmul.mubr.bf16.gmra.mrb[0].mxu0 %v186
    %v355 = vpop.f32.mrb[0].mxu0
    %v356 = vadd.f32 0.0, %v355
    %v357 = vpop.f32.mrb[0].mxu0
    %v358 = vpop.f32.mrb[0].mxu0
    %v359 = vadd.f32 0.0, %v358
    %v360 = vpop.f32.mrb[0].mxu0
    %361 = vmatprep.mubr.bf16.mxu0 0
    %362 = vmatmul.mubr.bf16.gmra.mrb[0].mxu0 %v189
    %v363 = vpop.f32.mrb[0].mxu0
    %v364 = vadd.f32 0.0, %v363
    %v365 = vpop.f32.mrb[0].mxu0
    %v366 = vpop.f32.mrb[0].mxu0
    %v367 = vadd.f32 0.0, %v366
    %v368 = vpop.f32.mrb[0].mxu0
    %369 = vmatprep.mubr.bf16.mxu0 0
    %370 = vmatmul.mubr.bf16.gmra.mrb[0].mxu0 %v192
    %v371 = vpop.f32.mrb[0].mxu0
    %v372 = vadd.f32 0.0, %v371
    %v373 = vpop.f32.mrb[0].mxu0
    %v374 = vpop.f32.mrb[0].mxu0
    %v375 = vadd.f32 0.0, %v374
    %v376 = vpop.f32.mrb[0].mxu0
    %377 = vmatprep.mubr.bf16.mxu0 0
    %378 = vmatmul.mubr.bf16.gmra.mrb[0].mxu0 %v195
    %v379 = vpop.f32.mrb[0].mxu0
    %v380 = vadd.f32 0.0, %v379
    %v381 = vpop.f32.mrb[0].mxu0
    %v382 = vpop.f32.mrb[0].mxu0
    %v383 = vadd.f32 0.0, %v382
    %v384 = vpop.f32.mrb[0].mxu0
    %385 = vmatprep.mubr.bf16.mxu0 0
    %386 = vmatmul.mubr.bf16.gmra.mrb[0].mxu0 %v198
    %v387 = vpop.f32.mrb[0].mxu0
    %v388 = vadd.f32 0.0, %v387
    %v389 = vpop.f32.mrb[0].mxu0
    %v390 = vpop.f32.mrb[0].mxu0
    %v391 = vadd.f32 0.0, %v390
    %v392 = vpop.f32.mrb[0].mxu0
    %393 = vmatprep.mubr.bf16.mxu0 0
    %394 = vmatmul.mubr.bf16.gmra.mrb[0].mxu0 %v201
    %v395 = vpop.f32.mrb[0].mxu0
    %v396 = vadd.f32 0.0, %v395
    %v397 = vpop.f32.mrb[0].mxu0
    %v398 = vpop.f32.mrb[0].mxu0
    %v399 = vadd.f32 0.0, %v398
    %v400 = vpop.f32.mrb[0].mxu0
    %401 = vmatprep.mubr.bf16.mxu0 0
    %402 = vmatmul.mubr.bf16.gmra.mrb[0].mxu0 %v204
    %v403 = vpop.f32.mrb[0].mxu0
    %v404 = vadd.f32 0.0, %v403
    %v405 = vpop.f32.mrb[0].mxu0
    %v406 = vpop.f32.mrb[0].mxu0
    %v407 = vadd.f32 0.0, %v406
    %v408 = vpop.f32.mrb[0].mxu0
    %409 = vmatprep.mubr.bf16.mxu0 0
    %410 = vmatmul.mubr.bf16.gmra.mrb[0].mxu0 %v207
    %v411 = vpop.f32.mrb[0].mxu0
    %v412 = vadd.f32 0.0, %v411
    %v413 = vpop.f32.mrb[0].mxu0
    %v414 = vpop.f32.mrb[0].mxu0
    %v415 = vadd.f32 0.0, %v414
    %v416 = vpop.f32.mrb[0].mxu0
    %417 = vmatprep.mubr.bf16.mxu0 0
    %418 = vmatmul.mubr.bf16.gmra.mrb[0].mxu0 %v210
    %v419 = vpop.f32.mrb[0].mxu0
    %v420 = vadd.f32 0.0, %v419
    %v421 = vpop.f32.mrb[0].mxu0
    %v422 = vpop.f32.mrb[0].mxu0
    %v423 = vadd.f32 0.0, %v422
    %v424 = vpop.f32.mrb[0].mxu0
    %425 = vmatprep.mubr.bf16.mxu0 0
    %426 = vmatmul.mubr.bf16.gmra.mrb[0].mxu0 %v213
    %v427 = vpop.f32.mrb[0].mxu0
    %v428 = vadd.f32 0.0, %v427
    %v429 = vpop.f32.mrb[0].mxu0
    %v430 = vpop.f32.mrb[0].mxu0
    %v431 = vadd.f32 0.0, %v430
    %v432 = vpop.f32.mrb[0].mxu0
    %433 = vmatprep.mubr.bf16.mxu0 0
    %434 = vmatmul.mubr.bf16.gmra.mrb[0].mxu0 %v216
    %v435 = vpop.f32.mrb[0].mxu0
    %v436 = vadd.f32 0.0, %v435
    %v437 = vpop.f32.mrb[0].mxu0
    %v438 = vpop.f32.mrb[0].mxu0
    %v439 = vadd.f32 0.0, %v438
    %v440 = vpop.f32.mrb[0].mxu0
    %441 = vmatprep.mubr.bf16.mxu0 0
    %442 = vmatmul.mubr.bf16.gmra.mrb[0].mxu0 %v219
    %v443 = vpop.f32.mrb[0].mxu0
    %v444 = vadd.f32 0.0, %v443
    %v445 = vpop.f32.mrb[0].mxu0
    %v446 = vpop.f32.mrb[0].mxu0
    %v447 = vadd.f32 0.0, %v446
    %v448 = vpop.f32.mrb[0].mxu0
    %449 = vmatprep.mubr.bf16.mxu0 0
    %450 = vmatmul.mubr.bf16.gmra.mrb[0].mxu0 %v222
    %v451 = vpop.f32.mrb[0].mxu0
    %v452 = vadd.f32 0.0, %v451
    %v453 = vpop.f32.mrb[0].mxu0
    %v454 = vpop.f32.mrb[0].mxu0
    %v455 = vadd.f32 0.0, %v454
    %v456 = vpop.f32.mrb[0].mxu0
    %457 = vmatprep.mubr.bf16.mxu0 0
    %458 = vmatmul.mubr.bf16.gmra.mrb[0].mxu0 %v225
    %v459 = vpop.f32.mrb[0].mxu0
    %v460 = vadd.f32 0.0, %v459
    %v461 = vpop.f32.mrb[0].mxu0
    %v462 = vpop.f32.mrb[0].mxu0
    %v463 = vadd.f32 0.0, %v462
    %v464 = vpop.f32.mrb[0].mxu0
    %465 = vmatprep.mubr.bf16.mxu0 0
    %466 = vmatmul.mubr.bf16.gmra.mrb[0].mxu0 %v228
    %v467 = vpop.f32.mrb[0].mxu0
    %v468 = vadd.f32 0.0, %v467
    %v469 = vpop.f32.mrb[0].mxu0
    %v470 = vpop.f32.mrb[0].mxu0
    %v471 = vadd.f32 0.0, %v470
    %v472 = vpop.f32.mrb[0].mxu0
    %473 = vmatprep.mubr.bf16.mxu0 0
    %474 = vmatmul.mubr.bf16.gmra.mrb[0].mxu0 %v231
    %v475 = vpop.f32.mrb[0].mxu0
    %v476 = vadd.f32 0.0, %v475
    %v477 = vpop.f32.mrb[0].mxu0
    %v478 = vpop.f32.mrb[0].mxu0
    %v479 = vadd.f32 0.0, %v478
    %v480 = vpop.f32.mrb[0].mxu0
    %481 = vmatprep.mubr.bf16.mxu0 0
    %482 = vmatmul.mubr.bf16.gmra.mrb[0].mxu0 %v234
    %v483 = vpop.f32.mrb[0].mxu0
    %v484 = vadd.f32 0.0, %v483
    %v485 = vpop.f32.mrb[0].mxu0
    %v486 = vpop.f32.mrb[0].mxu0
    %v487 = vadd.f32 0.0, %v486
    %v488 = vpop.f32.mrb[0].mxu0
    %489 = vmatprep.mubr.bf16.mxu0 0
    %490 = vmatmul.mubr.bf16.gmra.mrb[0].mxu0 %v237
    %v491 = vpop.f32.mrb[0].mxu0
    %v492 = vadd.f32 0.0, %v491
    %v493 = vpop.f32.mrb[0].mxu0
    %v494 = vpop.f32.mrb[0].mxu0
    %v495 = vadd.f32 0.0, %v494
    %v496 = vpop.f32.mrb[0].mxu0
    %497 = vmatprep.mubr.bf16.mxu0 0
    %498 = vmatmul.mubr.bf16.gmra.mrb[0].mxu0 %v240
    %v499 = vpop.f32.mrb[0].mxu0
    %v500 = vadd.f32 0.0, %v499
    %v501 = vpop.f32.mrb[0].mxu0
    %v502 = vpop.f32.mrb[0].mxu0
    %v503 = vadd.f32 0.0, %v502
    %v504 = vpop.f32.mrb[0].mxu0
    %505 = vmatprep.mubr.bf16.mxu0 0
    %506 = vmatmul.mubr.bf16.gmra.mrb[0].mxu0 %v243
    %v507 = vpop.f32.mrb[0].mxu0
    %v508 = vadd.f32 0.0, %v507
    %v509 = vpop.f32.mrb[0].mxu0
    %v510 = vpop.f32.mrb[0].mxu0
    %v511 = vadd.f32 0.0, %v510
    %v512 = vpop.f32.mrb[0].mxu0
    %513 = vmatprep.mubr.bf16.mxu0 0
    %514 = vmatmul.mubr.bf16.gmra.mrb[0].mxu0 %v246
    %v515 = vpop.f32.mrb[0].mxu0
    %v516 = vadd.f32 0.0, %v515
    %v517 = vpop.f32.mrb[0].mxu0
    %v518 = vpop.f32.mrb[0].mxu0
    %v519 = vadd.f32 0.0, %v518
    %v520 = vpop.f32.mrb[0].mxu0
    %521 = vmatprep.mubr.bf16.mxu0 0
    %522 = vmatmul.mubr.bf16.gmra.mrb[0].mxu0 %v249
    %v523 = vpop.f32.mrb[0].mxu0
    %v524 = vadd.f32 0.0, %v523
    %v525 = vpop.f32.mrb[0].mxu0
    %v526 = vpop.f32.mrb[0].mxu0
    %v527 = vadd.f32 0.0, %v526
    %v528 = vpop.f32.mrb[0].mxu0
    %529 = vmatprep.mubr.bf16.mxu0 0
    %530 = vmatmul.mubr.bf16.gmra.mrb[0].mxu0 %v252
    %v531 = vpop.f32.mrb[0].mxu0
    %v532 = vadd.f32 0.0, %v531
    %v533 = vpop.f32.mrb[0].mxu0
    %v534 = vpop.f32.mrb[0].mxu0
    %v535 = vadd.f32 0.0, %v534
    %v536 = vpop.f32.mrb[0].mxu0
    %537 = vmatprep.mubr.bf16.mxu0 0
    %538 = vmatmul.mubr.bf16.gmra.mrb[0].mxu0 %v255
    %v539 = vpop.f32.mrb[0].mxu0
    %v540 = vadd.f32 0.0, %v539
    %v541 = vpop.f32.mrb[0].mxu0
    %v542 = vpop.f32.mrb[0].mxu0
    %v543 = vadd.f32 0.0, %v542
    %v544 = vpop.f32.mrb[0].mxu0
    %545 = vdwg.mxu0
    %v546 = vld [vmem:[%s2] sm:$0x1]
    %v548 = vlaneseq
    %v549 = vshrl.u32 %v548, 7
    %v550 = vsub.s32 0, %v549
    %v551 = vrot.slane %v546, %v550
    %v553 = vmul.f32 %v292, %v551
    %v554 = vmul.f32 %v295, %v551
    %v555 = vmul.f32 %v300, %v551
    %v556 = vmul.f32 %v303, %v551
    %v557 = vmul.f32 %v308, %v551
    %v558 = vmul.f32 %v311, %v551
    %v559 = vmul.f32 %v316, %v551
    %v560 = vmul.f32 %v319, %v551
    %v561 = vmul.f32 %v324, %v551
    %v562 = vmul.f32 %v327, %v551
    %v563 = vmul.f32 %v332, %v551
    %v564 = vmul.f32 %v335, %v551
    %v565 = vmul.f32 %v340, %v551
    %v566 = vmul.f32 %v343, %v551
    %v567 = vmul.f32 %v348, %v551
    %v568 = vmul.f32 %v351, %v551
    %v569 = vmul.f32 %v356, %v551
    %v570 = vmul.f32 %v359, %v551
    %v571 = vmul.f32 %v364, %v551
    %v572 = vmul.f32 %v367, %v551
    %v573 = vmul.f32 %v372, %v551
    %v574 = vmul.f32 %v375, %v551
    %v575 = vmul.f32 %v380, %v551
    %v576 = vmul.f32 %v383, %v551
    %v577 = vmul.f32 %v388, %v551
    %v578 = vmul.f32 %v391, %v551
    %v579 = vmul.f32 %v396, %v551
    %v580 = vmul.f32 %v399, %v551
    %v581 = vmul.f32 %v404, %v551
    %v582 = vmul.f32 %v407, %v551
    %v583 = vmul.f32 %v412, %v551
    %v584 = vmul.f32 %v415, %v551
    %v585 = vmul.f32 %v420, %v551
    %v586 = vmul.f32 %v423, %v551
    %v587 = vmul.f32 %v428, %v551
    %v588 = vmul.f32 %v431, %v551
    %v589 = vmul.f32 %v436, %v551
    %v590 = vmul.f32 %v439, %v551
    %v591 = vmul.f32 %v444, %v551
    %v592 = vmul.f32 %v447, %v551
    %v593 = vmul.f32 %v452, %v551
    %v594 = vmul.f32 %v455, %v551
    %v595 = vmul.f32 %v460, %v551
    %v596 = vmul.f32 %v463, %v551
    %v597 = vmul.f32 %v468, %v551
    %v598 = vmul.f32 %v471, %v551
    %v599 = vmul.f32 %v476, %v551
    %v600 = vmul.f32 %v479, %v551
    %v601 = vmul.f32 %v484, %v551
    %v602 = vmul.f32 %v487, %v551
    %v603 = vmul.f32 %v492, %v551
    %v604 = vmul.f32 %v495, %v551
    %v605 = vmul.f32 %v500, %v551
    %v606 = vmul.f32 %v503, %v551
    %v607 = vmul.f32 %v508, %v551
    %v608 = vmul.f32 %v511, %v551
    %v609 = vmul.f32 %v516, %v551
    %v610 = vmul.f32 %v519, %v551
    %v611 = vmul.f32 %v524, %v551
    %v612 = vmul.f32 %v527, %v551
    %v613 = vmul.f32 %v532, %v551
    %v614 = vmul.f32 %v535, %v551
    %v615 = vmul.f32 %v540, %v551
    %v616 = vmul.f32 %v543, %v551
    %v617 = vld [vmem:[%s3] sm:$0x1]
    %v619 = vlaneseq
    %v620 = vshrl.u32 %v619, 7
    %v621 = vsub.s32 0, %v620
    %v622 = vrot.slane %v617, %v621
    %v624 = vadd.f32 %v553, %v622
    %v625 = vadd.f32 %v554, %v622
    %v626 = vadd.f32 %v555, %v622
    %v627 = vadd.f32 %v556, %v622
    %v628 = vadd.f32 %v557, %v622
    %v629 = vadd.f32 %v558, %v622
    %v630 = vadd.f32 %v559, %v622
    %v631 = vadd.f32 %v560, %v622
    %v632 = vadd.f32 %v561, %v622
    %v633 = vadd.f32 %v562, %v622
    %v634 = vadd.f32 %v563, %v622
    %v635 = vadd.f32 %v564, %v622
    %v636 = vadd.f32 %v565, %v622
    %v637 = vadd.f32 %v566, %v622
    %v638 = vadd.f32 %v567, %v622
    %v639 = vadd.f32 %v568, %v622
    %v640 = vadd.f32 %v569, %v622
    %v641 = vadd.f32 %v570, %v622
    %v642 = vadd.f32 %v571, %v622
    %v643 = vadd.f32 %v572, %v622
    %v644 = vadd.f32 %v573, %v622
    %v645 = vadd.f32 %v574, %v622
    %v646 = vadd.f32 %v575, %v622
    %v647 = vadd.f32 %v576, %v622
    %v648 = vadd.f32 %v577, %v622
    %v649 = vadd.f32 %v578, %v622
    %v650 = vadd.f32 %v579, %v622
    %v651 = vadd.f32 %v580, %v622
    %v652 = vadd.f32 %v581, %v622
    %v653 = vadd.f32 %v582, %v622
    %v654 = vadd.f32 %v583, %v622
    %v655 = vadd.f32 %v584, %v622
    %v656 = vadd.f32 %v585, %v622
    %v657 = vadd.f32 %v586, %v622
    %v658 = vadd.f32 %v587, %v622
    %v659 = vadd.f32 %v588, %v622
    %v660 = vadd.f32 %v589, %v622
    %v661 = vadd.f32 %v590, %v622
    %v662 = vadd.f32 %v591, %v622
    %v663 = vadd.f32 %v592, %v622
    %v664 = vadd.f32 %v593, %v622
    %v665 = vadd.f32 %v594, %v622
    %v666 = vadd.f32 %v595, %v622
    %v667 = vadd.f32 %v596, %v622
    %v668 = vadd.f32 %v597, %v622
    %v669 = vadd.f32 %v598, %v622
    %v670 = vadd.f32 %v599, %v622
    %v671 = vadd.f32 %v600, %v622
    %v672 = vadd.f32 %v601, %v622
    %v673 = vadd.f32 %v602, %v622
    %v674 = vadd.f32 %v603, %v622
    %v675 = vadd.f32 %v604, %v622
    %v676 = vadd.f32 %v605, %v622
    %v677 = vadd.f32 %v606, %v622
    %v678 = vadd.f32 %v607, %v622
    %v679 = vadd.f32 %v608, %v622
    %v680 = vadd.f32 %v609, %v622
    %v681 = vadd.f32 %v610, %v622
    %v682 = vadd.f32 %v611, %v622
    %v683 = vadd.f32 %v612, %v622
    %v684 = vadd.f32 %v613, %v622
    %v685 = vadd.f32 %v614, %v622
    %v686 = vadd.f32 %v615, %v622
    %v687 = vadd.f32 %v616, %v622
    %v688 = vmax.f32 %v624, 0.0
    %v689 = vmax.f32 %v625, 0.0
    %v690 = vmax.f32 %v626, 0.0
    %v691 = vmax.f32 %v627, 0.0
    %v692 = vmax.f32 %v628, 0.0
    %v693 = vmax.f32 %v629, 0.0
    %v694 = vmax.f32 %v630, 0.0
    %v695 = vmax.f32 %v631, 0.0
    %v696 = vmax.f32 %v632, 0.0
    %v697 = vmax.f32 %v633, 0.0
    %v698 = vmax.f32 %v634, 0.0
    %v699 = vmax.f32 %v635, 0.0
    %v700 = vmax.f32 %v636, 0.0
    %v701 = vmax.f32 %v637, 0.0
    %v702 = vmax.f32 %v638, 0.0
    %v703 = vmax.f32 %v639, 0.0
    %v704 = vmax.f32 %v640, 0.0
    %v705 = vmax.f32 %v641, 0.0
    %v706 = vmax.f32 %v642, 0.0
    %v707 = vmax.f32 %v643, 0.0
    %v708 = vmax.f32 %v644, 0.0
    %v709 = vmax.f32 %v645, 0.0
    %v710 = vmax.f32 %v646, 0.0
    %v711 = vmax.f32 %v647, 0.0
    %v712 = vmax.f32 %v648, 0.0
    %v713 = vmax.f32 %v649, 0.0
    %v714 = vmax.f32 %v650, 0.0
    %v715 = vmax.f32 %v651, 0.0
    %v716 = vmax.f32 %v652, 0.0
    %v717 = vmax.f32 %v653, 0.0
    %v718 = vmax.f32 %v654, 0.0
    %v719 = vmax.f32 %v655, 0.0
    %v720 = vmax.f32 %v656, 0.0
    %v721 = vmax.f32 %v657, 0.0
    %v722 = vmax.f32 %v658, 0.0
    %v723 = vmax.f32 %v659, 0.0
    %v724 = vmax.f32 %v660, 0.0
    %v725 = vmax.f32 %v661, 0.0
    %v726 = vmax.f32 %v662, 0.0
    %v727 = vmax.f32 %v663, 0.0
    %v728 = vmax.f32 %v664, 0.0
    %v729 = vmax.f32 %v665, 0.0
    %v730 = vmax.f32 %v666, 0.0
    %v731 = vmax.f32 %v667, 0.0
    %v732 = vmax.f32 %v668, 0.0
    %v733 = vmax.f32 %v669, 0.0
    %v734 = vmax.f32 %v670, 0.0
    %v735 = vmax.f32 %v671, 0.0
    %v736 = vmax.f32 %v672, 0.0
    %v737 = vmax.f32 %v673, 0.0
    %v738 = vmax.f32 %v674, 0.0
    %v739 = vmax.f32 %v675, 0.0
    %v740 = vmax.f32 %v676, 0.0
    %v741 = vmax.f32 %v677, 0.0
    %v742 = vmax.f32 %v678, 0.0
    %v743 = vmax.f32 %v679, 0.0
    %v744 = vmax.f32 %v680, 0.0
    %v745 = vmax.f32 %v681, 0.0
    %v746 = vmax.f32 %v682, 0.0
    %v747 = vmax.f32 %v683, 0.0
    %v748 = vmax.f32 %v684, 0.0
    %v749 = vmax.f32 %v685, 0.0
    %v750 = vmax.f32 %v686, 0.0
    %v751 = vmax.f32 %v687, 0.0
    %v752 = vpack.c.bf16 %v689, %v688
    %v753 = vpack.c.bf16 %v691, %v690
    %v754 = vpack.c.bf16 %v693, %v692
    %v755 = vpack.c.bf16 %v695, %v694
    %v756 = vpack.c.bf16 %v697, %v696
    %v757 = vpack.c.bf16 %v699, %v698
    %v758 = vpack.c.bf16 %v701, %v700
    %v759 = vpack.c.bf16 %v703, %v702
    %v760 = vpack.c.bf16 %v705, %v704
    %v761 = vpack.c.bf16 %v707, %v706
    %v762 = vpack.c.bf16 %v709, %v708
    %v763 = vpack.c.bf16 %v711, %v710
    %v764 = vpack.c.bf16 %v713, %v712
    %v765 = vpack.c.bf16 %v715, %v714
    %v766 = vpack.c.bf16 %v717, %v716
    %v767 = vpack.c.bf16 %v719, %v718
    %v768 = vpack.c.bf16 %v721, %v720
    %v769 = vpack.c.bf16 %v723, %v722
    %v770 = vpack.c.bf16 %v725, %v724
    %v771 = vpack.c.bf16 %v727, %v726
    %v772 = vpack.c.bf16 %v729, %v728
    %v773 = vpack.c.bf16 %v731, %v730
    %v774 = vpack.c.bf16 %v733, %v732
    %v775 = vpack.c.bf16 %v735, %v734
    %v776 = vpack.c.bf16 %v737, %v736
    %v777 = vpack.c.bf16 %v739, %v738
    %v778 = vpack.c.bf16 %v741, %v740
    %v779 = vpack.c.bf16 %v743, %v742
    %v780 = vpack.c.bf16 %v745, %v744
    %v781 = vpack.c.bf16 %v747, %v746
    %v782 = vpack.c.bf16 %v749, %v748
    %v783 = vpack.c.bf16 %v751, %v750
    %v816 = vunpack.c.l.b16 %v752
    %v817 = vunpack.c.h.b16 %v752
    %v818 = vunpack.c.l.b16 %v753
    %v819 = vunpack.c.h.b16 %v753
    %v820 = vunpack.c.l.b16 %v754
    %v821 = vunpack.c.h.b16 %v754
    %v822 = vunpack.c.l.b16 %v755
    %v823 = vunpack.c.h.b16 %v755
    %v824 = vunpack.c.l.b16 %v756
    %v825 = vunpack.c.h.b16 %v756
    %v826 = vunpack.c.l.b16 %v757
    %v827 = vunpack.c.h.b16 %v757
    %v828 = vunpack.c.l.b16 %v758
    %v829 = vunpack.c.h.b16 %v758
    %v830 = vunpack.c.l.b16 %v759
    %v831 = vunpack.c.h.b16 %v759
    %v832 = vunpack.c.l.b16 %v760
    %v833 = vunpack.c.h.b16 %v760
    %v834 = vunpack.c.l.b16 %v761
    %v835 = vunpack.c.h.b16 %v761
    %v836 = vunpack.c.l.b16 %v762
    %v837 = vunpack.c.h.b16 %v762
    %v838 = vunpack.c.l.b16 %v763
    %v839 = vunpack.c.h.b16 %v763
    %v840 = vunpack.c.l.b16 %v764
    %v841 = vunpack.c.h.b16 %v764
    %v842 = vunpack.c.l.b16 %v765
    %v843 = vunpack.c.h.b16 %v765
    %v844 = vunpack.c.l.b16 %v766
    %v845 = vunpack.c.h.b16 %v766
    %v846 = vunpack.c.l.b16 %v767
    %v847 = vunpack.c.h.b16 %v767
    %v848 = vunpack.c.l.b16 %v768
    %v849 = vunpack.c.h.b16 %v768
    %v850 = vunpack.c.l.b16 %v769
    %v851 = vunpack.c.h.b16 %v769
    %v852 = vunpack.c.l.b16 %v770
    %v853 = vunpack.c.h.b16 %v770
    %v854 = vunpack.c.l.b16 %v771
    %v855 = vunpack.c.h.b16 %v771
    %v856 = vunpack.c.l.b16 %v772
    %v857 = vunpack.c.h.b16 %v772
    %v858 = vunpack.c.l.b16 %v773
    %v859 = vunpack.c.h.b16 %v773
    %v860 = vunpack.c.l.b16 %v774
    %v861 = vunpack.c.h.b16 %v774
    %v862 = vunpack.c.l.b16 %v775
    %v863 = vunpack.c.h.b16 %v775
    %v864 = vunpack.c.l.b16 %v776
    %v865 = vunpack.c.h.b16 %v776
    %v866 = vunpack.c.l.b16 %v777
    %v867 = vunpack.c.h.b16 %v777
    %v868 = vunpack.c.l.b16 %v778
    %v869 = vunpack.c.h.b16 %v778
    %v870 = vunpack.c.l.b16 %v779
    %v871 = vunpack.c.h.b16 %v779
    %v872 = vunpack.c.l.b16 %v780
    %v873 = vunpack.c.h.b16 %v780
    %v874 = vunpack.c.l.b16 %v781
    %v875 = vunpack.c.h.b16 %v781
    %v876 = vunpack.c.l.b16 %v782
    %v877 = vunpack.c.h.b16 %v782
    %v878 = vunpack.c.l.b16 %v783
    %v879 = vunpack.c.h.b16 %v783
    %v880 = vpack.c.b16 %v816, %v816
    %v881 = vpack.c.b16 %v817, %v817
    %v882 = vpack.c.b16 %v818, %v818
    %v883 = vpack.c.b16 %v819, %v819
    %v884 = vpack.c.b16 %v820, %v820
    %v885 = vpack.c.b16 %v821, %v821
    %v886 = vpack.c.b16 %v822, %v822
    %v887 = vpack.c.b16 %v823, %v823
    %v888 = vpack.c.b16 %v824, %v824
    %v889 = vpack.c.b16 %v825, %v825
    %v890 = vpack.c.b16 %v826, %v826
    %v891 = vpack.c.b16 %v827, %v827
    %v892 = vpack.c.b16 %v828, %v828
    %v893 = vpack.c.b16 %v829, %v829
    %v894 = vpack.c.b16 %v830, %v830
    %v895 = vpack.c.b16 %v831, %v831
    %v896 = vpack.c.b16 %v832, %v832
    %v897 = vpack.c.b16 %v833, %v833
    %v898 = vpack.c.b16 %v834, %v834
    %v899 = vpack.c.b16 %v835, %v835
    %v900 = vpack.c.b16 %v836, %v836
    %v901 = vpack.c.b16 %v837, %v837
    %v902 = vpack.c.b16 %v838, %v838
    %v903 = vpack.c.b16 %v839, %v839
    %v904 = vpack.c.b16 %v840, %v840
    %v905 = vpack.c.b16 %v841, %v841
    %v906 = vpack.c.b16 %v842, %v842
    %v907 = vpack.c.b16 %v843, %v843
    %v908 = vpack.c.b16 %v844, %v844
    %v909 = vpack.c.b16 %v845, %v845
    %v910 = vpack.c.b16 %v846, %v846
    %v911 = vpack.c.b16 %v847, %v847
    %v912 = vpack.c.b16 %v848, %v848
    %v913 = vpack.c.b16 %v849, %v849
    %v914 = vpack.c.b16 %v850, %v850
    %v915 = vpack.c.b16 %v851, %v851
    %v916 = vpack.c.b16 %v852, %v852
    %v917 = vpack.c.b16 %v853, %v853
    %v918 = vpack.c.b16 %v854, %v854
    %v919 = vpack.c.b16 %v855, %v855
    %v920 = vpack.c.b16 %v856, %v856
    %v921 = vpack.c.b16 %v857, %v857
    %v922 = vpack.c.b16 %v858, %v858
    %v923 = vpack.c.b16 %v859, %v859
    %v924 = vpack.c.b16 %v860, %v860
    %v925 = vpack.c.b16 %v861, %v861
    %v926 = vpack.c.b16 %v862, %v862
    %v927 = vpack.c.b16 %v863, %v863
    %v928 = vpack.c.b16 %v864, %v864
    %v929 = vpack.c.b16 %v865, %v865
    %v930 = vpack.c.b16 %v866, %v866
    %v931 = vpack.c.b16 %v867, %v867
    %v932 = vpack.c.b16 %v868, %v868
    %v933 = vpack.c.b16 %v869, %v869
    %v934 = vpack.c.b16 %v870, %v870
    %v935 = vpack.c.b16 %v871, %v871
    %v936 = vpack.c.b16 %v872, %v872
    %v937 = vpack.c.b16 %v873, %v873
    %v938 = vpack.c.b16 %v874, %v874
    %v939 = vpack.c.b16 %v875, %v875
    %v940 = vpack.c.b16 %v876, %v876
    %v941 = vpack.c.b16 %v877, %v877
    %v942 = vpack.c.b16 %v878, %v878
    %v943 = vpack.c.b16 %v879, %v879
    %1008 = vst [vmem:[%s4] sm:$0xf] %v880
    %1009 = vst [vmem:[%s4 + $0x4] sm:$0xf] %v881
    %1010 = vst [vmem:[%s4 + $0x8] sm:$0xf] %v882
    %1011 = vst [vmem:[%s4 + $0xc] sm:$0xf] %v883
    %1012 = vst [vmem:[%s4 + $0x10] sm:$0xf] %v884
    %1013 = vst [vmem:[%s4 + $0x14] sm:$0xf] %v885
    %1014 = vst [vmem:[%s4 + $0x18] sm:$0xf] %v886
    %1015 = vst [vmem:[%s4 + $0x1c] sm:$0xf] %v887
    %1016 = vst [vmem:[%s4 + $0x20] sm:$0xf] %v888
    %1017 = vst [vmem:[%s4 + $0x24] sm:$0xf] %v889
    %1018 = vst [vmem:[%s4 + $0x28] sm:$0xf] %v890
    %1019 = vst [vmem:[%s4 + $0x2c] sm:$0xf] %v891
    %1020 = vst [vmem:[%s4 + $0x30] sm:$0xf] %v892
    %1021 = vst [vmem:[%s4 + $0x34] sm:$0xf] %v893
    %1022 = vst [vmem:[%s4 + $0x38] sm:$0xf] %v894
    %1023 = vst [vmem:[%s4 + $0x3c] sm:$0xf] %v895
    %1024 = vst [vmem:[%s4 + $0x40] sm:$0xf] %v896
    %1025 = vst [vmem:[%s4 + $0x44] sm:$0xf] %v897
    %1026 = vst [vmem:[%s4 + $0x48] sm:$0xf] %v898
    %1027 = vst [vmem:[%s4 + $0x4c] sm:$0xf] %v899
    %1028 = vst [vmem:[%s4 + $0x50] sm:$0xf] %v900
    %1029 = vst [vmem:[%s4 + $0x54] sm:$0xf] %v901
    %1030 = vst [vmem:[%s4 + $0x58] sm:$0xf] %v902
    %1031 = vst [vmem:[%s4 + $0x5c] sm:$0xf] %v903
    %1032 = vst [vmem:[%s4 + $0x60] sm:$0xf] %v904
    %1033 = vst [vmem:[%s4 + $0x64] sm:$0xf] %v905
    %1034 = vst [vmem:[%s4 + $0x68] sm:$0xf] %v906
    %1035 = vst [vmem:[%s4 + $0x6c] sm:$0xf] %v907
    %1036 = vst [vmem:[%s4 + $0x70] sm:$0xf] %v908
    %1037 = vst [vmem:[%s4 + $0x74] sm:$0xf] %v909
    %1038 = vst [vmem:[%s4 + $0x78] sm:$0xf] %v910
    %1039 = vst [vmem:[%s4 + $0x7c] sm:$0xf] %v911
    %1040 = vst [vmem:[%s4 + $0x80] sm:$0xf] %v912
    %1041 = vst [vmem:[%s4 + $0x84] sm:$0xf] %v913
    %1042 = vst [vmem:[%s4 + $0x88] sm:$0xf] %v914
    %1043 = vst [vmem:[%s4 + $0x8c] sm:$0xf] %v915
    %1044 = vst [vmem:[%s4 + $0x90] sm:$0xf] %v916
    %1045 = vst [vmem:[%s4 + $0x94] sm:$0xf] %v917
    %1046 = vst [vmem:[%s4 + $0x98] sm:$0xf] %v918
    %1047 = vst [vmem:[%s4 + $0x9c] sm:$0xf] %v919
    %1048 = vst [vmem:[%s4 + $0xa0] sm:$0xf] %v920
    %1049 = vst [vmem:[%s4 + $0xa4] sm:$0xf] %v921
    %1050 = vst [vmem:[%s4 + $0xa8] sm:$0xf] %v922
    %1051 = vst [vmem:[%s4 + $0xac] sm:$0xf] %v923
    %1052 = vst [vmem:[%s4 + $0xb0] sm:$0xf] %v924
    %1053 = vst [vmem:[%s4 + $0xb4] sm:$0xf] %v925
    %1054 = vst [vmem:[%s4 + $0xb8] sm:$0xf] %v926
    %1055 = vst [vmem:[%s4 + $0xbc] sm:$0xf] %v927
    %1056 = vst [vmem:[%s4 + $0xc0] sm:$0xf] %v928
    %1057 = vst [vmem:[%s4 + $0xc4] sm:$0xf] %v929
    %1058 = vst [vmem:[%s4 + $0xc8] sm:$0xf] %v930
    %1059 = vst [vmem:[%s4 + $0xcc] sm:$0xf] %v931
    %1060 = vst [vmem:[%s4 + $0xd0] sm:$0xf] %v932
    %1061 = vst [vmem:[%s4 + $0xd4] sm:$0xf] %v933
    %1062 = vst [vmem:[%s4 + $0xd8] sm:$0xf] %v934
    %1063 = vst [vmem:[%s4 + $0xdc] sm:$0xf] %v935
    %1064 = vst [vmem:[%s4 + $0xe0] sm:$0xf] %v936
    %1065 = vst [vmem:[%s4 + $0xe4] sm:$0xf] %v937
    %1066 = vst [vmem:[%s4 + $0xe8] sm:$0xf] %v938
    %1067 = vst [vmem:[%s4 + $0xec] sm:$0xf] %v939
    %1068 = vst [vmem:[%s4 + $0xf0] sm:$0xf] %v940
    %1069 = vst [vmem:[%s4 + $0xf4] sm:$0xf] %v941
    %1070 = vst [vmem:[%s4 + $0xf8] sm:$0xf] %v942
    %1071 = vst [vmem:[%s4 + $0xfc] sm:$0xf] %v943
    // Predicated region
    $region22: #{bottleneck_forward.4} parent=1 // pred_check
      _
    $region23: #{bottleneck_forward.4} parent=1 // pred_check_branch
      %1073 = sbr.rel (0) target = $region25
    $region24: #{bottleneck_forward.4} parent=1 // pred_region
      _
    $region25: #{bottleneck_forward.4} parent=1 // pred_fallthru
      _
    // Predicated region
    $region26: #{bottleneck_forward.4} parent=1 // pred_check
      _
    $region27: #{bottleneck_forward.4} parent=1 // pred_check_branch
      %1075 = sbr.rel (0) target = $region29
    $region28: #{bottleneck_forward.4} parent=1 // pred_region
      _
    $region29: #{bottleneck_forward.4} parent=1 // pred_fallthru
      _
    %1076 = vsyncpa [#allocation3], 1

// kernel: bottleneck_forward.6
$region0: #{bottleneck_forward.6}
  #allocation0 [shape = 'u32[]', space=smem, size = 0x4, offset = 0x4, fixed_abs, tag = 'smem constant byte address 0x4 - core index']
  #allocation1 [shape = 'u32[144,128]{1,0:T(1,128)}', space=vmem, size = 0x12000, scoped, tag = 'internal scratch']
  %s0 = inlined_call_operand.vmem [shape: f32[512,64], index: 0, kind: input, shape index: {}]
  %s1 = inlined_call_operand.vmem [shape: bf16[64,128], index: 1, kind: input, shape index: {}]
  %s2 = inlined_call_operand.vmem [shape: f32[1,128], index: 2, kind: input, shape index: {}]
  %s3 = inlined_call_operand.vmem [shape: f32[1,128], index: 3, kind: input, shape index: {}]
  %s4 = inlined_call_operand.vmem [shape: bf16[512,128], index: 4, kind: output, shape index: {}]
  %s5 = sld [smem:[#allocation0]]
  $region26: #{bottleneck_forward.6} parent=0
    _
  %s7 = ssub.s32 1, %s5
  %s8 = scalar_select 0, %s7, %s5
  // Predicated region
  $region2: #{bottleneck_forward.6} parent=0 // pred_check
    _
  $region3: #{bottleneck_forward.6} parent=0 // pred_check_branch
    %10 = sbr.rel (0) target = $region5
  $region4: #{bottleneck_forward.6} parent=0 // pred_region
    _
  $region5: #{bottleneck_forward.6} parent=0 // pred_fallthru
    _
  // Predicated region
  $region6: #{bottleneck_forward.6} parent=0 // pred_check
    _
  $region7: #{bottleneck_forward.6} parent=0 // pred_check_branch
    %12 = sbr.rel (0) target = $region9
  $region8: #{bottleneck_forward.6} parent=0 // pred_region
    _
  $region9: #{bottleneck_forward.6} parent=0 // pred_fallthru
    _
  // Predicated region
  $region10: #{bottleneck_forward.6} parent=0 // pred_check
    _
  $region11: #{bottleneck_forward.6} parent=0 // pred_check_branch
    %14 = sbr.rel (0) target = $region13
  $region12: #{bottleneck_forward.6} parent=0 // pred_region
    _
  $region13: #{bottleneck_forward.6} parent=0 // pred_fallthru
    _
  // Predicated region
  $region14: #{bottleneck_forward.6} parent=0 // pred_check
    _
  $region15: #{bottleneck_forward.6} parent=0 // pred_check_branch
    %16 = sbr.rel (0) target = $region17
  $region16: #{bottleneck_forward.6} parent=0 // pred_region
    _
  $region17: #{bottleneck_forward.6} parent=0 // pred_fallthru
    _
  %v18 = vld [vmem:[%s0] sm:$0xff]
  %v19 = vld [vmem:[%s0 + $0x8] sm:$0xff]
  %v20 = vld [vmem:[%s0 + $0x10] sm:$0xff]
  %v21 = vld [vmem:[%s0 + $0x18] sm:$0xff]
  %v22 = vld [vmem:[%s0 + $0x20] sm:$0xff]
  %v23 = vld [vmem:[%s0 + $0x28] sm:$0xff]
  %v24 = vld [vmem:[%s0 + $0x30] sm:$0xff]
  %v25 = vld [vmem:[%s0 + $0x38] sm:$0xff]
  %v26 = vld [vmem:[%s0 + $0x40] sm:$0xff]
  %v27 = vld [vmem:[%s0 + $0x48] sm:$0xff]
  %v28 = vld [vmem:[%s0 + $0x50] sm:$0xff]
  %v29 = vld [vmem:[%s0 + $0x58] sm:$0xff]
  %v30 = vld [vmem:[%s0 + $0x60] sm:$0xff]
  %v31 = vld [vmem:[%s0 + $0x68] sm:$0xff]
  %v32 = vld [vmem:[%s0 + $0x70] sm:$0xff]
  %v33 = vld [vmem:[%s0 + $0x78] sm:$0xff]
  %v34 = vld [vmem:[%s0 + $0x80] sm:$0xff]
  %v35 = vld [vmem:[%s0 + $0x88] sm:$0xff]
  %v36 = vld [vmem:[%s0 + $0x90] sm:$0xff]
  %v37 = vld [vmem:[%s0 + $0x98] sm:$0xff]
  %v38 = vld [vmem:[%s0 + $0xa0] sm:$0xff]
  %v39 = vld [vmem:[%s0 + $0xa8] sm:$0xff]
  %v40 = vld [vmem:[%s0 + $0xb0] sm:$0xff]
  %v41 = vld [vmem:[%s0 + $0xb8] sm:$0xff]
  %v42 = vld [vmem:[%s0 + $0xc0] sm:$0xff]
  %v43 = vld [vmem:[%s0 + $0xc8] sm:$0xff]
  %v44 = vld [vmem:[%s0 + $0xd0] sm:$0xff]
  %v45 = vld [vmem:[%s0 + $0xd8] sm:$0xff]
  %v46 = vld [vmem:[%s0 + $0xe0] sm:$0xff]
  %v47 = vld [vmem:[%s0 + $0xe8] sm:$0xff]
  %v48 = vld [vmem:[%s0 + $0xf0] sm:$0xff]
  %v49 = vld [vmem:[%s0 + $0xf8] sm:$0xff]
  %v50 = vld [vmem:[%s0 + $0x100] sm:$0xff]
  %v51 = vld [vmem:[%s0 + $0x108] sm:$0xff]
  %v52 = vld [vmem:[%s0 + $0x110] sm:$0xff]
  %v53 = vld [vmem:[%s0 + $0x118] sm:$0xff]
  %v54 = vld [vmem:[%s0 + $0x120] sm:$0xff]
  %v55 = vld [vmem:[%s0 + $0x128] sm:$0xff]
  %v56 = vld [vmem:[%s0 + $0x130] sm:$0xff]
  %v57 = vld [vmem:[%s0 + $0x138] sm:$0xff]
  %v58 = vld [vmem:[%s0 + $0x140] sm:$0xff]
  %v59 = vld [vmem:[%s0 + $0x148] sm:$0xff]
  %v60 = vld [vmem:[%s0 + $0x150] sm:$0xff]
  %v61 = vld [vmem:[%s0 + $0x158] sm:$0xff]
  %v62 = vld [vmem:[%s0 + $0x160] sm:$0xff]
  %v63 = vld [vmem:[%s0 + $0x168] sm:$0xff]
  %v64 = vld [vmem:[%s0 + $0x170] sm:$0xff]
  %v65 = vld [vmem:[%s0 + $0x178] sm:$0xff]
  %v66 = vld [vmem:[%s0 + $0x180] sm:$0xff]
  %v67 = vld [vmem:[%s0 + $0x188] sm:$0xff]
  %v68 = vld [vmem:[%s0 + $0x190] sm:$0xff]
  %v69 = vld [vmem:[%s0 + $0x198] sm:$0xff]
  %v70 = vld [vmem:[%s0 + $0x1a0] sm:$0xff]
  %v71 = vld [vmem:[%s0 + $0x1a8] sm:$0xff]
  %v72 = vld [vmem:[%s0 + $0x1b0] sm:$0xff]
  %v73 = vld [vmem:[%s0 + $0x1b8] sm:$0xff]
  %v74 = vld [vmem:[%s0 + $0x1c0] sm:$0xff]
  %v75 = vld [vmem:[%s0 + $0x1c8] sm:$0xff]
  %v76 = vld [vmem:[%s0 + $0x1d0] sm:$0xff]
  %v77 = vld [vmem:[%s0 + $0x1d8] sm:$0xff]
  %v78 = vld [vmem:[%s0 + $0x1e0] sm:$0xff]
  %v79 = vld [vmem:[%s0 + $0x1e8] sm:$0xff]
  %v80 = vld [vmem:[%s0 + $0x1f0] sm:$0xff]
  %v81 = vld [vmem:[%s0 + $0x1f8] sm:$0xff]
  %v82 = vpack.c.bf16 %v19, %v18
  %v83 = vpack.c.bf16 %v21, %v20
  %v84 = vpack.c.bf16 %v23, %v22
  %v85 = vpack.c.bf16 %v25, %v24
  %v86 = vpack.c.bf16 %v27, %v26
  %v87 = vpack.c.bf16 %v29, %v28
  %v88 = vpack.c.bf16 %v31, %v30
  %v89 = vpack.c.bf16 %v33, %v32
  %v90 = vpack.c.bf16 %v35, %v34
  %v91 = vpack.c.bf16 %v37, %v36
  %v92 = vpack.c.bf16 %v39, %v38
  %v93 = vpack.c.bf16 %v41, %v40
  %v94 = vpack.c.bf16 %v43, %v42
  %v95 = vpack.c.bf16 %v45, %v44
  %v96 = vpack.c.bf16 %v47, %v46
  %v97 = vpack.c.bf16 %v49, %v48
  %v98 = vpack.c.bf16 %v51, %v50
  %v99 = vpack.c.bf16 %v53, %v52
  %v100 = vpack.c.bf16 %v55, %v54
  %v101 = vpack.c.bf16 %v57, %v56
  %v102 = vpack.c.bf16 %v59, %v58
  %v103 = vpack.c.bf16 %v61, %v60
  %v104 = vpack.c.bf16 %v63, %v62
  %v105 = vpack.c.bf16 %v65, %v64
  %v106 = vpack.c.bf16 %v67, %v66
  %v107 = vpack.c.bf16 %v69, %v68
  %v108 = vpack.c.bf16 %v71, %v70
  %v109 = vpack.c.bf16 %v73, %v72
  %v110 = vpack.c.bf16 %v75, %v74
  %v111 = vpack.c.bf16 %v77, %v76
  %v112 = vpack.c.bf16 %v79, %v78
  %v113 = vpack.c.bf16 %v81, %v80
  %v114 = vld [vmem:[%s1] sm:$0xf]
  %v115 = vld [vmem:[%s1 + $0x4] sm:$0xf]
  %v116 = vld [vmem:[%s1 + $0x8] sm:$0xf]
  %v117 = vld [vmem:[%s1 + $0xc] sm:$0xf]
  %v118 = vld [vmem:[%s1 + $0x10] sm:$0xf]
  %v119 = vld [vmem:[%s1 + $0x14] sm:$0xf]
  %v120 = vld [vmem:[%s1 + $0x18] sm:$0xf]
  %v121 = vld [vmem:[%s1 + $0x1c] sm:$0xf]
  %v130 = vunpack.c.l.b16 %v114
  %v131 = vunpack.c.l.b16 %v115
  %v132 = vunpack.c.l.b16 %v116
  %v133 = vunpack.c.l.b16 %v117
  %v134 = vunpack.c.l.b16 %v118
  %v135 = vunpack.c.l.b16 %v119
  %v136 = vunpack.c.l.b16 %v120
  %v137 = vunpack.c.l.b16 %v121
  %v138 = vpack.c.b16 %v131, %v130
  %v139 = vpack.c.b16 %v133, %v132
  %v140 = vpack.c.b16 %v135, %v134
  %v141 = vpack.c.b16 %v137, %v136
  %vm146 = vcmask 523264
  %v148 = vsel %vm146, %v82, 0
  %v151 = vsel %vm146, %v83, 0
  %v154 = vsel %vm146, %v84, 0
  %v157 = vsel %vm146, %v85, 0
  %v160 = vsel %vm146, %v86, 0
  %v163 = vsel %vm146, %v87, 0
  %v166 = vsel %vm146, %v88, 0
  %v169 = vsel %vm146, %v89, 0
  %v172 = vsel %vm146, %v90, 0
  %v175 = vsel %vm146, %v91, 0
  %v178 = vsel %vm146, %v92, 0
  %v181 = vsel %vm146, %v93, 0
  %v184 = vsel %vm146, %v94, 0
  %v187 = vsel %vm146, %v95, 0
  %v190 = vsel %vm146, %v96, 0
  %v193 = vsel %vm146, %v97, 0
  %v196 = vsel %vm146, %v98, 0
  %v199 = vsel %vm146, %v99, 0
  %v202 = vsel %vm146, %v100, 0
  %v205 = vsel %vm146, %v101, 0
  %v208 = vsel %vm146, %v102, 0
  %v211 = vsel %vm146, %v103, 0
  %v214 = vsel %vm146, %v104, 0
  %v217 = vsel %vm146, %v105, 0
  %v220 = vsel %vm146, %v106, 0
  %v223 = vsel %vm146, %v107, 0
  %v226 = vsel %vm146, %v108, 0
  %v229 = vsel %vm146, %v109, 0
  %v232 = vsel %vm146, %v110, 0
  %v235 = vsel %vm146, %v111, 0
  %v238 = vsel %vm146, %v112, 0
  %v241 = vsel %vm146, %v113, 0
  %243 = vmatprep.subr.bf16.mxu0 0
  %244 = vmatpush1.bf16.msra.mxu0 %v138
  %245 = vmatprep.subr.bf16.mxu0 0
  %246 = vmatpush1.bf16.msra.mxu0 %v139
  %247 = vmatprep.subr.bf16.mxu0 0
  %248 = vmatpush1.bf16.msra.mxu0 %v140
  %249 = vmatprep.subr.bf16.mxu0 0
  %250 = vmatpush1.bf16.msra.mxu0 %v141
  %251 = vmatprep.subr.bf16.mxu0 0
  %252 = vmatpush1.bf16.msra.mxu0 0
  %253 = vmatprep.subr.bf16.mxu0 0
  %254 = vmatpush1.bf16.msra.mxu0 0
  %255 = vmatprep.subr.bf16.mxu0 0
  %256 = vmatpush1.bf16.msra.mxu0 0
  %257 = vmatprep.subr.bf16.mxu0 0
  %258 = vmatpush1.bf16.msra.mxu0 0
  %259 = vmatprep.subr.bf16.mxu0 0
  %260 = vmatpush1.bf16.msra.mxu0 0
  %261 = vmatprep.subr.bf16.mxu0 0
  %262 = vmatpush1.bf16.msra.mxu0 0
  %263 = vmatprep.subr.bf16.mxu0 0
  %264 = vmatpush1.bf16.msra.mxu0 0
  %265 = vmatprep.subr.bf16.mxu0 0
  %266 = vmatpush1.bf16.msra.mxu0 0
  %267 = vmatprep.subr.bf16.mxu0 0
  %268 = vmatpush1.bf16.msra.mxu0 0
  %269 = vmatprep.subr.bf16.mxu0 0
  %270 = vmatpush1.bf16.msra.mxu0 0
  %271 = vmatprep.subr.bf16.mxu0 0
  %272 = vmatpush1.bf16.msra.mxu0 0
  %273 = vmatprep.subr.bf16.mxu0 0
  %274 = vmatpush1.bf16.msra.mxu0 0
  %275 = vmatprep.mubr.bf16.mxu0 0
  %276 = vmatmul.mubr.bf16.gmra.mrb[0].mxu0 %v148
  %v277 = vpop.f32.mrb[0].mxu0
  %v278 = vadd.f32 0.0, %v277
  %v279 = vpop.f32.mrb[0].mxu0
  %v280 = vpop.f32.mrb[0].mxu0
  %v281 = vadd.f32 0.0, %v280
  %v282 = vpop.f32.mrb[0].mxu0
  %283 = vmatprep.mubr.bf16.mxu0 0
  %284 = vmatmul.mubr.bf16.gmra.mrb[0].mxu0 %v151
  %v285 = vpop.f32.mrb[0].mxu0
  %v286 = vadd.f32 0.0, %v285
  %v287 = vpop.f32.mrb[0].mxu0
  %v288 = vpop.f32.mrb[0].mxu0
  %v289 = vadd.f32 0.0, %v288
  %v290 = vpop.f32.mrb[0].mxu0
  %291 = vmatprep.mubr.bf16.mxu0 0
  %292 = vmatmul.mubr.bf16.gmra.mrb[0].mxu0 %v154
  %v293 = vpop.f32.mrb[0].mxu0
  %v294 = vadd.f32 0.0, %v293
  %v295 = vpop.f32.mrb[0].mxu0
  %v296 = vpop.f32.mrb[0].mxu0
  %v297 = vadd.f32 0.0, %v296
  %v298 = vpop.f32.mrb[0].mxu0
  %299 = vmatprep.mubr.bf16.mxu0 0
  %300 = vmatmul.mubr.bf16.gmra.mrb[0].mxu0 %v157
  %v301 = vpop.f32.mrb[0].mxu0
  %v302 = vadd.f32 0.0, %v301
  %v303 = vpop.f32.mrb[0].mxu0
  %v304 = vpop.f32.mrb[0].mxu0
  %v305 = vadd.f32 0.0, %v304
  %v306 = vpop.f32.mrb[0].mxu0
  %307 = vmatprep.mubr.bf16.mxu0 0
  %308 = vmatmul.mubr.bf16.gmra.mrb[0].mxu0 %v160
  %v309 = vpop.f32.mrb[0].mxu0
  %v310 = vadd.f32 0.0, %v309
  %v311 = vpop.f32.mrb[0].mxu0
  %v312 = vpop.f32.mrb[0].mxu0
  %v313 = vadd.f32 0.0, %v312
  %v314 = vpop.f32.mrb[0].mxu0
  %315 = vmatprep.mubr.bf16.mxu0 0
  %316 = vmatmul.mubr.bf16.gmra.mrb[0].mxu0 %v163
  %v317 = vpop.f32.mrb[0].mxu0
  %v318 = vadd.f32 0.0, %v317
  %v319 = vpop.f32.mrb[0].mxu0
  %v320 = vpop.f32.mrb[0].mxu0
  %v321 = vadd.f32 0.0, %v320
  %v322 = vpop.f32.mrb[0].mxu0
  %323 = vmatprep.mubr.bf16.mxu0 0
  %324 = vmatmul.mubr.bf16.gmra.mrb[0].mxu0 %v166
  %v325 = vpop.f32.mrb[0].mxu0
  %v326 = vadd.f32 0.0, %v325
  %v327 = vpop.f32.mrb[0].mxu0
  %v328 = vpop.f32.mrb[0].mxu0
  %v329 = vadd.f32 0.0, %v328
  %v330 = vpop.f32.mrb[0].mxu0
  %331 = vmatprep.mubr.bf16.mxu0 0
  %332 = vmatmul.mubr.bf16.gmra.mrb[0].mxu0 %v169
  %v333 = vpop.f32.mrb[0].mxu0
  %v334 = vadd.f32 0.0, %v333
  %v335 = vpop.f32.mrb[0].mxu0
  %v336 = vpop.f32.mrb[0].mxu0
  %v337 = vadd.f32 0.0, %v336
  %v338 = vpop.f32.mrb[0].mxu0
  %339 = vmatprep.mubr.bf16.mxu0 0
  %340 = vmatmul.mubr.bf16.gmra.mrb[0].mxu0 %v172
  %v341 = vpop.f32.mrb[0].mxu0
  %v342 = vadd.f32 0.0, %v341
  %v343 = vpop.f32.mrb[0].mxu0
  %v344 = vpop.f32.mrb[0].mxu0
  %v345 = vadd.f32 0.0, %v344
  %v346 = vpop.f32.mrb[0].mxu0
  %347 = vmatprep.mubr.bf16.mxu0 0
  %348 = vmatmul.mubr.bf16.gmra.mrb[0].mxu0 %v175
  %v349 = vpop.f32.mrb[0].mxu0
  %v350 = vadd.f32 0.0, %v349
  %v351 = vpop.f32.mrb[0].mxu0
  %v352 = vpop.f32.mrb[0].mxu0
  %v353 = vadd.f32 0.0, %v352
  %v354 = vpop.f32.mrb[0].mxu0
  %355 = vmatprep.mubr.bf16.mxu0 0
  %356 = vmatmul.mubr.bf16.gmra.mrb[0].mxu0 %v178
  %v357 = vpop.f32.mrb[0].mxu0
  %v358 = vadd.f32 0.0, %v357
  %v359 = vpop.f32.mrb[0].mxu0
  %v360 = vpop.f32.mrb[0].mxu0
  %v361 = vadd.f32 0.0, %v360
  %v362 = vpop.f32.mrb[0].mxu0
  %363 = vmatprep.mubr.bf16.mxu0 0
  %364 = vmatmul.mubr.bf16.gmra.mrb[0].mxu0 %v181
  %v365 = vpop.f32.mrb[0].mxu0
  %v366 = vadd.f32 0.0, %v365
  %v367 = vpop.f32.mrb[0].mxu0
  %v368 = vpop.f32.mrb[0].mxu0
  %v369 = vadd.f32 0.0, %v368
  %v370 = vpop.f32.mrb[0].mxu0
  %371 = vmatprep.mubr.bf16.mxu0 0
  %372 = vmatmul.mubr.bf16.gmra.mrb[0].mxu0 %v184
  %v373 = vpop.f32.mrb[0].mxu0
  %v374 = vadd.f32 0.0, %v373
  %v375 = vpop.f32.mrb[0].mxu0
  %v376 = vpop.f32.mrb[0].mxu0
  %v377 = vadd.f32 0.0, %v376
  %v378 = vpop.f32.mrb[0].mxu0
  %379 = vmatprep.mubr.bf16.mxu0 0
  %380 = vmatmul.mubr.bf16.gmra.mrb[0].mxu0 %v187
  %v381 = vpop.f32.mrb[0].mxu0
  %v382 = vadd.f32 0.0, %v381
  %v383 = vpop.f32.mrb[0].mxu0
  %v384 = vpop.f32.mrb[0].mxu0
  %v385 = vadd.f32 0.0, %v384
  %v386 = vpop.f32.mrb[0].mxu0
  %387 = vmatprep.mubr.bf16.mxu0 0
  %388 = vmatmul.mubr.bf16.gmra.mrb[0].mxu0 %v190
  %v389 = vpop.f32.mrb[0].mxu0
  %v390 = vadd.f32 0.0, %v389
  %v391 = vpop.f32.mrb[0].mxu0
  %v392 = vpop.f32.mrb[0].mxu0
  %v393 = vadd.f32 0.0, %v392
  %v394 = vpop.f32.mrb[0].mxu0
  %395 = vmatprep.mubr.bf16.mxu0 0
  %396 = vmatmul.mubr.bf16.gmra.mrb[0].mxu0 %v193
  %v397 = vpop.f32.mrb[0].mxu0
  %v398 = vadd.f32 0.0, %v397
  %v399 = vpop.f32.mrb[0].mxu0
  %v400 = vpop.f32.mrb[0].mxu0
  %v401 = vadd.f32 0.0, %v400
  %v402 = vpop.f32.mrb[0].mxu0
  %403 = vmatprep.mubr.bf16.mxu0 0
  %404 = vmatmul.mubr.bf16.gmra.mrb[0].mxu0 %v196
  %v405 = vpop.f32.mrb[0].mxu0
  %v406 = vadd.f32 0.0, %v405
  %v407 = vpop.f32.mrb[0].mxu0
  %v408 = vpop.f32.mrb[0].mxu0
  %v409 = vadd.f32 0.0, %v408
  %v410 = vpop.f32.mrb[0].mxu0
  %411 = vmatprep.mubr.bf16.mxu0 0
  %412 = vmatmul.mubr.bf16.gmra.mrb[0].mxu0 %v199
  %v413 = vpop.f32.mrb[0].mxu0
  %v414 = vadd.f32 0.0, %v413
  %v415 = vpop.f32.mrb[0].mxu0
  %v416 = vpop.f32.mrb[0].mxu0
  %v417 = vadd.f32 0.0, %v416
  %v418 = vpop.f32.mrb[0].mxu0
  %419 = vmatprep.mubr.bf16.mxu0 0
  %420 = vmatmul.mubr.bf16.gmra.mrb[0].mxu0 %v202
  %v421 = vpop.f32.mrb[0].mxu0
  %v422 = vadd.f32 0.0, %v421
  %v423 = vpop.f32.mrb[0].mxu0
  %v424 = vpop.f32.mrb[0].mxu0
  %v425 = vadd.f32 0.0, %v424
  %v426 = vpop.f32.mrb[0].mxu0
  %427 = vmatprep.mubr.bf16.mxu0 0
  %428 = vmatmul.mubr.bf16.gmra.mrb[0].mxu0 %v205
  %v429 = vpop.f32.mrb[0].mxu0
  %v430 = vadd.f32 0.0, %v429
  %v431 = vpop.f32.mrb[0].mxu0
  %v432 = vpop.f32.mrb[0].mxu0
  %v433 = vadd.f32 0.0, %v432
  %v434 = vpop.f32.mrb[0].mxu0
  %435 = vmatprep.mubr.bf16.mxu0 0
  %436 = vmatmul.mubr.bf16.gmra.mrb[0].mxu0 %v208
  %v437 = vpop.f32.mrb[0].mxu0
  %v438 = vadd.f32 0.0, %v437
  %v439 = vpop.f32.mrb[0].mxu0
  %v440 = vpop.f32.mrb[0].mxu0
  %v441 = vadd.f32 0.0, %v440
  %v442 = vpop.f32.mrb[0].mxu0
  %443 = vmatprep.mubr.bf16.mxu0 0
  %444 = vmatmul.mubr.bf16.gmra.mrb[0].mxu0 %v211
  %v445 = vpop.f32.mrb[0].mxu0
  %v446 = vadd.f32 0.0, %v445
  %v447 = vpop.f32.mrb[0].mxu0
  %v448 = vpop.f32.mrb[0].mxu0
  %v449 = vadd.f32 0.0, %v448
  %v450 = vpop.f32.mrb[0].mxu0
  %451 = vmatprep.mubr.bf16.mxu0 0
  %452 = vmatmul.mubr.bf16.gmra.mrb[0].mxu0 %v214
  %v453 = vpop.f32.mrb[0].mxu0
  %v454 = vadd.f32 0.0, %v453
  %v455 = vpop.f32.mrb[0].mxu0
  %v456 = vpop.f32.mrb[0].mxu0
  %v457 = vadd.f32 0.0, %v456
  %v458 = vpop.f32.mrb[0].mxu0
  %459 = vmatprep.mubr.bf16.mxu0 0
  %460 = vmatmul.mubr.bf16.gmra.mrb[0].mxu0 %v217
  %v461 = vpop.f32.mrb[0].mxu0
  %v462 = vadd.f32 0.0, %v461
  %v463 = vpop.f32.mrb[0].mxu0
  %v464 = vpop.f32.mrb[0].mxu0
  %v465 = vadd.f32 0.0, %v464
  %v466 = vpop.f32.mrb[0].mxu0
  %467 = vmatprep.mubr.bf16.mxu0 0
  %468 = vmatmul.mubr.bf16.gmra.mrb[0].mxu0 %v220
  %v469 = vpop.f32.mrb[0].mxu0
  %v470 = vadd.f32 0.0, %v469
  %v471 = vpop.f32.mrb[0].mxu0
  %v472 = vpop.f32.mrb[0].mxu0
  %v473 = vadd.f32 0.0, %v472
  %v474 = vpop.f32.mrb[0].mxu0
  %475 = vmatprep.mubr.bf16.mxu0 0
  %476 = vmatmul.mubr.bf16.gmra.mrb[0].mxu0 %v223
  %v477 = vpop.f32.mrb[0].mxu0
  %v478 = vadd.f32 0.0, %v477
  %v479 = vpop.f32.mrb[0].mxu0
  %v480 = vpop.f32.mrb[0].mxu0
  %v481 = vadd.f32 0.0, %v480
  %v482 = vpop.f32.mrb[0].mxu0
  %483 = vmatprep.mubr.bf16.mxu0 0
  %484 = vmatmul.mubr.bf16.gmra.mrb[0].mxu0 %v226
  %v485 = vpop.f32.mrb[0].mxu0
  %v486 = vadd.f32 0.0, %v485
  %v487 = vpop.f32.mrb[0].mxu0
  %v488 = vpop.f32.mrb[0].mxu0
  %v489 = vadd.f32 0.0, %v488
  %v490 = vpop.f32.mrb[0].mxu0
  %491 = vmatprep.mubr.bf16.mxu0 0
  %492 = vmatmul.mubr.bf16.gmra.mrb[0].mxu0 %v229
  %v493 = vpop.f32.mrb[0].mxu0
  %v494 = vadd.f32 0.0, %v493
  %v495 = vpop.f32.mrb[0].mxu0
  %v496 = vpop.f32.mrb[0].mxu0
  %v497 = vadd.f32 0.0, %v496
  %v498 = vpop.f32.mrb[0].mxu0
  %499 = vmatprep.mubr.bf16.mxu0 0
  %500 = vmatmul.mubr.bf16.gmra.mrb[0].mxu0 %v232
  %v501 = vpop.f32.mrb[0].mxu0
  %v502 = vadd.f32 0.0, %v501
  %v503 = vpop.f32.mrb[0].mxu0
  %v504 = vpop.f32.mrb[0].mxu0
  %v505 = vadd.f32 0.0, %v504
  %v506 = vpop.f32.mrb[0].mxu0
  %507 = vmatprep.mubr.bf16.mxu0 0
  %508 = vmatmul.mubr.bf16.gmra.mrb[0].mxu0 %v235
  %v509 = vpop.f32.mrb[0].mxu0
  %v510 = vadd.f32 0.0, %v509
  %v511 = vpop.f32.mrb[0].mxu0
  %v512 = vpop.f32.mrb[0].mxu0
  %v513 = vadd.f32 0.0, %v512
  %v514 = vpop.f32.mrb[0].mxu0
  %515 = vmatprep.mubr.bf16.mxu0 0
  %516 = vmatmul.mubr.bf16.gmra.mrb[0].mxu0 %v238
  %v517 = vpop.f32.mrb[0].mxu0
  %v518 = vadd.f32 0.0, %v517
  %v519 = vpop.f32.mrb[0].mxu0
  %v520 = vpop.f32.mrb[0].mxu0
  %v521 = vadd.f32 0.0, %v520
  %v522 = vpop.f32.mrb[0].mxu0
  %523 = vmatprep.mubr.bf16.mxu0 0
  %524 = vmatmul.mubr.bf16.gmra.mrb[0].mxu0 %v241
  %v525 = vpop.f32.mrb[0].mxu0
  %v526 = vadd.f32 0.0, %v525
  %v527 = vpop.f32.mrb[0].mxu0
  %v528 = vpop.f32.mrb[0].mxu0
  %v529 = vadd.f32 0.0, %v528
  %v530 = vpop.f32.mrb[0].mxu0
  %531 = vdwg.mxu0
  %v532 = vld [vmem:[%s2] sm:$0x1]
  %v534 = vlaneseq
  %v535 = vshrl.u32 %v534, 7
  %v536 = vsub.s32 0, %v535
  %v537 = vrot.slane %v532, %v536
  %v539 = vmul.f32 %v278, %v537
  %v540 = vmul.f32 %v281, %v537
  %v541 = vmul.f32 %v286, %v537
  %v542 = vmul.f32 %v289, %v537
  %v543 = vmul.f32 %v294, %v537
  %v544 = vmul.f32 %v297, %v537
  %v545 = vmul.f32 %v302, %v537
  %v546 = vmul.f32 %v305, %v537
  %v547 = vmul.f32 %v310, %v537
  %v548 = vmul.f32 %v313, %v537
  %v549 = vmul.f32 %v318, %v537
  %v550 = vmul.f32 %v321, %v537
  %v551 = vmul.f32 %v326, %v537
  %v552 = vmul.f32 %v329, %v537
  %v553 = vmul.f32 %v334, %v537
  %v554 = vmul.f32 %v337, %v537
  %v555 = vmul.f32 %v342, %v537
  %v556 = vmul.f32 %v345, %v537
  %v557 = vmul.f32 %v350, %v537
  %v558 = vmul.f32 %v353, %v537
  %v559 = vmul.f32 %v358, %v537
  %v560 = vmul.f32 %v361, %v537
  %v561 = vmul.f32 %v366, %v537
  %v562 = vmul.f32 %v369, %v537
  %v563 = vmul.f32 %v374, %v537
  %v564 = vmul.f32 %v377, %v537
  %v565 = vmul.f32 %v382, %v537
  %v566 = vmul.f32 %v385, %v537
  %v567 = vmul.f32 %v390, %v537
  %v568 = vmul.f32 %v393, %v537
  %v569 = vmul.f32 %v398, %v537
  %v570 = vmul.f32 %v401, %v537
  %v571 = vmul.f32 %v406, %v537
  %v572 = vmul.f32 %v409, %v537
  %v573 = vmul.f32 %v414, %v537
  %v574 = vmul.f32 %v417, %v537
  %v575 = vmul.f32 %v422, %v537
  %v576 = vmul.f32 %v425, %v537
  %v577 = vmul.f32 %v430, %v537
  %v578 = vmul.f32 %v433, %v537
  %v579 = vmul.f32 %v438, %v537
  %v580 = vmul.f32 %v441, %v537
  %v581 = vmul.f32 %v446, %v537
  %v582 = vmul.f32 %v449, %v537
  %v583 = vmul.f32 %v454, %v537
  %v584 = vmul.f32 %v457, %v537
  %v585 = vmul.f32 %v462, %v537
  %v586 = vmul.f32 %v465, %v537
  %v587 = vmul.f32 %v470, %v537
  %v588 = vmul.f32 %v473, %v537
  %v589 = vmul.f32 %v478, %v537
  %v590 = vmul.f32 %v481, %v537
  %v591 = vmul.f32 %v486, %v537
  %v592 = vmul.f32 %v489, %v537
  %v593 = vmul.f32 %v494, %v537
  %v594 = vmul.f32 %v497, %v537
  %v595 = vmul.f32 %v502, %v537
  %v596 = vmul.f32 %v505, %v537
  %v597 = vmul.f32 %v510, %v537
  %v598 = vmul.f32 %v513, %v537
  %v599 = vmul.f32 %v518, %v537
  %v600 = vmul.f32 %v521, %v537
  %v601 = vmul.f32 %v526, %v537
  %v602 = vmul.f32 %v529, %v537
  %v603 = vld [vmem:[%s3] sm:$0x1]
  %v605 = vlaneseq
  %v606 = vshrl.u32 %v605, 7
  %v607 = vsub.s32 0, %v606
  %v608 = vrot.slane %v603, %v607
  %v610 = vadd.f32 %v539, %v608
  %v611 = vadd.f32 %v540, %v608
  %v612 = vadd.f32 %v541, %v608
  %v613 = vadd.f32 %v542, %v608
  %v614 = vadd.f32 %v543, %v608
  %v615 = vadd.f32 %v544, %v608
  %v616 = vadd.f32 %v545, %v608
  %v617 = vadd.f32 %v546, %v608
  %v618 = vadd.f32 %v547, %v608
  %v619 = vadd.f32 %v548, %v608
  %v620 = vadd.f32 %v549, %v608
  %v621 = vadd.f32 %v550, %v608
  %v622 = vadd.f32 %v551, %v608
  %v623 = vadd.f32 %v552, %v608
  %v624 = vadd.f32 %v553, %v608
  %v625 = vadd.f32 %v554, %v608
  %v626 = vadd.f32 %v555, %v608
  %v627 = vadd.f32 %v556, %v608
  %v628 = vadd.f32 %v557, %v608
  %v629 = vadd.f32 %v558, %v608
  %v630 = vadd.f32 %v559, %v608
  %v631 = vadd.f32 %v560, %v608
  %v632 = vadd.f32 %v561, %v608
  %v633 = vadd.f32 %v562, %v608
  %v634 = vadd.f32 %v563, %v608
  %v635 = vadd.f32 %v564, %v608
  %v636 = vadd.f32 %v565, %v608
  %v637 = vadd.f32 %v566, %v608
  %v638 = vadd.f32 %v567, %v608
  %v639 = vadd.f32 %v568, %v608
  %v640 = vadd.f32 %v569, %v608
  %v641 = vadd.f32 %v570, %v608
  %v642 = vadd.f32 %v571, %v608
  %v643 = vadd.f32 %v572, %v608
  %v644 = vadd.f32 %v573, %v608
  %v645 = vadd.f32 %v574, %v608
  %v646 = vadd.f32 %v575, %v608
  %v647 = vadd.f32 %v576, %v608
  %v648 = vadd.f32 %v577, %v608
  %v649 = vadd.f32 %v578, %v608
  %v650 = vadd.f32 %v579, %v608
  %v651 = vadd.f32 %v580, %v608
  %v652 = vadd.f32 %v581, %v608
  %v653 = vadd.f32 %v582, %v608
  %v654 = vadd.f32 %v583, %v608
  %v655 = vadd.f32 %v584, %v608
  %v656 = vadd.f32 %v585, %v608
  %v657 = vadd.f32 %v586, %v608
  %v658 = vadd.f32 %v587, %v608
  %v659 = vadd.f32 %v588, %v608
  %v660 = vadd.f32 %v589, %v608
  %v661 = vadd.f32 %v590, %v608
  %v662 = vadd.f32 %v591, %v608
  %v663 = vadd.f32 %v592, %v608
  %v664 = vadd.f32 %v593, %v608
  %v665 = vadd.f32 %v594, %v608
  %v666 = vadd.f32 %v595, %v608
  %v667 = vadd.f32 %v596, %v608
  %v668 = vadd.f32 %v597, %v608
  %v669 = vadd.f32 %v598, %v608
  %v670 = vadd.f32 %v599, %v608
  %v671 = vadd.f32 %v600, %v608
  %v672 = vadd.f32 %v601, %v608
  %v673 = vadd.f32 %v602, %v608
  %v674 = vpack.c.bf16 %v611, %v610
  %v675 = vpack.c.bf16 %v613, %v612
  %v676 = vpack.c.bf16 %v615, %v614
  %v677 = vpack.c.bf16 %v617, %v616
  %v678 = vpack.c.bf16 %v619, %v618
  %v679 = vpack.c.bf16 %v621, %v620
  %v680 = vpack.c.bf16 %v623, %v622
  %v681 = vpack.c.bf16 %v625, %v624
  %v682 = vpack.c.bf16 %v627, %v626
  %v683 = vpack.c.bf16 %v629, %v628
  %v684 = vpack.c.bf16 %v631, %v630
  %v685 = vpack.c.bf16 %v633, %v632
  %v686 = vpack.c.bf16 %v635, %v634
  %v687 = vpack.c.bf16 %v637, %v636
  %v688 = vpack.c.bf16 %v639, %v638
  %v689 = vpack.c.bf16 %v641, %v640
  %v690 = vpack.c.bf16 %v643, %v642
  %v691 = vpack.c.bf16 %v645, %v644
  %v692 = vpack.c.bf16 %v647, %v646
  %v693 = vpack.c.bf16 %v649, %v648
  %v694 = vpack.c.bf16 %v651, %v650
  %v695 = vpack.c.bf16 %v653, %v652
  %v696 = vpack.c.bf16 %v655, %v654
  %v697 = vpack.c.bf16 %v657, %v656
  %v698 = vpack.c.bf16 %v659, %v658
  %v699 = vpack.c.bf16 %v661, %v660
  %v700 = vpack.c.bf16 %v663, %v662
  %v701 = vpack.c.bf16 %v665, %v664
  %v702 = vpack.c.bf16 %v667, %v666
  %v703 = vpack.c.bf16 %v669, %v668
  %v704 = vpack.c.bf16 %v671, %v670
  %v705 = vpack.c.bf16 %v673, %v672
  %v738 = vunpack.c.l.b16 %v674
  %v739 = vunpack.c.h.b16 %v674
  %v740 = vunpack.c.l.b16 %v675
  %v741 = vunpack.c.h.b16 %v675
  %v742 = vunpack.c.l.b16 %v676
  %v743 = vunpack.c.h.b16 %v676
  %v744 = vunpack.c.l.b16 %v677
  %v745 = vunpack.c.h.b16 %v677
  %v746 = vunpack.c.l.b16 %v678
  %v747 = vunpack.c.h.b16 %v678
  %v748 = vunpack.c.l.b16 %v679
  %v749 = vunpack.c.h.b16 %v679
  %v750 = vunpack.c.l.b16 %v680
  %v751 = vunpack.c.h.b16 %v680
  %v752 = vunpack.c.l.b16 %v681
  %v753 = vunpack.c.h.b16 %v681
  %v754 = vunpack.c.l.b16 %v682
  %v755 = vunpack.c.h.b16 %v682
  %v756 = vunpack.c.l.b16 %v683
  %v757 = vunpack.c.h.b16 %v683
  %v758 = vunpack.c.l.b16 %v684
  %v759 = vunpack.c.h.b16 %v684
  %v760 = vunpack.c.l.b16 %v685
  %v761 = vunpack.c.h.b16 %v685
  %v762 = vunpack.c.l.b16 %v686
  %v763 = vunpack.c.h.b16 %v686
  %v764 = vunpack.c.l.b16 %v687
  %v765 = vunpack.c.h.b16 %v687
  %v766 = vunpack.c.l.b16 %v688
  %v767 = vunpack.c.h.b16 %v688
  %v768 = vunpack.c.l.b16 %v689
  %v769 = vunpack.c.h.b16 %v689
  %v770 = vunpack.c.l.b16 %v690
  %v771 = vunpack.c.h.b16 %v690
  %v772 = vunpack.c.l.b16 %v691
  %v773 = vunpack.c.h.b16 %v691
  %v774 = vunpack.c.l.b16 %v692
  %v775 = vunpack.c.h.b16 %v692
  %v776 = vunpack.c.l.b16 %v693
  %v777 = vunpack.c.h.b16 %v693
  %v778 = vunpack.c.l.b16 %v694
  %v779 = vunpack.c.h.b16 %v694
  %v780 = vunpack.c.l.b16 %v695
  %v781 = vunpack.c.h.b16 %v695
  %v782 = vunpack.c.l.b16 %v696
  %v783 = vunpack.c.h.b16 %v696
  %v784 = vunpack.c.l.b16 %v697
  %v785 = vunpack.c.h.b16 %v697
  %v786 = vunpack.c.l.b16 %v698
  %v787 = vunpack.c.h.b16 %v698
  %v788 = vunpack.c.l.b16 %v699
  %v789 = vunpack.c.h.b16 %v699
  %v790 = vunpack.c.l.b16 %v700
  %v791 = vunpack.c.h.b16 %v700
  %v792 = vunpack.c.l.b16 %v701
  %v793 = vunpack.c.h.b16 %v701
  %v794 = vunpack.c.l.b16 %v702
  %v795 = vunpack.c.h.b16 %v702
  %v796 = vunpack.c.l.b16 %v703
  %v797 = vunpack.c.h.b16 %v703
  %v798 = vunpack.c.l.b16 %v704
  %v799 = vunpack.c.h.b16 %v704
  %v800 = vunpack.c.l.b16 %v705
  %v801 = vunpack.c.h.b16 %v705
  %v802 = vpack.c.b16 %v738, %v738
  %v803 = vpack.c.b16 %v739, %v739
  %v804 = vpack.c.b16 %v740, %v740
  %v805 = vpack.c.b16 %v741, %v741
  %v806 = vpack.c.b16 %v742, %v742
  %v807 = vpack.c.b16 %v743, %v743
  %v808 = vpack.c.b16 %v744, %v744
  %v809 = vpack.c.b16 %v745, %v745
  %v810 = vpack.c.b16 %v746, %v746
  %v811 = vpack.c.b16 %v747, %v747
  %v812 = vpack.c.b16 %v748, %v748
  %v813 = vpack.c.b16 %v749, %v749
  %v814 = vpack.c.b16 %v750, %v750
  %v815 = vpack.c.b16 %v751, %v751
  %v816 = vpack.c.b16 %v752, %v752
  %v817 = vpack.c.b16 %v753, %v753
  %v818 = vpack.c.b16 %v754, %v754
  %v819 = vpack.c.b16 %v755, %v755
  %v820 = vpack.c.b16 %v756, %v756
  %v821 = vpack.c.b16 %v757, %v757
  %v822 = vpack.c.b16 %v758, %v758
  %v823 = vpack.c.b16 %v759, %v759
  %v824 = vpack.c.b16 %v760, %v760
  %v825 = vpack.c.b16 %v761, %v761
  %v826 = vpack.c.b16 %v762, %v762
  %v827 = vpack.c.b16 %v763, %v763
  %v828 = vpack.c.b16 %v764, %v764
  %v829 = vpack.c.b16 %v765, %v765
  %v830 = vpack.c.b16 %v766, %v766
  %v831 = vpack.c.b16 %v767, %v767
  %v832 = vpack.c.b16 %v768, %v768
  %v833 = vpack.c.b16 %v769, %v769
  %v834 = vpack.c.b16 %v770, %v770
  %v835 = vpack.c.b16 %v771, %v771
  %v836 = vpack.c.b16 %v772, %v772
  %v837 = vpack.c.b16 %v773, %v773
  %v838 = vpack.c.b16 %v774, %v774
  %v839 = vpack.c.b16 %v775, %v775
  %v840 = vpack.c.b16 %v776, %v776
  %v841 = vpack.c.b16 %v777, %v777
  %v842 = vpack.c.b16 %v778, %v778
  %v843 = vpack.c.b16 %v779, %v779
  %v844 = vpack.c.b16 %v780, %v780
  %v845 = vpack.c.b16 %v781, %v781
  %v846 = vpack.c.b16 %v782, %v782
  %v847 = vpack.c.b16 %v783, %v783
  %v848 = vpack.c.b16 %v784, %v784
  %v849 = vpack.c.b16 %v785, %v785
  %v850 = vpack.c.b16 %v786, %v786
  %v851 = vpack.c.b16 %v787, %v787
  %v852 = vpack.c.b16 %v788, %v788
  %v853 = vpack.c.b16 %v789, %v789
  %v854 = vpack.c.b16 %v790, %v790
  %v855 = vpack.c.b16 %v791, %v791
  %v856 = vpack.c.b16 %v792, %v792
  %v857 = vpack.c.b16 %v793, %v793
  %v858 = vpack.c.b16 %v794, %v794
  %v859 = vpack.c.b16 %v795, %v795
  %v860 = vpack.c.b16 %v796, %v796
  %v861 = vpack.c.b16 %v797, %v797
  %v862 = vpack.c.b16 %v798, %v798
  %v863 = vpack.c.b16 %v799, %v799
  %v864 = vpack.c.b16 %v800, %v800
  %v865 = vpack.c.b16 %v801, %v801
  %930 = vst [vmem:[%s4] sm:$0xf] %v802
  %931 = vst [vmem:[%s4 + $0x4] sm:$0xf] %v803
  %932 = vst [vmem:[%s4 + $0x8] sm:$0xf] %v804
  %933 = vst [vmem:[%s4 + $0xc] sm:$0xf] %v805
  %934 = vst [vmem:[%s4 + $0x10] sm:$0xf] %v806
  %935 = vst [vmem:[%s4 + $0x14] sm:$0xf] %v807
  %936 = vst [vmem:[%s4 + $0x18] sm:$0xf] %v808
  %937 = vst [vmem:[%s4 + $0x1c] sm:$0xf] %v809
  %938 = vst [vmem:[%s4 + $0x20] sm:$0xf] %v810
  %939 = vst [vmem:[%s4 + $0x24] sm:$0xf] %v811
  %940 = vst [vmem:[%s4 + $0x28] sm:$0xf] %v812
  %941 = vst [vmem:[%s4 + $0x2c] sm:$0xf] %v813
  %942 = vst [vmem:[%s4 + $0x30] sm:$0xf] %v814
  %943 = vst [vmem:[%s4 + $0x34] sm:$0xf] %v815
  %944 = vst [vmem:[%s4 + $0x38] sm:$0xf] %v816
  %945 = vst [vmem:[%s4 + $0x3c] sm:$0xf] %v817
  %946 = vst [vmem:[%s4 + $0x40] sm:$0xf] %v818
  %947 = vst [vmem:[%s4 + $0x44] sm:$0xf] %v819
  %948 = vst [vmem:[%s4 + $0x48] sm:$0xf] %v820
  %949 = vst [vmem:[%s4 + $0x4c] sm:$0xf] %v821
  %950 = vst [vmem:[%s4 + $0x50] sm:$0xf] %v822
  %951 = vst [vmem:[%s4 + $0x54] sm:$0xf] %v823
  %952 = vst [vmem:[%s4 + $0x58] sm:$0xf] %v824
  %953 = vst [vmem:[%s4 + $0x5c] sm:$0xf] %v825
  %954 = vst [vmem:[%s4 + $0x60] sm:$0xf] %v826
  %955 = vst [vmem:[%s4 + $0x64] sm:$0xf] %v827
  %956 = vst [vmem:[%s4 + $0x68] sm:$0xf] %v828
  %957 = vst [vmem:[%s4 + $0x6c] sm:$0xf] %v829
  %958 = vst [vmem:[%s4 + $0x70] sm:$0xf] %v830
  %959 = vst [vmem:[%s4 + $0x74] sm:$0xf] %v831
  %960 = vst [vmem:[%s4 + $0x78] sm:$0xf] %v832
  %961 = vst [vmem:[%s4 + $0x7c] sm:$0xf] %v833
  %962 = vst [vmem:[%s4 + $0x80] sm:$0xf] %v834
  %963 = vst [vmem:[%s4 + $0x84] sm:$0xf] %v835
  %964 = vst [vmem:[%s4 + $0x88] sm:$0xf] %v836
  %965 = vst [vmem:[%s4 + $0x8c] sm:$0xf] %v837
  %966 = vst [vmem:[%s4 + $0x90] sm:$0xf] %v838
  %967 = vst [vmem:[%s4 + $0x94] sm:$0xf] %v839
  %968 = vst [vmem:[%s4 + $0x98] sm:$0xf] %v840
  %969 = vst [vmem:[%s4 + $0x9c] sm:$0xf] %v841
  %970 = vst [vmem:[%s4 + $0xa0] sm:$0xf] %v842
  %971 = vst [vmem:[%s4 + $0xa4] sm:$0xf] %v843
  %972 = vst [vmem:[%s4 + $0xa8] sm:$0xf] %v844
  %973 = vst [vmem:[%s4 + $0xac] sm:$0xf] %v845
  %974 = vst [vmem:[%s4 + $0xb0] sm:$0xf] %v846
  %975 = vst [vmem:[%s4 + $0xb4] sm:$0xf] %v847
  %976 = vst [vmem:[%s4 + $0xb8] sm:$0xf] %v848
  %977 = vst [vmem:[%s4 + $0xbc] sm:$0xf] %v849
  %978 = vst [vmem:[%s4 + $0xc0] sm:$0xf] %v850
  %979 = vst [vmem:[%s4 + $0xc4] sm:$0xf] %v851
  %980 = vst [vmem:[%s4 + $0xc8] sm:$0xf] %v852
  %981 = vst [vmem:[%s4 + $0xcc] sm:$0xf] %v853
  %982 = vst [vmem:[%s4 + $0xd0] sm:$0xf] %v854
  %983 = vst [vmem:[%s4 + $0xd4] sm:$0xf] %v855
  %984 = vst [vmem:[%s4 + $0xd8] sm:$0xf] %v856
  %985 = vst [vmem:[%s4 + $0xdc] sm:$0xf] %v857
  %986 = vst [vmem:[%s4 + $0xe0] sm:$0xf] %v858
  %987 = vst [vmem:[%s4 + $0xe4] sm:$0xf] %v859
  %988 = vst [vmem:[%s4 + $0xe8] sm:$0xf] %v860
  %989 = vst [vmem:[%s4 + $0xec] sm:$0xf] %v861
  %990 = vst [vmem:[%s4 + $0xf0] sm:$0xf] %v862
  %991 = vst [vmem:[%s4 + $0xf4] sm:$0xf] %v863
  %992 = vst [vmem:[%s4 + $0xf8] sm:$0xf] %v864
  %993 = vst [vmem:[%s4 + $0xfc] sm:$0xf] %v865
  // Predicated region
  $region18: #{bottleneck_forward.6} parent=0 // pred_check
    _
  $region19: #{bottleneck_forward.6} parent=0 // pred_check_branch
    %995 = sbr.rel (0) target = $region21
  $region20: #{bottleneck_forward.6} parent=0 // pred_region
    _
  $region21: #{bottleneck_forward.6} parent=0 // pred_fallthru
    _
  // Predicated region
  $region22: #{bottleneck_forward.6} parent=0 // pred_check
    _
  $region23: #{bottleneck_forward.6} parent=0 // pred_check_branch
    %997 = sbr.rel (0) target = $region25
  $region24: #{bottleneck_forward.6} parent=0 // pred_region
    _
  $region25: #{bottleneck_forward.6} parent=0 // pred_fallthru
    _

// kernel: bottleneck_forward.7
$region0: #{bottleneck_forward.7}
  #allocation0 [shape = 'u32[]', space=smem, size = 0x4, offset = 0x4, fixed_abs, tag = 'smem constant byte address 0x4 - core index']
  #allocation1 [shape = 'u32[144,128]{1,0:T(1,128)}', space=vmem, size = 0x12000, scoped, tag = 'internal scratch']
  %s0 = inlined_call_operand.vmem [shape: bf16[512,128], index: 0, kind: input, shape index: {}]
  %s1 = inlined_call_operand.vmem [shape: bf16[128,128], index: 1, kind: input, shape index: {}]
  %s2 = inlined_call_operand.vmem [shape: f32[1,128], index: 2, kind: input, shape index: {}]
  %s3 = inlined_call_operand.vmem [shape: f32[1,128], index: 3, kind: input, shape index: {}]
  %s4 = inlined_call_operand.vmem [shape: bf16[512,128], index: 4, kind: input, shape index: {}]
  %s5 = inlined_call_operand.hbm [shape: f32[512,128], index: 5, kind: output, shape index: {}]
  %s6 = sld [smem:[#allocation0]]
  $region30: #{bottleneck_forward.7} parent=0
    _
  %s8 = ssub.s32 1, %s6
  %s9 = scalar_select 0, %s8, %s6
  $region1: #{bottleneck_forward.7} parent=0
    #allocation2 [shape = 'u8[262144]{0}', space=vmem, size = 0x40000, scoped, tag = 'output window, operand 0, single buffered']
    #allocation3 [shape = 's32[1]{0}', space=sflag, size = 0x4, scoped, tag = 'scoped memory for bottleneck_forward.7']
    %10 = vsyncpa [#allocation3], 0
    // Predicated region
    $region2: #{bottleneck_forward.7} parent=1 // pred_check
      _
    $region3: #{bottleneck_forward.7} parent=1 // pred_check_branch
      %12 = sbr.rel (0) target = $region5
    $region4: #{bottleneck_forward.7} parent=1 // pred_region
      _
    $region5: #{bottleneck_forward.7} parent=1 // pred_fallthru
      _
    // Predicated region
    $region6: #{bottleneck_forward.7} parent=1 // pred_check
      _
    $region7: #{bottleneck_forward.7} parent=1 // pred_check_branch
      %14 = sbr.rel (0) target = $region9
    $region8: #{bottleneck_forward.7} parent=1 // pred_region
      _
    $region9: #{bottleneck_forward.7} parent=1 // pred_fallthru
      _
    // Predicated region
    $region10: #{bottleneck_forward.7} parent=1 // pred_check
      _
    $region11: #{bottleneck_forward.7} parent=1 // pred_check_branch
      %16 = sbr.rel (0) target = $region13
    $region12: #{bottleneck_forward.7} parent=1 // pred_region
      _
    $region13: #{bottleneck_forward.7} parent=1 // pred_fallthru
      _
    // Predicated region
    $region14: #{bottleneck_forward.7} parent=1 // pred_check
      _
    $region15: #{bottleneck_forward.7} parent=1 // pred_check_branch
      %18 = sbr.rel (0) target = $region17
    $region16: #{bottleneck_forward.7} parent=1 // pred_region
      _
    $region17: #{bottleneck_forward.7} parent=1 // pred_fallthru
      _
    // Predicated region
    $region18: #{bottleneck_forward.7} parent=1 // pred_check
      _
    $region19: #{bottleneck_forward.7} parent=1 // pred_check_branch
      %20 = sbr.rel (0) target = $region21
    $region20: #{bottleneck_forward.7} parent=1 // pred_region
      _
    $region21: #{bottleneck_forward.7} parent=1 // pred_fallthru
      _
    %v22 = vld [vmem:[%s0] sm:$0xf]
    %v23 = vld [vmem:[%s0 + $0x4] sm:$0xf]
    %v24 = vld [vmem:[%s0 + $0x8] sm:$0xf]
    %v25 = vld [vmem:[%s0 + $0xc] sm:$0xf]
    %v26 = vld [vmem:[%s0 + $0x10] sm:$0xf]
    %v27 = vld [vmem:[%s0 + $0x14] sm:$0xf]
    %v28 = vld [vmem:[%s0 + $0x18] sm:$0xf]
    %v29 = vld [vmem:[%s0 + $0x1c] sm:$0xf]
    %v30 = vld [vmem:[%s0 + $0x20] sm:$0xf]
    %v31 = vld [vmem:[%s0 + $0x24] sm:$0xf]
    %v32 = vld [vmem:[%s0 + $0x28] sm:$0xf]
    %v33 = vld [vmem:[%s0 + $0x2c] sm:$0xf]
    %v34 = vld [vmem:[%s0 + $0x30] sm:$0xf]
    %v35 = vld [vmem:[%s0 + $0x34] sm:$0xf]
    %v36 = vld [vmem:[%s0 + $0x38] sm:$0xf]
    %v37 = vld [vmem:[%s0 + $0x3c] sm:$0xf]
    %v38 = vld [vmem:[%s0 + $0x40] sm:$0xf]
    %v39 = vld [vmem:[%s0 + $0x44] sm:$0xf]
    %v40 = vld [vmem:[%s0 + $0x48] sm:$0xf]
    %v41 = vld [vmem:[%s0 + $0x4c] sm:$0xf]
    %v42 = vld [vmem:[%s0 + $0x50] sm:$0xf]
    %v43 = vld [vmem:[%s0 + $0x54] sm:$0xf]
    %v44 = vld [vmem:[%s0 + $0x58] sm:$0xf]
    %v45 = vld [vmem:[%s0 + $0x5c] sm:$0xf]
    %v46 = vld [vmem:[%s0 + $0x60] sm:$0xf]
    %v47 = vld [vmem:[%s0 + $0x64] sm:$0xf]
    %v48 = vld [vmem:[%s0 + $0x68] sm:$0xf]
    %v49 = vld [vmem:[%s0 + $0x6c] sm:$0xf]
    %v50 = vld [vmem:[%s0 + $0x70] sm:$0xf]
    %v51 = vld [vmem:[%s0 + $0x74] sm:$0xf]
    %v52 = vld [vmem:[%s0 + $0x78] sm:$0xf]
    %v53 = vld [vmem:[%s0 + $0x7c] sm:$0xf]
    %v54 = vld [vmem:[%s0 + $0x80] sm:$0xf]
    %v55 = vld [vmem:[%s0 + $0x84] sm:$0xf]
    %v56 = vld [vmem:[%s0 + $0x88] sm:$0xf]
    %v57 = vld [vmem:[%s0 + $0x8c] sm:$0xf]
    %v58 = vld [vmem:[%s0 + $0x90] sm:$0xf]
    %v59 = vld [vmem:[%s0 + $0x94] sm:$0xf]
    %v60 = vld [vmem:[%s0 + $0x98] sm:$0xf]
    %v61 = vld [vmem:[%s0 + $0x9c] sm:$0xf]
    %v62 = vld [vmem:[%s0 + $0xa0] sm:$0xf]
    %v63 = vld [vmem:[%s0 + $0xa4] sm:$0xf]
    %v64 = vld [vmem:[%s0 + $0xa8] sm:$0xf]
    %v65 = vld [vmem:[%s0 + $0xac] sm:$0xf]
    %v66 = vld [vmem:[%s0 + $0xb0] sm:$0xf]
    %v67 = vld [vmem:[%s0 + $0xb4] sm:$0xf]
    %v68 = vld [vmem:[%s0 + $0xb8] sm:$0xf]
    %v69 = vld [vmem:[%s0 + $0xbc] sm:$0xf]
    %v70 = vld [vmem:[%s0 + $0xc0] sm:$0xf]
    %v71 = vld [vmem:[%s0 + $0xc4] sm:$0xf]
    %v72 = vld [vmem:[%s0 + $0xc8] sm:$0xf]
    %v73 = vld [vmem:[%s0 + $0xcc] sm:$0xf]
    %v74 = vld [vmem:[%s0 + $0xd0] sm:$0xf]
    %v75 = vld [vmem:[%s0 + $0xd4] sm:$0xf]
    %v76 = vld [vmem:[%s0 + $0xd8] sm:$0xf]
    %v77 = vld [vmem:[%s0 + $0xdc] sm:$0xf]
    %v78 = vld [vmem:[%s0 + $0xe0] sm:$0xf]
    %v79 = vld [vmem:[%s0 + $0xe4] sm:$0xf]
    %v80 = vld [vmem:[%s0 + $0xe8] sm:$0xf]
    %v81 = vld [vmem:[%s0 + $0xec] sm:$0xf]
    %v82 = vld [vmem:[%s0 + $0xf0] sm:$0xf]
    %v83 = vld [vmem:[%s0 + $0xf4] sm:$0xf]
    %v84 = vld [vmem:[%s0 + $0xf8] sm:$0xf]
    %v85 = vld [vmem:[%s0 + $0xfc] sm:$0xf]
    %v86 = vld [vmem:[%s1] sm:$0xf]
    %v87 = vld [vmem:[%s1 + $0x4] sm:$0xf]
    %v88 = vld [vmem:[%s1 + $0x8] sm:$0xf]
    %v89 = vld [vmem:[%s1 + $0xc] sm:$0xf]
    %v90 = vld [vmem:[%s1 + $0x10] sm:$0xf]
    %v91 = vld [vmem:[%s1 + $0x14] sm:$0xf]
    %v92 = vld [vmem:[%s1 + $0x18] sm:$0xf]
    %v93 = vld [vmem:[%s1 + $0x1c] sm:$0xf]
    %v94 = vld [vmem:[%s1 + $0x20] sm:$0xf]
    %v95 = vld [vmem:[%s1 + $0x24] sm:$0xf]
    %v96 = vld [vmem:[%s1 + $0x28] sm:$0xf]
    %v97 = vld [vmem:[%s1 + $0x2c] sm:$0xf]
    %v98 = vld [vmem:[%s1 + $0x30] sm:$0xf]
    %v99 = vld [vmem:[%s1 + $0x34] sm:$0xf]
    %v100 = vld [vmem:[%s1 + $0x38] sm:$0xf]
    %v101 = vld [vmem:[%s1 + $0x3c] sm:$0xf]
    %v166 = vunpack.c.l.b16 %v22
    %v167 = vunpack.c.l.b16 %v23
    %v168 = vunpack.c.l.b16 %v24
    %v169 = vunpack.c.l.b16 %v25
    %v170 = vunpack.c.l.b16 %v26
    %v171 = vunpack.c.l.b16 %v27
    %v172 = vunpack.c.l.b16 %v28
    %v173 = vunpack.c.l.b16 %v29
    %v174 = vunpack.c.l.b16 %v30
    %v175 = vunpack.c.l.b16 %v31
    %v176 = vunpack.c.l.b16 %v32
    %v177 = vunpack.c.l.b16 %v33
    %v178 = vunpack.c.l.b16 %v34
    %v179 = vunpack.c.l.b16 %v35
    %v180 = vunpack.c.l.b16 %v36
    %v181 = vunpack.c.l.b16 %v37
    %v182 = vunpack.c.l.b16 %v38
    %v183 = vunpack.c.l.b16 %v39
    %v184 = vunpack.c.l.b16 %v40
    %v185 = vunpack.c.l.b16 %v41
    %v186 = vunpack.c.l.b16 %v42
    %v187 = vunpack.c.l.b16 %v43
    %v188 = vunpack.c.l.b16 %v44
    %v189 = vunpack.c.l.b16 %v45
    %v190 = vunpack.c.l.b16 %v46
    %v191 = vunpack.c.l.b16 %v47
    %v192 = vunpack.c.l.b16 %v48
    %v193 = vunpack.c.l.b16 %v49
    %v194 = vunpack.c.l.b16 %v50
    %v195 = vunpack.c.l.b16 %v51
    %v196 = vunpack.c.l.b16 %v52
    %v197 = vunpack.c.l.b16 %v53
    %v198 = vunpack.c.l.b16 %v54
    %v199 = vunpack.c.l.b16 %v55
    %v200 = vunpack.c.l.b16 %v56
    %v201 = vunpack.c.l.b16 %v57
    %v202 = vunpack.c.l.b16 %v58
    %v203 = vunpack.c.l.b16 %v59
    %v204 = vunpack.c.l.b16 %v60
    %v205 = vunpack.c.l.b16 %v61
    %v206 = vunpack.c.l.b16 %v62
    %v207 = vunpack.c.l.b16 %v63
    %v208 = vunpack.c.l.b16 %v64
    %v209 = vunpack.c.l.b16 %v65
    %v210 = vunpack.c.l.b16 %v66
    %v211 = vunpack.c.l.b16 %v67
    %v212 = vunpack.c.l.b16 %v68
    %v213 = vunpack.c.l.b16 %v69
    %v214 = vunpack.c.l.b16 %v70
    %v215 = vunpack.c.l.b16 %v71
    %v216 = vunpack.c.l.b16 %v72
    %v217 = vunpack.c.l.b16 %v73
    %v218 = vunpack.c.l.b16 %v74
    %v219 = vunpack.c.l.b16 %v75
    %v220 = vunpack.c.l.b16 %v76
    %v221 = vunpack.c.l.b16 %v77
    %v222 = vunpack.c.l.b16 %v78
    %v223 = vunpack.c.l.b16 %v79
    %v224 = vunpack.c.l.b16 %v80
    %v225 = vunpack.c.l.b16 %v81
    %v226 = vunpack.c.l.b16 %v82
    %v227 = vunpack.c.l.b16 %v83
    %v228 = vunpack.c.l.b16 %v84
    %v229 = vunpack.c.l.b16 %v85
    %v230 = vpack.c.b16 %v167, %v166
    %v231 = vpack.c.b16 %v169, %v168
    %v232 = vpack.c.b16 %v171, %v170
    %v233 = vpack.c.b16 %v173, %v172
    %v234 = vpack.c.b16 %v175, %v174
    %v235 = vpack.c.b16 %v177, %v176
    %v236 = vpack.c.b16 %v179, %v178
    %v237 = vpack.c.b16 %v181, %v180
    %v238 = vpack.c.b16 %v183, %v182
    %v239 = vpack.c.b16 %v185, %v184
    %v240 = vpack.c.b16 %v187, %v186
    %v241 = vpack.c.b16 %v189, %v188
    %v242 = vpack.c.b16 %v191, %v190
    %v243 = vpack.c.b16 %v193, %v192
    %v244 = vpack.c.b16 %v195, %v194
    %v245 = vpack.c.b16 %v197, %v196
    %v246 = vpack.c.b16 %v199, %v198
    %v247 = vpack.c.b16 %v201, %v200
    %v248 = vpack.c.b16 %v203, %v202
    %v249 = vpack.c.b16 %v205, %v204
    %v250 = vpack.c.b16 %v207, %v206
    %v251 = vpack.c.b16 %v209, %v208
    %v252 = vpack.c.b16 %v211, %v210
    %v253 = vpack.c.b16 %v213, %v212
    %v254 = vpack.c.b16 %v215, %v214
    %v255 = vpack.c.b16 %v217, %v216
    %v256 = vpack.c.b16 %v219, %v218
    %v257 = vpack.c.b16 %v221, %v220
    %v258 = vpack.c.b16 %v223, %v222
    %v259 = vpack.c.b16 %v225, %v224
    %v260 = vpack.c.b16 %v227, %v226
    %v261 = vpack.c.b16 %v229, %v228
    %v310 = vunpack.c.l.b16 %v86
    %v311 = vunpack.c.l.b16 %v87
    %v312 = vunpack.c.l.b16 %v88
    %v313 = vunpack.c.l.b16 %v89
    %v314 = vunpack.c.l.b16 %v90
    %v315 = vunpack.c.l.b16 %v91
    %v316 = vunpack.c.l.b16 %v92
    %v317 = vunpack.c.l.b16 %v93
    %v318 = vunpack.c.l.b16 %v94
    %v319 = vunpack.c.l.b16 %v95
    %v320 = vunpack.c.l.b16 %v96
    %v321 = vunpack.c.l.b16 %v97
    %v322 = vunpack.c.l.b16 %v98
    %v323 = vunpack.c.l.b16 %v99
    %v324 = vunpack.c.l.b16 %v100
    %v325 = vunpack.c.l.b16 %v101
    %v326 = vpack.c.b16 %v311, %v310
    %v327 = vpack.c.b16 %v313, %v312
    %v328 = vpack.c.b16 %v315, %v314
    %v329 = vpack.c.b16 %v317, %v316
    %v330 = vpack.c.b16 %v319, %v318
    %v331 = vpack.c.b16 %v321, %v320
    %v332 = vpack.c.b16 %v323, %v322
    %v333 = vpack.c.b16 %v325, %v324
    %342 = vmatprep.subr.bf16.mxu0 0
    %343 = vmatpush1.bf16.msra.mxu0 %v326
    %344 = vmatprep.subr.bf16.mxu0 0
    %345 = vmatpush1.bf16.msra.mxu0 %v327
    %346 = vmatprep.subr.bf16.mxu0 0
    %347 = vmatpush1.bf16.msra.mxu0 %v328
    %348 = vmatprep.subr.bf16.mxu0 0
    %349 = vmatpush1.bf16.msra.mxu0 %v329
    %350 = vmatprep.subr.bf16.mxu0 0
    %351 = vmatpush1.bf16.msra.mxu0 %v330
    %352 = vmatprep.subr.bf16.mxu0 0
    %353 = vmatpush1.bf16.msra.mxu0 %v331
    %354 = vmatprep.subr.bf16.mxu0 0
    %355 = vmatpush1.bf16.msra.mxu0 %v332
    %356 = vmatprep.subr.bf16.mxu0 0
    %357 = vmatpush1.bf16.msra.mxu0 %v333
    %358 = vmatprep.subr.bf16.mxu0 0
    %359 = vmatpush1.bf16.msra.mxu0 0
    %360 = vmatprep.subr.bf16.mxu0 0
    %361 = vmatpush1.bf16.msra.mxu0 0
    %362 = vmatprep.subr.bf16.mxu0 0
    %363 = vmatpush1.bf16.msra.mxu0 0
    %364 = vmatprep.subr.bf16.mxu0 0
    %365 = vmatpush1.bf16.msra.mxu0 0
    %366 = vmatprep.subr.bf16.mxu0 0
    %367 = vmatpush1.bf16.msra.mxu0 0
    %368 = vmatprep.subr.bf16.mxu0 0
    %369 = vmatpush1.bf16.msra.mxu0 0
    %370 = vmatprep.subr.bf16.mxu0 0
    %371 = vmatpush1.bf16.msra.mxu0 0
    %372 = vmatprep.subr.bf16.mxu0 0
    %373 = vmatpush1.bf16.msra.mxu0 0
    %374 = vmatprep.mubr.bf16.mxu0 0
    %375 = vmatmul.mubr.bf16.gmra.mrb[0].mxu0 %v230
    %v376 = vpop.f32.mrb[0].mxu0
    %v377 = vadd.f32 0.0, %v376
    %v378 = vpop.f32.mrb[0].mxu0
    %v379 = vpop.f32.mrb[0].mxu0
    %v380 = vadd.f32 0.0, %v379
    %v381 = vpop.f32.mrb[0].mxu0
    %382 = vmatprep.mubr.bf16.mxu0 0
    %383 = vmatmul.mubr.bf16.gmra.mrb[0].mxu0 %v231
    %v384 = vpop.f32.mrb[0].mxu0
    %v385 = vadd.f32 0.0, %v384
    %v386 = vpop.f32.mrb[0].mxu0
    %v387 = vpop.f32.mrb[0].mxu0
    %v388 = vadd.f32 0.0, %v387
    %v389 = vpop.f32.mrb[0].mxu0
    %390 = vmatprep.mubr.bf16.mxu0 0
    %391 = vmatmul.mubr.bf16.gmra.mrb[0].mxu0 %v232
    %v392 = vpop.f32.mrb[0].mxu0
    %v393 = vadd.f32 0.0, %v392
    %v394 = vpop.f32.mrb[0].mxu0
    %v395 = vpop.f32.mrb[0].mxu0
    %v396 = vadd.f32 0.0, %v395
    %v397 = vpop.f32.mrb[0].mxu0
    %398 = vmatprep.mubr.bf16.mxu0 0
    %399 = vmatmul.mubr.bf16.gmra.mrb[0].mxu0 %v233
    %v400 = vpop.f32.mrb[0].mxu0
    %v401 = vadd.f32 0.0, %v400
    %v402 = vpop.f32.mrb[0].mxu0
    %v403 = vpop.f32.mrb[0].mxu0
    %v404 = vadd.f32 0.0, %v403
    %v405 = vpop.f32.mrb[0].mxu0
    %406 = vmatprep.mubr.bf16.mxu0 0
    %407 = vmatmul.mubr.bf16.gmra.mrb[0].mxu0 %v234
    %v408 = vpop.f32.mrb[0].mxu0
    %v409 = vadd.f32 0.0, %v408
    %v410 = vpop.f32.mrb[0].mxu0
    %v411 = vpop.f32.mrb[0].mxu0
    %v412 = vadd.f32 0.0, %v411
    %v413 = vpop.f32.mrb[0].mxu0
    %414 = vmatprep.mubr.bf16.mxu0 0
    %415 = vmatmul.mubr.bf16.gmra.mrb[0].mxu0 %v235
    %v416 = vpop.f32.mrb[0].mxu0
    %v417 = vadd.f32 0.0, %v416
    %v418 = vpop.f32.mrb[0].mxu0
    %v419 = vpop.f32.mrb[0].mxu0
    %v420 = vadd.f32 0.0, %v419
    %v421 = vpop.f32.mrb[0].mxu0
    %422 = vmatprep.mubr.bf16.mxu0 0
    %423 = vmatmul.mubr.bf16.gmra.mrb[0].mxu0 %v236
    %v424 = vpop.f32.mrb[0].mxu0
    %v425 = vadd.f32 0.0, %v424
    %v426 = vpop.f32.mrb[0].mxu0
    %v427 = vpop.f32.mrb[0].mxu0
    %v428 = vadd.f32 0.0, %v427
    %v429 = vpop.f32.mrb[0].mxu0
    %430 = vmatprep.mubr.bf16.mxu0 0
    %431 = vmatmul.mubr.bf16.gmra.mrb[0].mxu0 %v237
    %v432 = vpop.f32.mrb[0].mxu0
    %v433 = vadd.f32 0.0, %v432
    %v434 = vpop.f32.mrb[0].mxu0
    %v435 = vpop.f32.mrb[0].mxu0
    %v436 = vadd.f32 0.0, %v435
    %v437 = vpop.f32.mrb[0].mxu0
    %438 = vmatprep.mubr.bf16.mxu0 0
    %439 = vmatmul.mubr.bf16.gmra.mrb[0].mxu0 %v238
    %v440 = vpop.f32.mrb[0].mxu0
    %v441 = vadd.f32 0.0, %v440
    %v442 = vpop.f32.mrb[0].mxu0
    %v443 = vpop.f32.mrb[0].mxu0
    %v444 = vadd.f32 0.0, %v443
    %v445 = vpop.f32.mrb[0].mxu0
    %446 = vmatprep.mubr.bf16.mxu0 0
    %447 = vmatmul.mubr.bf16.gmra.mrb[0].mxu0 %v239
    %v448 = vpop.f32.mrb[0].mxu0
    %v449 = vadd.f32 0.0, %v448
    %v450 = vpop.f32.mrb[0].mxu0
    %v451 = vpop.f32.mrb[0].mxu0
    %v452 = vadd.f32 0.0, %v451
    %v453 = vpop.f32.mrb[0].mxu0
    %454 = vmatprep.mubr.bf16.mxu0 0
    %455 = vmatmul.mubr.bf16.gmra.mrb[0].mxu0 %v240
    %v456 = vpop.f32.mrb[0].mxu0
    %v457 = vadd.f32 0.0, %v456
    %v458 = vpop.f32.mrb[0].mxu0
    %v459 = vpop.f32.mrb[0].mxu0
    %v460 = vadd.f32 0.0, %v459
    %v461 = vpop.f32.mrb[0].mxu0
    %462 = vmatprep.mubr.bf16.mxu0 0
    %463 = vmatmul.mubr.bf16.gmra.mrb[0].mxu0 %v241
    %v464 = vpop.f32.mrb[0].mxu0
    %v465 = vadd.f32 0.0, %v464
    %v466 = vpop.f32.mrb[0].mxu0
    %v467 = vpop.f32.mrb[0].mxu0
    %v468 = vadd.f32 0.0, %v467
    %v469 = vpop.f32.mrb[0].mxu0
    %470 = vmatprep.mubr.bf16.mxu0 0
    %471 = vmatmul.mubr.bf16.gmra.mrb[0].mxu0 %v242
    %v472 = vpop.f32.mrb[0].mxu0
    %v473 = vadd.f32 0.0, %v472
    %v474 = vpop.f32.mrb[0].mxu0
    %v475 = vpop.f32.mrb[0].mxu0
    %v476 = vadd.f32 0.0, %v475
    %v477 = vpop.f32.mrb[0].mxu0
    %478 = vmatprep.mubr.bf16.mxu0 0
    %479 = vmatmul.mubr.bf16.gmra.mrb[0].mxu0 %v243
    %v480 = vpop.f32.mrb[0].mxu0
    %v481 = vadd.f32 0.0, %v480
    %v482 = vpop.f32.mrb[0].mxu0
    %v483 = vpop.f32.mrb[0].mxu0
    %v484 = vadd.f32 0.0, %v483
    %v485 = vpop.f32.mrb[0].mxu0
    %486 = vmatprep.mubr.bf16.mxu0 0
    %487 = vmatmul.mubr.bf16.gmra.mrb[0].mxu0 %v244
    %v488 = vpop.f32.mrb[0].mxu0
    %v489 = vadd.f32 0.0, %v488
    %v490 = vpop.f32.mrb[0].mxu0
    %v491 = vpop.f32.mrb[0].mxu0
    %v492 = vadd.f32 0.0, %v491
    %v493 = vpop.f32.mrb[0].mxu0
    %494 = vmatprep.mubr.bf16.mxu0 0
    %495 = vmatmul.mubr.bf16.gmra.mrb[0].mxu0 %v245
    %v496 = vpop.f32.mrb[0].mxu0
    %v497 = vadd.f32 0.0, %v496
    %v498 = vpop.f32.mrb[0].mxu0
    %v499 = vpop.f32.mrb[0].mxu0
    %v500 = vadd.f32 0.0, %v499
    %v501 = vpop.f32.mrb[0].mxu0
    %502 = vmatprep.mubr.bf16.mxu0 0
    %503 = vmatmul.mubr.bf16.gmra.mrb[0].mxu0 %v246
    %v504 = vpop.f32.mrb[0].mxu0
    %v505 = vadd.f32 0.0, %v504
    %v506 = vpop.f32.mrb[0].mxu0
    %v507 = vpop.f32.mrb[0].mxu0
    %v508 = vadd.f32 0.0, %v507
    %v509 = vpop.f32.mrb[0].mxu0
    %510 = vmatprep.mubr.bf16.mxu0 0
    %511 = vmatmul.mubr.bf16.gmra.mrb[0].mxu0 %v247
    %v512 = vpop.f32.mrb[0].mxu0
    %v513 = vadd.f32 0.0, %v512
    %v514 = vpop.f32.mrb[0].mxu0
    %v515 = vpop.f32.mrb[0].mxu0
    %v516 = vadd.f32 0.0, %v515
    %v517 = vpop.f32.mrb[0].mxu0
    %518 = vmatprep.mubr.bf16.mxu0 0
    %519 = vmatmul.mubr.bf16.gmra.mrb[0].mxu0 %v248
    %v520 = vpop.f32.mrb[0].mxu0
    %v521 = vadd.f32 0.0, %v520
    %v522 = vpop.f32.mrb[0].mxu0
    %v523 = vpop.f32.mrb[0].mxu0
    %v524 = vadd.f32 0.0, %v523
    %v525 = vpop.f32.mrb[0].mxu0
    %526 = vmatprep.mubr.bf16.mxu0 0
    %527 = vmatmul.mubr.bf16.gmra.mrb[0].mxu0 %v249
    %v528 = vpop.f32.mrb[0].mxu0
    %v529 = vadd.f32 0.0, %v528
    %v530 = vpop.f32.mrb[0].mxu0
    %v531 = vpop.f32.mrb[0].mxu0
    %v532 = vadd.f32 0.0, %v531
    %v533 = vpop.f32.mrb[0].mxu0
    %534 = vmatprep.mubr.bf16.mxu0 0
    %535 = vmatmul.mubr.bf16.gmra.mrb[0].mxu0 %v250
    %v536 = vpop.f32.mrb[0].mxu0
    %v537 = vadd.f32 0.0, %v536
    %v538 = vpop.f32.mrb[0].mxu0
    %v539 = vpop.f32.mrb[0].mxu0
    %v540 = vadd.f32 0.0, %v539
    %v541 = vpop.f32.mrb[0].mxu0
    %542 = vmatprep.mubr.bf16.mxu0 0
    %543 = vmatmul.mubr.bf16.gmra.mrb[0].mxu0 %v251
    %v544 = vpop.f32.mrb[0].mxu0
    %v545 = vadd.f32 0.0, %v544
    %v546 = vpop.f32.mrb[0].mxu0
    %v547 = vpop.f32.mrb[0].mxu0
    %v548 = vadd.f32 0.0, %v547
    %v549 = vpop.f32.mrb[0].mxu0
    %550 = vmatprep.mubr.bf16.mxu0 0
    %551 = vmatmul.mubr.bf16.gmra.mrb[0].mxu0 %v252
    %v552 = vpop.f32.mrb[0].mxu0
    %v553 = vadd.f32 0.0, %v552
    %v554 = vpop.f32.mrb[0].mxu0
    %v555 = vpop.f32.mrb[0].mxu0
    %v556 = vadd.f32 0.0, %v555
    %v557 = vpop.f32.mrb[0].mxu0
    %558 = vmatprep.mubr.bf16.mxu0 0
    %559 = vmatmul.mubr.bf16.gmra.mrb[0].mxu0 %v253
    %v560 = vpop.f32.mrb[0].mxu0
    %v561 = vadd.f32 0.0, %v560
    %v562 = vpop.f32.mrb[0].mxu0
    %v563 = vpop.f32.mrb[0].mxu0
    %v564 = vadd.f32 0.0, %v563
    %v565 = vpop.f32.mrb[0].mxu0
    %566 = vmatprep.mubr.bf16.mxu0 0
    %567 = vmatmul.mubr.bf16.gmra.mrb[0].mxu0 %v254
    %v568 = vpop.f32.mrb[0].mxu0
    %v569 = vadd.f32 0.0, %v568
    %v570 = vpop.f32.mrb[0].mxu0
    %v571 = vpop.f32.mrb[0].mxu0
    %v572 = vadd.f32 0.0, %v571
    %v573 = vpop.f32.mrb[0].mxu0
    %574 = vmatprep.mubr.bf16.mxu0 0
    %575 = vmatmul.mubr.bf16.gmra.mrb[0].mxu0 %v255
    %v576 = vpop.f32.mrb[0].mxu0
    %v577 = vadd.f32 0.0, %v576
    %v578 = vpop.f32.mrb[0].mxu0
    %v579 = vpop.f32.mrb[0].mxu0
    %v580 = vadd.f32 0.0, %v579
    %v581 = vpop.f32.mrb[0].mxu0
    %582 = vmatprep.mubr.bf16.mxu0 0
    %583 = vmatmul.mubr.bf16.gmra.mrb[0].mxu0 %v256
    %v584 = vpop.f32.mrb[0].mxu0
    %v585 = vadd.f32 0.0, %v584
    %v586 = vpop.f32.mrb[0].mxu0
    %v587 = vpop.f32.mrb[0].mxu0
    %v588 = vadd.f32 0.0, %v587
    %v589 = vpop.f32.mrb[0].mxu0
    %590 = vmatprep.mubr.bf16.mxu0 0
    %591 = vmatmul.mubr.bf16.gmra.mrb[0].mxu0 %v257
    %v592 = vpop.f32.mrb[0].mxu0
    %v593 = vadd.f32 0.0, %v592
    %v594 = vpop.f32.mrb[0].mxu0
    %v595 = vpop.f32.mrb[0].mxu0
    %v596 = vadd.f32 0.0, %v595
    %v597 = vpop.f32.mrb[0].mxu0
    %598 = vmatprep.mubr.bf16.mxu0 0
    %599 = vmatmul.mubr.bf16.gmra.mrb[0].mxu0 %v258
    %v600 = vpop.f32.mrb[0].mxu0
    %v601 = vadd.f32 0.0, %v600
    %v602 = vpop.f32.mrb[0].mxu0
    %v603 = vpop.f32.mrb[0].mxu0
    %v604 = vadd.f32 0.0, %v603
    %v605 = vpop.f32.mrb[0].mxu0
    %606 = vmatprep.mubr.bf16.mxu0 0
    %607 = vmatmul.mubr.bf16.gmra.mrb[0].mxu0 %v259
    %v608 = vpop.f32.mrb[0].mxu0
    %v609 = vadd.f32 0.0, %v608
    %v610 = vpop.f32.mrb[0].mxu0
    %v611 = vpop.f32.mrb[0].mxu0
    %v612 = vadd.f32 0.0, %v611
    %v613 = vpop.f32.mrb[0].mxu0
    %614 = vmatprep.mubr.bf16.mxu0 0
    %615 = vmatmul.mubr.bf16.gmra.mrb[0].mxu0 %v260
    %v616 = vpop.f32.mrb[0].mxu0
    %v617 = vadd.f32 0.0, %v616
    %v618 = vpop.f32.mrb[0].mxu0
    %v619 = vpop.f32.mrb[0].mxu0
    %v620 = vadd.f32 0.0, %v619
    %v621 = vpop.f32.mrb[0].mxu0
    %622 = vmatprep.mubr.bf16.mxu0 0
    %623 = vmatmul.mubr.bf16.gmra.mrb[0].mxu0 %v261
    %v624 = vpop.f32.mrb[0].mxu0
    %v625 = vadd.f32 0.0, %v624
    %v626 = vpop.f32.mrb[0].mxu0
    %v627 = vpop.f32.mrb[0].mxu0
    %v628 = vadd.f32 0.0, %v627
    %v629 = vpop.f32.mrb[0].mxu0
    %630 = vdwg.mxu0
    %v631 = vld [vmem:[%s2] sm:$0x1]
    %v633 = vlaneseq
    %v634 = vshrl.u32 %v633, 7
    %v635 = vsub.s32 0, %v634
    %v636 = vrot.slane %v631, %v635
    %v638 = vmul.f32 %v377, %v636
    %v639 = vmul.f32 %v380, %v636
    %v640 = vmul.f32 %v385, %v636
    %v641 = vmul.f32 %v388, %v636
    %v642 = vmul.f32 %v393, %v636
    %v643 = vmul.f32 %v396, %v636
    %v644 = vmul.f32 %v401, %v636
    %v645 = vmul.f32 %v404, %v636
    %v646 = vmul.f32 %v409, %v636
    %v647 = vmul.f32 %v412, %v636
    %v648 = vmul.f32 %v417, %v636
    %v649 = vmul.f32 %v420, %v636
    %v650 = vmul.f32 %v425, %v636
    %v651 = vmul.f32 %v428, %v636
    %v652 = vmul.f32 %v433, %v636
    %v653 = vmul.f32 %v436, %v636
    %v654 = vmul.f32 %v441, %v636
    %v655 = vmul.f32 %v444, %v636
    %v656 = vmul.f32 %v449, %v636
    %v657 = vmul.f32 %v452, %v636
    %v658 = vmul.f32 %v457, %v636
    %v659 = vmul.f32 %v460, %v636
    %v660 = vmul.f32 %v465, %v636
    %v661 = vmul.f32 %v468, %v636
    %v662 = vmul.f32 %v473, %v636
    %v663 = vmul.f32 %v476, %v636
    %v664 = vmul.f32 %v481, %v636
    %v665 = vmul.f32 %v484, %v636
    %v666 = vmul.f32 %v489, %v636
    %v667 = vmul.f32 %v492, %v636
    %v668 = vmul.f32 %v497, %v636
    %v669 = vmul.f32 %v500, %v636
    %v670 = vmul.f32 %v505, %v636
    %v671 = vmul.f32 %v508, %v636
    %v672 = vmul.f32 %v513, %v636
    %v673 = vmul.f32 %v516, %v636
    %v674 = vmul.f32 %v521, %v636
    %v675 = vmul.f32 %v524, %v636
    %v676 = vmul.f32 %v529, %v636
    %v677 = vmul.f32 %v532, %v636
    %v678 = vmul.f32 %v537, %v636
    %v679 = vmul.f32 %v540, %v636
    %v680 = vmul.f32 %v545, %v636
    %v681 = vmul.f32 %v548, %v636
    %v682 = vmul.f32 %v553, %v636
    %v683 = vmul.f32 %v556, %v636
    %v684 = vmul.f32 %v561, %v636
    %v685 = vmul.f32 %v564, %v636
    %v686 = vmul.f32 %v569, %v636
    %v687 = vmul.f32 %v572, %v636
    %v688 = vmul.f32 %v577, %v636
    %v689 = vmul.f32 %v580, %v636
    %v690 = vmul.f32 %v585, %v636
    %v691 = vmul.f32 %v588, %v636
    %v692 = vmul.f32 %v593, %v636
    %v693 = vmul.f32 %v596, %v636
    %v694 = vmul.f32 %v601, %v636
    %v695 = vmul.f32 %v604, %v636
    %v696 = vmul.f32 %v609, %v636
    %v697 = vmul.f32 %v612, %v636
    %v698 = vmul.f32 %v617, %v636
    %v699 = vmul.f32 %v620, %v636
    %v700 = vmul.f32 %v625, %v636
    %v701 = vmul.f32 %v628, %v636
    %v702 = vld [vmem:[%s3] sm:$0x1]
    %v704 = vlaneseq
    %v705 = vshrl.u32 %v704, 7
    %v706 = vsub.s32 0, %v705
    %v707 = vrot.slane %v702, %v706
    %v709 = vadd.f32 %v638, %v707
    %v710 = vadd.f32 %v639, %v707
    %v711 = vadd.f32 %v640, %v707
    %v712 = vadd.f32 %v641, %v707
    %v713 = vadd.f32 %v642, %v707
    %v714 = vadd.f32 %v643, %v707
    %v715 = vadd.f32 %v644, %v707
    %v716 = vadd.f32 %v645, %v707
    %v717 = vadd.f32 %v646, %v707
    %v718 = vadd.f32 %v647, %v707
    %v719 = vadd.f32 %v648, %v707
    %v720 = vadd.f32 %v649, %v707
    %v721 = vadd.f32 %v650, %v707
    %v722 = vadd.f32 %v651, %v707
    %v723 = vadd.f32 %v652, %v707
    %v724 = vadd.f32 %v653, %v707
    %v725 = vadd.f32 %v654, %v707
    %v726 = vadd.f32 %v655, %v707
    %v727 = vadd.f32 %v656, %v707
    %v728 = vadd.f32 %v657, %v707
    %v729 = vadd.f32 %v658, %v707
    %v730 = vadd.f32 %v659, %v707
    %v731 = vadd.f32 %v660, %v707
    %v732 = vadd.f32 %v661, %v707
    %v733 = vadd.f32 %v662, %v707
    %v734 = vadd.f32 %v663, %v707
    %v735 = vadd.f32 %v664, %v707
    %v736 = vadd.f32 %v665, %v707
    %v737 = vadd.f32 %v666, %v707
    %v738 = vadd.f32 %v667, %v707
    %v739 = vadd.f32 %v668, %v707
    %v740 = vadd.f32 %v669, %v707
    %v741 = vadd.f32 %v670, %v707
    %v742 = vadd.f32 %v671, %v707
    %v743 = vadd.f32 %v672, %v707
    %v744 = vadd.f32 %v673, %v707
    %v745 = vadd.f32 %v674, %v707
    %v746 = vadd.f32 %v675, %v707
    %v747 = vadd.f32 %v676, %v707
    %v748 = vadd.f32 %v677, %v707
    %v749 = vadd.f32 %v678, %v707
    %v750 = vadd.f32 %v679, %v707
    %v751 = vadd.f32 %v680, %v707
    %v752 = vadd.f32 %v681, %v707
    %v753 = vadd.f32 %v682, %v707
    %v754 = vadd.f32 %v683, %v707
    %v755 = vadd.f32 %v684, %v707
    %v756 = vadd.f32 %v685, %v707
    %v757 = vadd.f32 %v686, %v707
    %v758 = vadd.f32 %v687, %v707
    %v759 = vadd.f32 %v688, %v707
    %v760 = vadd.f32 %v689, %v707
    %v761 = vadd.f32 %v690, %v707
    %v762 = vadd.f32 %v691, %v707
    %v763 = vadd.f32 %v692, %v707
    %v764 = vadd.f32 %v693, %v707
    %v765 = vadd.f32 %v694, %v707
    %v766 = vadd.f32 %v695, %v707
    %v767 = vadd.f32 %v696, %v707
    %v768 = vadd.f32 %v697, %v707
    %v769 = vadd.f32 %v698, %v707
    %v770 = vadd.f32 %v699, %v707
    %v771 = vadd.f32 %v700, %v707
    %v772 = vadd.f32 %v701, %v707
    %v773 = vld [vmem:[%s4] sm:$0xf]
    %v774 = vld [vmem:[%s4 + $0x4] sm:$0xf]
    %v775 = vld [vmem:[%s4 + $0x8] sm:$0xf]
    %v776 = vld [vmem:[%s4 + $0xc] sm:$0xf]
    %v777 = vld [vmem:[%s4 + $0x10] sm:$0xf]
    %v778 = vld [vmem:[%s4 + $0x14] sm:$0xf]
    %v779 = vld [vmem:[%s4 + $0x18] sm:$0xf]
    %v780 = vld [vmem:[%s4 + $0x1c] sm:$0xf]
    %v781 = vld [vmem:[%s4 + $0x20] sm:$0xf]
    %v782 = vld [vmem:[%s4 + $0x24] sm:$0xf]
    %v783 = vld [vmem:[%s4 + $0x28] sm:$0xf]
    %v784 = vld [vmem:[%s4 + $0x2c] sm:$0xf]
    %v785 = vld [vmem:[%s4 + $0x30] sm:$0xf]
    %v786 = vld [vmem:[%s4 + $0x34] sm:$0xf]
    %v787 = vld [vmem:[%s4 + $0x38] sm:$0xf]
    %v788 = vld [vmem:[%s4 + $0x3c] sm:$0xf]
    %v789 = vld [vmem:[%s4 + $0x40] sm:$0xf]
    %v790 = vld [vmem:[%s4 + $0x44] sm:$0xf]
    %v791 = vld [vmem:[%s4 + $0x48] sm:$0xf]
    %v792 = vld [vmem:[%s4 + $0x4c] sm:$0xf]
    %v793 = vld [vmem:[%s4 + $0x50] sm:$0xf]
    %v794 = vld [vmem:[%s4 + $0x54] sm:$0xf]
    %v795 = vld [vmem:[%s4 + $0x58] sm:$0xf]
    %v796 = vld [vmem:[%s4 + $0x5c] sm:$0xf]
    %v797 = vld [vmem:[%s4 + $0x60] sm:$0xf]
    %v798 = vld [vmem:[%s4 + $0x64] sm:$0xf]
    %v799 = vld [vmem:[%s4 + $0x68] sm:$0xf]
    %v800 = vld [vmem:[%s4 + $0x6c] sm:$0xf]
    %v801 = vld [vmem:[%s4 + $0x70] sm:$0xf]
    %v802 = vld [vmem:[%s4 + $0x74] sm:$0xf]
    %v803 = vld [vmem:[%s4 + $0x78] sm:$0xf]
    %v804 = vld [vmem:[%s4 + $0x7c] sm:$0xf]
    %v805 = vld [vmem:[%s4 + $0x80] sm:$0xf]
    %v806 = vld [vmem:[%s4 + $0x84] sm:$0xf]
    %v807 = vld [vmem:[%s4 + $0x88] sm:$0xf]
    %v808 = vld [vmem:[%s4 + $0x8c] sm:$0xf]
    %v809 = vld [vmem:[%s4 + $0x90] sm:$0xf]
    %v810 = vld [vmem:[%s4 + $0x94] sm:$0xf]
    %v811 = vld [vmem:[%s4 + $0x98] sm:$0xf]
    %v812 = vld [vmem:[%s4 + $0x9c] sm:$0xf]
    %v813 = vld [vmem:[%s4 + $0xa0] sm:$0xf]
    %v814 = vld [vmem:[%s4 + $0xa4] sm:$0xf]
    %v815 = vld [vmem:[%s4 + $0xa8] sm:$0xf]
    %v816 = vld [vmem:[%s4 + $0xac] sm:$0xf]
    %v817 = vld [vmem:[%s4 + $0xb0] sm:$0xf]
    %v818 = vld [vmem:[%s4 + $0xb4] sm:$0xf]
    %v819 = vld [vmem:[%s4 + $0xb8] sm:$0xf]
    %v820 = vld [vmem:[%s4 + $0xbc] sm:$0xf]
    %v821 = vld [vmem:[%s4 + $0xc0] sm:$0xf]
    %v822 = vld [vmem:[%s4 + $0xc4] sm:$0xf]
    %v823 = vld [vmem:[%s4 + $0xc8] sm:$0xf]
    %v824 = vld [vmem:[%s4 + $0xcc] sm:$0xf]
    %v825 = vld [vmem:[%s4 + $0xd0] sm:$0xf]
    %v826 = vld [vmem:[%s4 + $0xd4] sm:$0xf]
    %v827 = vld [vmem:[%s4 + $0xd8] sm:$0xf]
    %v828 = vld [vmem:[%s4 + $0xdc] sm:$0xf]
    %v829 = vld [vmem:[%s4 + $0xe0] sm:$0xf]
    %v830 = vld [vmem:[%s4 + $0xe4] sm:$0xf]
    %v831 = vld [vmem:[%s4 + $0xe8] sm:$0xf]
    %v832 = vld [vmem:[%s4 + $0xec] sm:$0xf]
    %v833 = vld [vmem:[%s4 + $0xf0] sm:$0xf]
    %v834 = vld [vmem:[%s4 + $0xf4] sm:$0xf]
    %v835 = vld [vmem:[%s4 + $0xf8] sm:$0xf]
    %v836 = vld [vmem:[%s4 + $0xfc] sm:$0xf]
    %v837 = vunpack.c.l.bf16 %v773
    %v838 = vunpack.c.l.bf16 %v774
    %v839 = vunpack.c.l.bf16 %v775
    %v840 = vunpack.c.l.bf16 %v776
    %v841 = vunpack.c.l.bf16 %v777
    %v842 = vunpack.c.l.bf16 %v778
    %v843 = vunpack.c.l.bf16 %v779
    %v844 = vunpack.c.l.bf16 %v780
    %v845 = vunpack.c.l.bf16 %v781
    %v846 = vunpack.c.l.bf16 %v782
    %v847 = vunpack.c.l.bf16 %v783
    %v848 = vunpack.c.l.bf16 %v784
    %v849 = vunpack.c.l.bf16 %v785
    %v850 = vunpack.c.l.bf16 %v786
    %v851 = vunpack.c.l.bf16 %v787
    %v852 = vunpack.c.l.bf16 %v788
    %v853 = vunpack.c.l.bf16 %v789
    %v854 = vunpack.c.l.bf16 %v790
    %v855 = vunpack.c.l.bf16 %v791
    %v856 = vunpack.c.l.bf16 %v792
    %v857 = vunpack.c.l.bf16 %v793
    %v858 = vunpack.c.l.bf16 %v794
    %v859 = vunpack.c.l.bf16 %v795
    %v860 = vunpack.c.l.bf16 %v796
    %v861 = vunpack.c.l.bf16 %v797
    %v862 = vunpack.c.l.bf16 %v798
    %v863 = vunpack.c.l.bf16 %v799
    %v864 = vunpack.c.l.bf16 %v800
    %v865 = vunpack.c.l.bf16 %v801
    %v866 = vunpack.c.l.bf16 %v802
    %v867 = vunpack.c.l.bf16 %v803
    %v868 = vunpack.c.l.bf16 %v804
    %v869 = vunpack.c.l.bf16 %v805
    %v870 = vunpack.c.l.bf16 %v806
    %v871 = vunpack.c.l.bf16 %v807
    %v872 = vunpack.c.l.bf16 %v808
    %v873 = vunpack.c.l.bf16 %v809
    %v874 = vunpack.c.l.bf16 %v810
    %v875 = vunpack.c.l.bf16 %v811
    %v876 = vunpack.c.l.bf16 %v812
    %v877 = vunpack.c.l.bf16 %v813
    %v878 = vunpack.c.l.bf16 %v814
    %v879 = vunpack.c.l.bf16 %v815
    %v880 = vunpack.c.l.bf16 %v816
    %v881 = vunpack.c.l.bf16 %v817
    %v882 = vunpack.c.l.bf16 %v818
    %v883 = vunpack.c.l.bf16 %v819
    %v884 = vunpack.c.l.bf16 %v820
    %v885 = vunpack.c.l.bf16 %v821
    %v886 = vunpack.c.l.bf16 %v822
    %v887 = vunpack.c.l.bf16 %v823
    %v888 = vunpack.c.l.bf16 %v824
    %v889 = vunpack.c.l.bf16 %v825
    %v890 = vunpack.c.l.bf16 %v826
    %v891 = vunpack.c.l.bf16 %v827
    %v892 = vunpack.c.l.bf16 %v828
    %v893 = vunpack.c.l.bf16 %v829
    %v894 = vunpack.c.l.bf16 %v830
    %v895 = vunpack.c.l.bf16 %v831
    %v896 = vunpack.c.l.bf16 %v832
    %v897 = vunpack.c.l.bf16 %v833
    %v898 = vunpack.c.l.bf16 %v834
    %v899 = vunpack.c.l.bf16 %v835
    %v900 = vunpack.c.l.bf16 %v836
    %v901 = vadd.f32 %v709, %v837
    %v902 = vadd.f32 %v710, %v838
    %v903 = vadd.f32 %v711, %v839
    %v904 = vadd.f32 %v712, %v840
    %v905 = vadd.f32 %v713, %v841
    %v906 = vadd.f32 %v714, %v842
    %v907 = vadd.f32 %v715, %v843
    %v908 = vadd.f32 %v716, %v844
    %v909 = vadd.f32 %v717, %v845
    %v910 = vadd.f32 %v718, %v846
    %v911 = vadd.f32 %v719, %v847
    %v912 = vadd.f32 %v720, %v848
    %v913 = vadd.f32 %v721, %v849
    %v914 = vadd.f32 %v722, %v850
    %v915 = vadd.f32 %v723, %v851
    %v916 = vadd.f32 %v724, %v852
    %v917 = vadd.f32 %v725, %v853
    %v918 = vadd.f32 %v726, %v854
    %v919 = vadd.f32 %v727, %v855
    %v920 = vadd.f32 %v728, %v856
    %v921 = vadd.f32 %v729, %v857
    %v922 = vadd.f32 %v730, %v858
    %v923 = vadd.f32 %v731, %v859
    %v924 = vadd.f32 %v732, %v860
    %v925 = vadd.f32 %v733, %v861
    %v926 = vadd.f32 %v734, %v862
    %v927 = vadd.f32 %v735, %v863
    %v928 = vadd.f32 %v736, %v864
    %v929 = vadd.f32 %v737, %v865
    %v930 = vadd.f32 %v738, %v866
    %v931 = vadd.f32 %v739, %v867
    %v932 = vadd.f32 %v740, %v868
    %v933 = vadd.f32 %v741, %v869
    %v934 = vadd.f32 %v742, %v870
    %v935 = vadd.f32 %v743, %v871
    %v936 = vadd.f32 %v744, %v872
    %v937 = vadd.f32 %v745, %v873
    %v938 = vadd.f32 %v746, %v874
    %v939 = vadd.f32 %v747, %v875
    %v940 = vadd.f32 %v748, %v876
    %v941 = vadd.f32 %v749, %v877
    %v942 = vadd.f32 %v750, %v878
    %v943 = vadd.f32 %v751, %v879
    %v944 = vadd.f32 %v752, %v880
    %v945 = vadd.f32 %v753, %v881
    %v946 = vadd.f32 %v754, %v882
    %v947 = vadd.f32 %v755, %v883
    %v948 = vadd.f32 %v756, %v884
    %v949 = vadd.f32 %v757, %v885
    %v950 = vadd.f32 %v758, %v886
    %v951 = vadd.f32 %v759, %v887
    %v952 = vadd.f32 %v760, %v888
    %v953 = vadd.f32 %v761, %v889
    %v954 = vadd.f32 %v762, %v890
    %v955 = vadd.f32 %v763, %v891
    %v956 = vadd.f32 %v764, %v892
    %v957 = vadd.f32 %v765, %v893
    %v958 = vadd.f32 %v766, %v894
    %v959 = vadd.f32 %v767, %v895
    %v960 = vadd.f32 %v768, %v896
    %v961 = vadd.f32 %v769, %v897
    %v962 = vadd.f32 %v770, %v898
    %v963 = vadd.f32 %v771, %v899
    %v964 = vadd.f32 %v772, %v900
    %v965 = vmax.f32 %v901, 0.0
    %v966 = vmax.f32 %v902, 0.0
    %v967 = vmax.f32 %v903, 0.0
    %v968 = vmax.f32 %v904, 0.0
    %v969 = vmax.f32 %v905, 0.0
    %v970 = vmax.f32 %v906, 0.0
    %v971 = vmax.f32 %v907, 0.0
    %v972 = vmax.f32 %v908, 0.0
    %v973 = vmax.f32 %v909, 0.0
    %v974 = vmax.f32 %v910, 0.0
    %v975 = vmax.f32 %v911, 0.0
    %v976 = vmax.f32 %v912, 0.0
    %v977 = vmax.f32 %v913, 0.0
    %v978 = vmax.f32 %v914, 0.0
    %v979 = vmax.f32 %v915, 0.0
    %v980 = vmax.f32 %v916, 0.0
    %v981 = vmax.f32 %v917, 0.0
    %v982 = vmax.f32 %v918, 0.0
    %v983 = vmax.f32 %v919, 0.0
    %v984 = vmax.f32 %v920, 0.0
    %v985 = vmax.f32 %v921, 0.0
    %v986 = vmax.f32 %v922, 0.0
    %v987 = vmax.f32 %v923, 0.0
    %v988 = vmax.f32 %v924, 0.0
    %v989 = vmax.f32 %v925, 0.0
    %v990 = vmax.f32 %v926, 0.0
    %v991 = vmax.f32 %v927, 0.0
    %v992 = vmax.f32 %v928, 0.0
    %v993 = vmax.f32 %v929, 0.0
    %v994 = vmax.f32 %v930, 0.0
    %v995 = vmax.f32 %v931, 0.0
    %v996 = vmax.f32 %v932, 0.0
    %v997 = vmax.f32 %v933, 0.0
    %v998 = vmax.f32 %v934, 0.0
    %v999 = vmax.f32 %v935, 0.0
    %v1000 = vmax.f32 %v936, 0.0
    %v1001 = vmax.f32 %v937, 0.0
    %v1002 = vmax.f32 %v938, 0.0
    %v1003 = vmax.f32 %v939, 0.0
    %v1004 = vmax.f32 %v940, 0.0
    %v1005 = vmax.f32 %v941, 0.0
    %v1006 = vmax.f32 %v942, 0.0
    %v1007 = vmax.f32 %v943, 0.0
    %v1008 = vmax.f32 %v944, 0.0
    %v1009 = vmax.f32 %v945, 0.0
    %v1010 = vmax.f32 %v946, 0.0
    %v1011 = vmax.f32 %v947, 0.0
    %v1012 = vmax.f32 %v948, 0.0
    %v1013 = vmax.f32 %v949, 0.0
    %v1014 = vmax.f32 %v950, 0.0
    %v1015 = vmax.f32 %v951, 0.0
    %v1016 = vmax.f32 %v952, 0.0
    %v1017 = vmax.f32 %v953, 0.0
    %v1018 = vmax.f32 %v954, 0.0
    %v1019 = vmax.f32 %v955, 0.0
    %v1020 = vmax.f32 %v956, 0.0
    %v1021 = vmax.f32 %v957, 0.0
    %v1022 = vmax.f32 %v958, 0.0
    %v1023 = vmax.f32 %v959, 0.0
    %v1024 = vmax.f32 %v960, 0.0
    %v1025 = vmax.f32 %v961, 0.0
    %v1026 = vmax.f32 %v962, 0.0
    %v1027 = vmax.f32 %v963, 0.0
    %v1028 = vmax.f32 %v964, 0.0
    %1029 = vst [vmem:[#allocation2] sm:$0xff] %v965
    %1030 = vst [vmem:[#allocation2 + $0x8] sm:$0xff] %v966
    %1031 = vst [vmem:[#allocation2 + $0x10] sm:$0xff] %v967
    %1032 = vst [vmem:[#allocation2 + $0x18] sm:$0xff] %v968
    %1033 = vst [vmem:[#allocation2 + $0x20] sm:$0xff] %v969
    %1034 = vst [vmem:[#allocation2 + $0x28] sm:$0xff] %v970
    %1035 = vst [vmem:[#allocation2 + $0x30] sm:$0xff] %v971
    %1036 = vst [vmem:[#allocation2 + $0x38] sm:$0xff] %v972
    %1037 = vst [vmem:[#allocation2 + $0x40] sm:$0xff] %v973
    %1038 = vst [vmem:[#allocation2 + $0x48] sm:$0xff] %v974
    %1039 = vst [vmem:[#allocation2 + $0x50] sm:$0xff] %v975
    %1040 = vst [vmem:[#allocation2 + $0x58] sm:$0xff] %v976
    %1041 = vst [vmem:[#allocation2 + $0x60] sm:$0xff] %v977
    %1042 = vst [vmem:[#allocation2 + $0x68] sm:$0xff] %v978
    %1043 = vst [vmem:[#allocation2 + $0x70] sm:$0xff] %v979
    %1044 = vst [vmem:[#allocation2 + $0x78] sm:$0xff] %v980
    %1045 = vst [vmem:[#allocation2 + $0x80] sm:$0xff] %v981
    %1046 = vst [vmem:[#allocation2 + $0x88] sm:$0xff] %v982
    %1047 = vst [vmem:[#allocation2 + $0x90] sm:$0xff] %v983
    %1048 = vst [vmem:[#allocation2 + $0x98] sm:$0xff] %v984
    %1049 = vst [vmem:[#allocation2 + $0xa0] sm:$0xff] %v985
    %1050 = vst [vmem:[#allocation2 + $0xa8] sm:$0xff] %v986
    %1051 = vst [vmem:[#allocation2 + $0xb0] sm:$0xff] %v987
    %1052 = vst [vmem:[#allocation2 + $0xb8] sm:$0xff] %v988
    %1053 = vst [vmem:[#allocation2 + $0xc0] sm:$0xff] %v989
    %1054 = vst [vmem:[#allocation2 + $0xc8] sm:$0xff] %v990
    %1055 = vst [vmem:[#allocation2 + $0xd0] sm:$0xff] %v991
    %1056 = vst [vmem:[#allocation2 + $0xd8] sm:$0xff] %v992
    %1057 = vst [vmem:[#allocation2 + $0xe0] sm:$0xff] %v993
    %1058 = vst [vmem:[#allocation2 + $0xe8] sm:$0xff] %v994
    %1059 = vst [vmem:[#allocation2 + $0xf0] sm:$0xff] %v995
    %1060 = vst [vmem:[#allocation2 + $0xf8] sm:$0xff] %v996
    %1061 = vst [vmem:[#allocation2 + $0x100] sm:$0xff] %v997
    %1062 = vst [vmem:[#allocation2 + $0x108] sm:$0xff] %v998
    %1063 = vst [vmem:[#allocation2 + $0x110] sm:$0xff] %v999
    %1064 = vst [vmem:[#allocation2 + $0x118] sm:$0xff] %v1000
    %1065 = vst [vmem:[#allocation2 + $0x120] sm:$0xff] %v1001
    %1066 = vst [vmem:[#allocation2 + $0x128] sm:$0xff] %v1002
    %1067 = vst [vmem:[#allocation2 + $0x130] sm:$0xff] %v1003
    %1068 = vst [vmem:[#allocation2 + $0x138] sm:$0xff] %v1004
    %1069 = vst [vmem:[#allocation2 + $0x140] sm:$0xff] %v1005
    %1070 = vst [vmem:[#allocation2 + $0x148] sm:$0xff] %v1006
    %1071 = vst [vmem:[#allocation2 + $0x150] sm:$0xff] %v1007
    %1072 = vst [vmem:[#allocation2 + $0x158] sm:$0xff] %v1008
    %1073 = vst [vmem:[#allocation2 + $0x160] sm:$0xff] %v1009
    %1074 = vst [vmem:[#allocation2 + $0x168] sm:$0xff] %v1010
    %1075 = vst [vmem:[#allocation2 + $0x170] sm:$0xff] %v1011
    %1076 = vst [vmem:[#allocation2 + $0x178] sm:$0xff] %v1012
    %1077 = vst [vmem:[#allocation2 + $0x180] sm:$0xff] %v1013
    %1078 = vst [vmem:[#allocation2 + $0x188] sm:$0xff] %v1014
    %1079 = vst [vmem:[#allocation2 + $0x190] sm:$0xff] %v1015
    %1080 = vst [vmem:[#allocation2 + $0x198] sm:$0xff] %v1016
    %1081 = vst [vmem:[#allocation2 + $0x1a0] sm:$0xff] %v1017
    %1082 = vst [vmem:[#allocation2 + $0x1a8] sm:$0xff] %v1018
    %1083 = vst [vmem:[#allocation2 + $0x1b0] sm:$0xff] %v1019
    %1084 = vst [vmem:[#allocation2 + $0x1b8] sm:$0xff] %v1020
    %1085 = vst [vmem:[#allocation2 + $0x1c0] sm:$0xff] %v1021
    %1086 = vst [vmem:[#allocation2 + $0x1c8] sm:$0xff] %v1022
    %1087 = vst [vmem:[#allocation2 + $0x1d0] sm:$0xff] %v1023
    %1088 = vst [vmem:[#allocation2 + $0x1d8] sm:$0xff] %v1024
    %1089 = vst [vmem:[#allocation2 + $0x1e0] sm:$0xff] %v1025
    %1090 = vst [vmem:[#allocation2 + $0x1e8] sm:$0xff] %v1026
    %1091 = vst [vmem:[#allocation2 + $0x1f0] sm:$0xff] %v1027
    %1092 = vst [vmem:[#allocation2 + $0x1f8] sm:$0xff] %v1028
    // Predicated region
    $region22: #{bottleneck_forward.7} parent=1 // pred_check
      _
    $region23: #{bottleneck_forward.7} parent=1 // pred_check_branch
      %1094 = sbr.rel (0) target = $region25
    $region24: #{bottleneck_forward.7} parent=1 // pred_region
      %s1096 = ssub.s32 8192, 8192
      %1097 = vsyncadd [#allocation3], %s1096
      %s1098 = sshll.u32 [#allocation2], 4
      %s1099 = int_to_ptr.vmem [resolvable:$true] %s1098
      %1104 = dma.vmem_to_hbm [thread:$0]  %s1099, 8192, %s5, [#allocation3], 128, 128, 8
    $region25: #{bottleneck_forward.7} parent=1 // pred_fallthru
      _
    // Predicated region
    $region26: #{bottleneck_forward.7} parent=1 // pred_check
      _
    $region27: #{bottleneck_forward.7} parent=1 // pred_check_branch
      %1106 = sbr.rel (0) target = $region29
    $region28: #{bottleneck_forward.7} parent=1 // pred_region
      %1107 = dma.done [#allocation3], 8192
    $region29: #{bottleneck_forward.7} parent=1 // pred_fallthru
      _
    %1108 = vsyncpa [#allocation3], 1

// kernel: bottleneck_forward.5
$region0: #{bottleneck_forward.5}
  #allocation0 [shape = 'u32[]', space=smem, size = 0x4, offset = 0x4, fixed_abs, tag = 'smem constant byte address 0x4 - core index']
  #allocation1 [shape = 'u32[144,128]{1,0:T(1,128)}', space=vmem, size = 0x12000, scoped, tag = 'internal scratch']
  %s0 = inlined_call_operand.vmem [shape: bf16[2,432,128], index: 0, kind: input, shape index: {}]
  %s1 = inlined_call_operand.vmem [shape: bf16[3,3,128,128], index: 1, kind: input, shape index: {}]
  %s2 = inlined_call_operand.vmem [shape: f32[1,128], index: 2, kind: input, shape index: {}]
  %s3 = inlined_call_operand.vmem [shape: f32[1,128], index: 3, kind: input, shape index: {}]
  %s4 = inlined_call_operand.vmem [shape: bf16[2,16,16,128], index: 4, kind: output, shape index: {}]
  %s5 = sld [smem:[#allocation0]]
  $region49: #{bottleneck_forward.5} parent=0
    _
  %s7 = ssub.s32 1, %s5
  %s8 = scalar_select 0, %s7, %s5
  loop: start=0, step=1, limit=6
  $region2: #{bottleneck_forward.5} parent=0 // loop_pre_header
    _
  $region3: #{bottleneck_forward.5} parent=0 // loop_header
    %s10 = sphi 0, %s14
    %p11 = scmp.ge.s32.totalorder %s10, 6
    %s17 = sphi 0, %s36
    %s18 = sphi 0, %s32
    %s19 = sphi 0, %s28
    %s20 = sphi 0, %s17
    %s21 = sphi 0, %s18
    %s22 = sphi 0, %s19
    %s23 = sphi 0, %s20
    %s24 = sphi 0, %s21
    %s25 = sphi 0, %s22
    %s39 = sphi 0, %s41
    %s42 = sphi 0, %s39
    %s43 = sphi 0, %s42
    %s59 = sphi 0, %s43
    %s65 = sphi 0, %s67
    %s68 = sphi 0, %s65
    %s69 = sphi 0, %s68
    %s85 = sphi 0, %s69
    %s91 = sphi 0, %s93
    %s94 = sphi 0, %s91
    %s95 = sphi 0, %s94
    %s111 = sphi 0, %s95
    %s117 = sphi 0, %s119
    %s120 = sphi 0, %s117
    %s121 = sphi 0, %s120
    %s137 = sphi 0, %s121
    %s147 = sphi 0, %s149
    %s150 = sphi 0, %s147
    %s151 = sphi 0, %s150
    %s167 = sphi 0, %s151
  $region4: #{bottleneck_forward.5} parent=0 // loop_header_branch
    %13 = sbr.rel (%p11) target = $region8
  $region5: #{bottleneck_forward.5} parent=0 // loop_body
    %s15 = ssub.s32 %s10, 1
    %s16 = ssub.s32 %s10, 2
    %s26 = sadd.s32 1, %s19
    %p27 = scmp.ge.s32.totalorder %s26, 2
    %s28 = scalar_select %p27, 0, %s26
    %s29 = sadd.s32 1, %s18
    %s30 = scalar_select %p27, %s29, %s18
    %p31 = scmp.ge.s32.totalorder %s30, 2
    %s32 = scalar_select %p31, 0, %s30
    %s33 = sadd.s32 1, %s17
    %s34 = scalar_select %p31, %s33, %s17
    %p35 = scmp.ge.s32.totalorder %s34, 1
    %s36 = scalar_select %p35, 0, %s34
    %s37 = ssub.s32 %s18, %s32
    %p38 = scmp.eq.s32.totalorder %s37, 0
    %s40 = sadd.s32 %s39, 1
    %s41 = scalar_select %p38, %s39, %s40
    %p44 = pneg %p38
    %p45 = scmp.eq.s32.totalorder %s10, 3
    %p46 = por %p44, %p45
    %p47 = scmp.ne.s32.totalorder %s39, %s42
    %p48 = scmp.eq.s32.totalorder %s10, 0
    %p49 = por %p47, %p48
    %p50 = scmp.ne.s32.totalorder %s39, %s42
    %p51 = scmp.eq.s32.totalorder %s15, 3
    %p52 = por %p50, %p51
    %p53 = scmp.ne.s32.totalorder %s42, %s43
    %p54 = scmp.eq.s32.totalorder %s15, 0
    %p55 = por %p53, %p54
    %p56 = scmp.ne.s32.totalorder %s42, %s43
    %p57 = scmp.eq.s32.totalorder %s16, 3
    %p58 = por %p56, %p57
    %p60 = scmp.ne.s32.totalorder %s43, %s59
    %p61 = scmp.eq.s32.totalorder %s16, 0
    %p62 = por %p60, %p61
    %s63 = ssub.s32 %s17, %s36
    %p64 = scmp.eq.s32.totalorder %s63, 0
    %s66 = sadd.s32 %s65, 1
    %s67 = scalar_select %p64, %s65, %s66
    %p70 = pneg %p64
    %p71 = scmp.eq.s32.totalorder %s10, 3
    %p72 = por %p70, %p71
    %p73 = scmp.ne.s32.totalorder %s65, %s68
    %p74 = scmp.eq.s32.totalorder %s10, 0
    %p75 = por %p73, %p74
    %p76 = scmp.ne.s32.totalorder %s65, %s68
    %p77 = scmp.eq.s32.totalorder %s15, 3
    %p78 = por %p76, %p77
    %p79 = scmp.ne.s32.totalorder %s68, %s69
    %p80 = scmp.eq.s32.totalorder %s15, 0
    %p81 = por %p79, %p80
    %p82 = scmp.ne.s32.totalorder %s68, %s69
    %p83 = scmp.eq.s32.totalorder %s16, 3
    %p84 = por %p82, %p83
    %p86 = scmp.ne.s32.totalorder %s69, %s85
    %p87 = scmp.eq.s32.totalorder %s16, 0
    %p88 = por %p86, %p87
    %s89 = ssub.s32 %s17, %s36
    %p90 = scmp.eq.s32.totalorder %s89, 0
    %s92 = sadd.s32 %s91, 1
    %s93 = scalar_select %p90, %s91, %s92
    %p96 = pneg %p90
    %p97 = scmp.eq.s32.totalorder %s10, 3
    %p98 = por %p96, %p97
    %p99 = scmp.ne.s32.totalorder %s91, %s94
    %p100 = scmp.eq.s32.totalorder %s10, 0
    %p101 = por %p99, %p100
    %p102 = scmp.ne.s32.totalorder %s91, %s94
    %p103 = scmp.eq.s32.totalorder %s15, 3
    %p104 = por %p102, %p103
    %p105 = scmp.ne.s32.totalorder %s94, %s95
    %p106 = scmp.eq.s32.totalorder %s15, 0
    %p107 = por %p105, %p106
    %p108 = scmp.ne.s32.totalorder %s94, %s95
    %p109 = scmp.eq.s32.totalorder %s16, 3
    %p110 = por %p108, %p109
    %p112 = scmp.ne.s32.totalorder %s95, %s111
    %p113 = scmp.eq.s32.totalorder %s16, 0
    %p114 = por %p112, %p113
    %s115 = ssub.s32 %s17, %s36
    %p116 = scmp.eq.s32.totalorder %s115, 0
    %s118 = sadd.s32 %s117, 1
    %s119 = scalar_select %p116, %s117, %s118
    %p122 = pneg %p116
    %p123 = scmp.eq.s32.totalorder %s10, 3
    %p124 = por %p122, %p123
    %p125 = scmp.ne.s32.totalorder %s117, %s120
    %p126 = scmp.eq.s32.totalorder %s10, 0
    %p127 = por %p125, %p126
    %p128 = scmp.ne.s32.totalorder %s117, %s120
    %p129 = scmp.eq.s32.totalorder %s15, 3
    %p130 = por %p128, %p129
    %p131 = scmp.ne.s32.totalorder %s120, %s121
    %p132 = scmp.eq.s32.totalorder %s15, 0
    %p133 = por %p131, %p132
    %p134 = scmp.ne.s32.totalorder %s120, %s121
    %p135 = scmp.eq.s32.totalorder %s16, 3
    %p136 = por %p134, %p135
    %p138 = scmp.ne.s32.totalorder %s121, %s137
    %p139 = scmp.eq.s32.totalorder %s16, 0
    %p140 = por %p138, %p139
    %s141 = ssub.s32 %s18, %s32
    %s142 = ssub.s32 %s19, %s28
    %s143 = sor.u32 %s141, %s142
    %s144 = ssub.s32 %s17, %s36
    %s145 = sor.u32 %s143, %s144
    %p146 = scmp.eq.s32.totalorder %s145, 0
    %s148 = sadd.s32 %s147, 1
    %s149 = scalar_select %p146, %s147, %s148
    %p152 = pneg %p146
    %p153 = scmp.eq.s32.totalorder %s10, 3
    %p154 = por %p152, %p153
    %p155 = scmp.ne.s32.totalorder %s147, %s150
    %p156 = scmp.eq.s32.totalorder %s10, 0
    %p157 = por %p155, %p156
    %p158 = scmp.ne.s32.totalorder %s147, %s150
    %p159 = scmp.eq.s32.totalorder %s15, 3
    %p160 = por %p158, %p159
    %p161 = scmp.ne.s32.totalorder %s150, %s151
    %p162 = scmp.eq.s32.totalorder %s15, 0
    %p163 = por %p161, %p162
    %p164 = scmp.ne.s32.totalorder %s150, %s151
    %p165 = scmp.eq.s32.totalorder %s16, 3
    %p166 = por %p164, %p165
    %p168 = scmp.ne.s32.totalorder %s151, %s167
    %p169 = scmp.eq.s32.totalorder %s16, 0
    %p170 = por %p168, %p169
    %p171 = scmp.le.s32.totalorder 1, %s10
    %p172 = scmp.lt.s32.totalorder %s10, 5
    %p173 = pnand %p171, %p172
    %p174 = pneg %p173
    // Predicated region
    $region9: #{bottleneck_forward.5} parent=5 // pred_check
      _
    $region10: #{bottleneck_forward.5} parent=5 // pred_check_branch
      %176 = sbr.rel (%p173) target = $region12
    $region11: #{bottleneck_forward.5} parent=5 // pred_region
      %s177 = ssub.s32 %s10, 1
      // Predicated region
      $region13: #{bottleneck_forward.5} parent=11 // pred_check
        %p178 = pneg %p81
      $region14: #{bottleneck_forward.5} parent=11 // pred_check_branch
        %180 = sbr.rel (%p178) target = $region16
      $region15: #{bottleneck_forward.5} parent=11 // pred_region
        %p181 = scmp.lt.s32.totalorder %s20, 0
        %s182 = scalar_select %p181, %s20, 0
        %s183 = smul.addr %s182, 4
        %s184 = scalar_lea.vmem %s1, %s183
      $region16: #{bottleneck_forward.5} parent=11 // pred_fallthru
        _
      // Predicated region
      $region17: #{bottleneck_forward.5} parent=11 // pred_check
        %p185 = pneg %p107
      $region18: #{bottleneck_forward.5} parent=11 // pred_check_branch
        %187 = sbr.rel (%p185) target = $region20
      $region19: #{bottleneck_forward.5} parent=11 // pred_region
        %p188 = scmp.lt.s32.totalorder %s20, 0
        %s189 = scalar_select %p188, %s20, 0
        %s190 = scalar_lea.vmem %s2, %s189
      $region20: #{bottleneck_forward.5} parent=11 // pred_fallthru
        _
      // Predicated region
      $region21: #{bottleneck_forward.5} parent=11 // pred_check
        %p191 = pneg %p133
      $region22: #{bottleneck_forward.5} parent=11 // pred_check_branch
        %193 = sbr.rel (%p191) target = $region24
      $region23: #{bottleneck_forward.5} parent=11 // pred_region
        %p194 = scmp.lt.s32.totalorder %s20, 0
        %s195 = scalar_select %p194, %s20, 0
        %s196 = scalar_lea.vmem %s3, %s195
      $region24: #{bottleneck_forward.5} parent=11 // pred_fallthru
        _
    $region12: #{bottleneck_forward.5} parent=5 // pred_fallthru
      _
    %p197 = scmp.lt.s32.totalorder %s10, 4
    // Predicated region
    $region25: #{bottleneck_forward.5} parent=5 // pred_check
      %p198 = pneg %p197
    $region26: #{bottleneck_forward.5} parent=5 // pred_check_branch
      %200 = sbr.rel (%p198) target = $region28
    $region27: #{bottleneck_forward.5} parent=5 // pred_region
      // Predicated region
      $region29: #{bottleneck_forward.5} parent=27 // pred_check
        %p201 = pneg %p49
      $region30: #{bottleneck_forward.5} parent=27 // pred_check_branch
        %203 = sbr.rel (%p201) target = $region32
      $region31: #{bottleneck_forward.5} parent=27 // pred_region
        %p204 = scmp.lt.s32.totalorder %s18, 1
        %s205 = scalar_select %p204, %s18, 1
        %s206 = smul.addr %s205, 54
        %s207 = smul.addr %s206, 4
        %s208 = scalar_lea.vmem %s0, %s207
      $region32: #{bottleneck_forward.5} parent=27 // pred_fallthru
        _
    $region28: #{bottleneck_forward.5} parent=5 // pred_fallthru
      _
    %p209 = scmp.le.s32.totalorder 1, %s10
    %p210 = scmp.lt.s32.totalorder %s10, 5
    %p211 = pnand %p209, %p210
    %p212 = pneg %p211
    // Predicated region
    $region33: #{bottleneck_forward.5} parent=5 // pred_check
      _
    $region34: #{bottleneck_forward.5} parent=5 // pred_check_branch
      %214 = sbr.rel (%p211) target = $region36
    $region35: #{bottleneck_forward.5} parent=5 // pred_region
      %s215 = ssub.s32 %s10, 1
      %p216 = scmp.lt.s32.totalorder %s21, 1
      %s217 = scalar_select %p216, %s21, 1
      %s218 = smul.addr %s217, 54
      %s219 = smul.addr %s218, 4
      %s220 = scalar_lea.vmem %s0, %s219
      %p221 = pneg %p55
      %p222 = pneg %p52
      %p223 = scmp.lt.s32.totalorder %s20, 0
      %s224 = scalar_select %p223, %s20, 0
      %s225 = smul.addr %s224, 4
      %s226 = scalar_lea.vmem %s1, %s225
      %p227 = pneg %p81
      %p228 = pneg %p78
      %p229 = scmp.lt.s32.totalorder %s20, 0
      %s230 = scalar_select %p229, %s20, 0
      %s231 = scalar_lea.vmem %s2, %s230
      %p232 = pneg %p107
      %p233 = pneg %p104
      %p234 = scmp.lt.s32.totalorder %s20, 0
      %s235 = scalar_select %p234, %s20, 0
      %s236 = scalar_lea.vmem %s3, %s235
      %p237 = pneg %p133
      %p238 = pneg %p130
      %p239 = pneg %p163
      %p240 = pneg %p160
      %s241 = smul.u32 8, %s22
      %p242 = scmp.lt.s32.totalorder %s21, 1
      %s243 = scalar_select %p242, %s21, 1
      %p244 = scmp.lt.s32.totalorder %s241, 15
      %s245 = scalar_select %p244, %s241, 15
      %p246 = scmp.lt.s32.totalorder %s20, 0
      %s247 = scalar_select %p246, %s20, 0
      %s248 = smul.addr %s245, 2
      %s249 = sadd.s32 %s247, %s248
      %s250 = smul.addr %s243, 32
      %s251 = sadd.s32 %s249, %s250
      %s252 = smul.addr %s251, 4
      %s253 = scalar_lea.vmem %s4, %s252
      %p254 = scmp.lt.s32.totalorder %s21, 1
      %s255 = scalar_select %p254, %s21, 1
      %s256 = smul.addr %s255, 54
      %s257 = smul.addr %s256, 4
      %s258 = scalar_lea.vmem %s0, %s257
      %p259 = scmp.lt.s32.totalorder %s20, 0
      %s260 = scalar_select %p259, %s20, 0
      %s261 = smul.addr %s260, 4
      %s262 = scalar_lea.vmem %s1, %s261
      %p263 = scmp.lt.s32.totalorder %s20, 0
      %s264 = scalar_select %p263, %s20, 0
      %s265 = scalar_lea.vmem %s2, %s264
      %p266 = scmp.lt.s32.totalorder %s20, 0
      %s267 = scalar_select %p266, %s20, 0
      %s268 = scalar_lea.vmem %s3, %s267
      %s269 = smul.u32 8, %s22
      %p270 = scmp.lt.s32.totalorder %s21, 1
      %s271 = scalar_select %p270, %s21, 1
      %p272 = scmp.lt.s32.totalorder %s269, 15
      %s273 = scalar_select %p272, %s269, 15
      %p274 = scmp.lt.s32.totalorder %s20, 0
      %s275 = scalar_select %p274, %s20, 0
      %s276 = smul.addr %s273, 2
      %s277 = sadd.s32 %s275, %s276
      %s278 = smul.addr %s271, 32
      %s279 = sadd.s32 %s277, %s278
      %s280 = smul.addr %s279, 4
      %s281 = scalar_lea.vmem %s4, %s280
      %s282 = smul.u32 8, %s22
      %s284 = smul.u32 %s22, 8
      %s285 = smul.u32 %s22, 192
      %s286 = sshra.s32 %s285, 3
      %s287 = sand.u32 %s285, 7
      %s288 = smul.addr %s286, 4
      %s289 = scalar_lea.vmem %s258, %s288
      %v290 = vld [vmem:[%s289] sm:$0xf]
      %v291 = vld [vmem:[%s289 + $0x4] sm:$0xf]
      %v292 = vld [vmem:[%s289 + $0x8] sm:$0xf]
      %v293 = vld [vmem:[%s289 + $0xc] sm:$0xf]
      %v294 = vld [vmem:[%s289 + $0x10] sm:$0xf]
      %v295 = vld [vmem:[%s289 + $0x14] sm:$0xf]
      %v296 = vld [vmem:[%s289 + $0x18] sm:$0xf]
      %v297 = vld [vmem:[%s289 + $0x1c] sm:$0xf]
      %v298 = vld [vmem:[%s289 + $0x20] sm:$0xf]
      %v299 = vld [vmem:[%s289 + $0x24] sm:$0xf]
      %v300 = vld [vmem:[%s289 + $0x28] sm:$0xf]
      %v301 = vld [vmem:[%s289 + $0x2c] sm:$0xf]
      %v302 = vld [vmem:[%s289 + $0x30] sm:$0xf]
      %v303 = vld [vmem:[%s289 + $0x34] sm:$0xf]
      %v304 = vld [vmem:[%s289 + $0x38] sm:$0xf]
      %v305 = vld [vmem:[%s289 + $0x3c] sm:$0xf]
      %v306 = vld [vmem:[%s289 + $0x40] sm:$0xf]
      %v307 = vld [vmem:[%s289 + $0x44] sm:$0xf]
      %v308 = vld [vmem:[%s289 + $0x48] sm:$0xf]
      %v309 = vld [vmem:[%s289 + $0x4c] sm:$0xf]
      %v310 = vld [vmem:[%s289 + $0x50] sm:$0xf]
      %v311 = vld [vmem:[%s289 + $0x54] sm:$0xf]
      %v312 = vld [vmem:[%s289 + $0x58] sm:$0xf]
      %v313 = vld [vmem:[%s289 + $0x5c] sm:$0xf]
      %v314 = vld [vmem:[%s262] sm:$0xf]
      %v315 = vld [vmem:[%s262 + $0x4] sm:$0xf]
      %v316 = vld [vmem:[%s262 + $0x8] sm:$0xf]
      %v317 = vld [vmem:[%s262 + $0xc] sm:$0xf]
      %v318 = vld [vmem:[%s262 + $0x10] sm:$0xf]
      %v319 = vld [vmem:[%s262 + $0x14] sm:$0xf]
      %v320 = vld [vmem:[%s262 + $0x18] sm:$0xf]
      %v321 = vld [vmem:[%s262 + $0x1c] sm:$0xf]
      %v322 = vld [vmem:[%s262 + $0x20] sm:$0xf]
      %v323 = vld [vmem:[%s262 + $0x24] sm:$0xf]
      %v324 = vld [vmem:[%s262 + $0x28] sm:$0xf]
      %v325 = vld [vmem:[%s262 + $0x2c] sm:$0xf]
      %v326 = vld [vmem:[%s262 + $0x30] sm:$0xf]
      %v327 = vld [vmem:[%s262 + $0x34] sm:$0xf]
      %v328 = vld [vmem:[%s262 + $0x38] sm:$0xf]
      %v329 = vld [vmem:[%s262 + $0x3c] sm:$0xf]
      %s330 = scalar_lea.vmem %s262, 64
      %v331 = vld [vmem:[%s330] sm:$0xf]
      %v332 = vld [vmem:[%s330 + $0x4] sm:$0xf]
      %v333 = vld [vmem:[%s330 + $0x8] sm:$0xf]
      %v334 = vld [vmem:[%s330 + $0xc] sm:$0xf]
      %v335 = vld [vmem:[%s330 + $0x10] sm:$0xf]
      %v336 = vld [vmem:[%s330 + $0x14] sm:$0xf]
      %v337 = vld [vmem:[%s330 + $0x18] sm:$0xf]
      %v338 = vld [vmem:[%s330 + $0x1c] sm:$0xf]
      %v339 = vld [vmem:[%s330 + $0x20] sm:$0xf]
      %v340 = vld [vmem:[%s330 + $0x24] sm:$0xf]
      %v341 = vld [vmem:[%s330 + $0x28] sm:$0xf]
      %v342 = vld [vmem:[%s330 + $0x2c] sm:$0xf]
      %v343 = vld [vmem:[%s330 + $0x30] sm:$0xf]
      %v344 = vld [vmem:[%s330 + $0x34] sm:$0xf]
      %v345 = vld [vmem:[%s330 + $0x38] sm:$0xf]
      %v346 = vld [vmem:[%s330 + $0x3c] sm:$0xf]
      %v371 = vunpack.c.l.b16 %v290
      %v372 = vunpack.c.l.b16 %v291
      %v373 = vunpack.c.l.b16 %v292
      %v374 = vunpack.c.l.b16 %v293
      %v375 = vunpack.c.l.b16 %v294
      %v376 = vunpack.c.l.b16 %v295
      %v377 = vunpack.c.l.b16 %v296
      %v378 = vunpack.c.l.b16 %v297
      %v379 = vunpack.c.l.b16 %v298
      %v380 = vunpack.c.l.b16 %v299
      %v381 = vunpack.c.l.b16 %v300
      %v382 = vunpack.c.l.b16 %v301
      %v383 = vunpack.c.l.b16 %v302
      %v384 = vunpack.c.l.b16 %v303
      %v385 = vunpack.c.l.b16 %v304
      %v386 = vunpack.c.l.b16 %v305
      %v387 = vunpack.c.l.b16 %v306
      %v388 = vunpack.c.l.b16 %v307
      %v389 = vunpack.c.l.b16 %v308
      %v390 = vunpack.c.l.b16 %v309
      %v391 = vunpack.c.l.b16 %v310
      %v392 = vunpack.c.l.b16 %v311
      %v393 = vunpack.c.l.b16 %v312
      %v394 = vunpack.c.l.b16 %v313
      %v395 = vpack.c.b16 %v372, %v371
      %v396 = vpack.c.b16 %v374, %v373
      %v397 = vpack.c.b16 %v376, %v375
      %v398 = vpack.c.b16 %v378, %v377
      %v399 = vpack.c.b16 %v380, %v379
      %v400 = vpack.c.b16 %v382, %v381
      %v401 = vpack.c.b16 %v384, %v383
      %v402 = vpack.c.b16 %v386, %v385
      %v403 = vpack.c.b16 %v388, %v387
      %v404 = vpack.c.b16 %v390, %v389
      %v405 = vpack.c.b16 %v392, %v391
      %v406 = vpack.c.b16 %v394, %v393
      %v435 = vunpack.c.l.b16 %v331
      %v436 = vunpack.c.l.b16 %v332
      %v437 = vunpack.c.l.b16 %v333
      %v438 = vunpack.c.l.b16 %v334
      %v439 = vunpack.c.l.b16 %v335
      %v440 = vunpack.c.l.b16 %v336
      %v441 = vunpack.c.l.b16 %v337
      %v442 = vunpack.c.l.b16 %v338
      %v443 = vunpack.c.l.b16 %v339
      %v444 = vunpack.c.l.b16 %v340
      %v445 = vunpack.c.l.b16 %v341
      %v446 = vunpack.c.l.b16 %v342
      %v447 = vunpack.c.l.b16 %v343
      %v448 = vunpack.c.l.b16 %v344
      %v449 = vunpack.c.l.b16 %v345
      %v450 = vunpack.c.l.b16 %v346
      %v451 = vpack.c.b16 %v436, %v435
      %v452 = vpack.c.b16 %v438, %v437
      %v453 = vpack.c.b16 %v440, %v439
      %v454 = vpack.c.b16 %v442, %v441
      %v455 = vpack.c.b16 %v444, %v443
      %v456 = vpack.c.b16 %v446, %v445
      %v457 = vpack.c.b16 %v448, %v447
      %v458 = vpack.c.b16 %v450, %v449
      %467 = vmatprep.subr.bf16.mxu0 0
      %468 = vmatpush1.bf16.msra.mxu0 %v451
      %469 = vmatprep.subr.bf16.mxu0 0
      %470 = vmatpush1.bf16.msra.mxu0 %v452
      %471 = vmatprep.subr.bf16.mxu0 0
      %472 = vmatpush1.bf16.msra.mxu0 %v453
      %473 = vmatprep.subr.bf16.mxu0 0
      %474 = vmatpush1.bf16.msra.mxu0 %v454
      %475 = vmatprep.subr.bf16.mxu0 0
      %476 = vmatpush1.bf16.msra.mxu0 %v455
      %477 = vmatprep.subr.bf16.mxu0 0
      %478 = vmatpush1.bf16.msra.mxu0 %v456
      %479 = vmatprep.subr.bf16.mxu0 0
      %480 = vmatpush1.bf16.msra.mxu0 %v457
      %481 = vmatprep.subr.bf16.mxu0 0
      %482 = vmatpush1.bf16.msra.mxu0 %v458
      %483 = vmatprep.subr.bf16.mxu0 0
      %484 = vmatpush1.bf16.msra.mxu0 0
      %485 = vmatprep.subr.bf16.mxu0 0
      %486 = vmatpush1.bf16.msra.mxu0 0
      %487 = vmatprep.subr.bf16.mxu0 0
      %488 = vmatpush1.bf16.msra.mxu0 0
      %489 = vmatprep.subr.bf16.mxu0 0
      %490 = vmatpush1.bf16.msra.mxu0 0
      %491 = vmatprep.subr.bf16.mxu0 0
      %492 = vmatpush1.bf16.msra.mxu0 0
      %493 = vmatprep.subr.bf16.mxu0 0
      %494 = vmatpush1.bf16.msra.mxu0 0
      %495 = vmatprep.subr.bf16.mxu0 0
      %496 = vmatpush1.bf16.msra.mxu0 0
      %497 = vmatprep.subr.bf16.mxu0 0
      %498 = vmatpush1.bf16.msra.mxu0 0
      %499 = vmatprep.mubr.bf16.mxu0 0
      %500 = vmatmul.mubr.bf16.gmra.mrb[0].mxu0 %v395
      %v501 = vpop.f32.mrb[0].mxu0
      %v502 = vadd.f32 0.0, %v501
      %v503 = vpop.f32.mrb[0].mxu0
      %v504 = vpop.f32.mrb[0].mxu0
      %v505 = vadd.f32 0.0, %v504
      %v506 = vpop.f32.mrb[0].mxu0
      %507 = vmatprep.mubr.bf16.mxu0 0
      %508 = vmatmul.mubr.bf16.gmra.mrb[0].mxu0 %v396
      %v509 = vpop.f32.mrb[0].mxu0
      %v510 = vadd.f32 0.0, %v509
      %v511 = vpop.f32.mrb[0].mxu0
      %v512 = vpop.f32.mrb[0].mxu0
      %v513 = vadd.f32 0.0, %v512
      %v514 = vpop.f32.mrb[0].mxu0
      %515 = vmatprep.mubr.bf16.mxu0 0
      %516 = vmatmul.mubr.bf16.gmra.mrb[0].mxu0 %v397
      %v517 = vpop.f32.mrb[0].mxu0
      %v518 = vadd.f32 0.0, %v517
      %v519 = vpop.f32.mrb[0].mxu0
      %v520 = vpop.f32.mrb[0].mxu0
      %v521 = vadd.f32 0.0, %v520
      %v522 = vpop.f32.mrb[0].mxu0
      %523 = vmatprep.mubr.bf16.mxu0 0
      %524 = vmatmul.mubr.bf16.gmra.mrb[0].mxu0 %v398
      %v525 = vpop.f32.mrb[0].mxu0
      %v526 = vadd.f32 0.0, %v525
      %v527 = vpop.f32.mrb[0].mxu0
      %v528 = vpop.f32.mrb[0].mxu0
      %v529 = vadd.f32 0.0, %v528
      %v530 = vpop.f32.mrb[0].mxu0
      %531 = vmatprep.mubr.bf16.mxu0 0
      %532 = vmatmul.mubr.bf16.gmra.mrb[0].mxu0 %v399
      %v533 = vpop.f32.mrb[0].mxu0
      %v534 = vadd.f32 0.0, %v533
      %v535 = vpop.f32.mrb[0].mxu0
      %v536 = vpop.f32.mrb[0].mxu0
      %v537 = vadd.f32 0.0, %v536
      %v538 = vpop.f32.mrb[0].mxu0
      %539 = vmatprep.mubr.bf16.mxu0 0
      %540 = vmatmul.mubr.bf16.gmra.mrb[0].mxu0 %v400
      %v541 = vpop.f32.mrb[0].mxu0
      %v542 = vadd.f32 0.0, %v541
      %v543 = vpop.f32.mrb[0].mxu0
      %v544 = vpop.f32.mrb[0].mxu0
      %v545 = vadd.f32 0.0, %v544
      %v546 = vpop.f32.mrb[0].mxu0
      %547 = vmatprep.mubr.bf16.mxu0 0
      %548 = vmatmul.mubr.bf16.gmra.mrb[0].mxu0 %v401
      %v549 = vpop.f32.mrb[0].mxu0
      %v550 = vadd.f32 0.0, %v549
      %v551 = vpop.f32.mrb[0].mxu0
      %v552 = vpop.f32.mrb[0].mxu0
      %v553 = vadd.f32 0.0, %v552
      %v554 = vpop.f32.mrb[0].mxu0
      %555 = vmatprep.mubr.bf16.mxu0 0
      %556 = vmatmul.mubr.bf16.gmra.mrb[0].mxu0 %v402
      %v557 = vpop.f32.mrb[0].mxu0
      %v558 = vadd.f32 0.0, %v557
      %v559 = vpop.f32.mrb[0].mxu0
      %v560 = vpop.f32.mrb[0].mxu0
      %v561 = vadd.f32 0.0, %v560
      %v562 = vpop.f32.mrb[0].mxu0
      %563 = vmatprep.mubr.bf16.mxu0 0
      %564 = vmatmul.mubr.bf16.gmra.mrb[0].mxu0 %v403
      %v565 = vpop.f32.mrb[0].mxu0
      %v566 = vadd.f32 0.0, %v565
      %v567 = vpop.f32.mrb[0].mxu0
      %v568 = vpop.f32.mrb[0].mxu0
      %v569 = vadd.f32 0.0, %v568
      %v570 = vpop.f32.mrb[0].mxu0
      %571 = vmatprep.mubr.bf16.mxu0 0
      %572 = vmatmul.mubr.bf16.gmra.mrb[0].mxu0 %v404
      %v573 = vpop.f32.mrb[0].mxu0
      %v574 = vadd.f32 0.0, %v573
      %v575 = vpop.f32.mrb[0].mxu0
      %v576 = vpop.f32.mrb[0].mxu0
      %v577 = vadd.f32 0.0, %v576
      %v578 = vpop.f32.mrb[0].mxu0
      %579 = vmatprep.mubr.bf16.mxu0 0
      %580 = vmatmul.mubr.bf16.gmra.mrb[0].mxu0 %v405
      %v581 = vpop.f32.mrb[0].mxu0
      %v582 = vadd.f32 0.0, %v581
      %v583 = vpop.f32.mrb[0].mxu0
      %v584 = vpop.f32.mrb[0].mxu0
      %v585 = vadd.f32 0.0, %v584
      %v586 = vpop.f32.mrb[0].mxu0
      %587 = vmatprep.mubr.bf16.mxu0 0
      %588 = vmatmul.mubr.bf16.gmra.mrb[0].mxu0 %v406
      %v589 = vpop.f32.mrb[0].mxu0
      %v590 = vadd.f32 0.0, %v589
      %v591 = vpop.f32.mrb[0].mxu0
      %v592 = vpop.f32.mrb[0].mxu0
      %v593 = vadd.f32 0.0, %v592
      %v594 = vpop.f32.mrb[0].mxu0
      %595 = vdwg.mxu0
      %v596 = vrot.slane %v502, 1
      %v597 = vrot.slane %v505, 1
      %v598 = vrot.slane %v510, 1
      %v599 = vrot.slane %v513, 1
      %v600 = vrot.slane %v518, 1
      %v601 = vrot.slane %v521, 1
      %v602 = vrot.slane %v526, 1
      %v603 = vrot.slane %v529, 1
      %v604 = vrot.slane %v534, 1
      %v605 = vrot.slane %v537, 1
      %v606 = vrot.slane %v542, 1
      %v607 = vrot.slane %v545, 1
      %v608 = vrot.slane %v550, 1
      %v609 = vrot.slane %v553, 1
      %v610 = vrot.slane %v558, 1
      %v611 = vrot.slane %v561, 1
      %v612 = vrot.slane %v566, 1
      %v613 = vrot.slane %v569, 1
      %v614 = vrot.slane %v574, 1
      %v615 = vrot.slane %v577, 1
      %v616 = vrot.slane %v582, 1
      %v617 = vrot.slane %v585, 1
      %v618 = vrot.slane %v590, 1
      %v619 = vrot.slane %v593, 1
      %v620 = vlaneseq
      %v621 = vshrl.u32 %v620, 7
      %vm622 = vcmp.lt.s32.totalorder %v621, 7
      %v623 = vsel %vm622, %v618, %v619
      %v624 = vsel %vm622, %v617, %v618
      %v625 = vsel %vm622, %v615, %v616
      %v626 = vsel %vm622, %v614, %v615
      %v627 = vsel %vm622, %v612, %v613
      %v628 = vsel %vm622, %v611, %v612
      %v629 = vsel %vm622, %v609, %v610
      %v630 = vsel %vm622, %v608, %v609
      %v631 = vsel %vm622, %v606, %v607
      %v632 = vsel %vm622, %v605, %v606
      %v633 = vsel %vm622, %v603, %v604
      %v634 = vsel %vm622, %v602, %v603
      %v635 = vsel %vm622, %v600, %v601
      %v636 = vsel %vm622, %v599, %v600
      %v637 = vsel %vm622, %v597, %v598
      %v638 = vsel %vm622, %v596, %v597
      %v655 = vunpack.c.l.b16 %v314
      %v656 = vunpack.c.l.b16 %v315
      %v657 = vunpack.c.l.b16 %v316
      %v658 = vunpack.c.l.b16 %v317
      %v659 = vunpack.c.l.b16 %v318
      %v660 = vunpack.c.l.b16 %v319
      %v661 = vunpack.c.l.b16 %v320
      %v662 = vunpack.c.l.b16 %v321
      %v663 = vunpack.c.l.b16 %v322
      %v664 = vunpack.c.l.b16 %v323
      %v665 = vunpack.c.l.b16 %v324
      %v666 = vunpack.c.l.b16 %v325
      %v667 = vunpack.c.l.b16 %v326
      %v668 = vunpack.c.l.b16 %v327
      %v669 = vunpack.c.l.b16 %v328
      %v670 = vunpack.c.l.b16 %v329
      %v671 = vpack.c.b16 %v656, %v655
      %v672 = vpack.c.b16 %v658, %v657
      %v673 = vpack.c.b16 %v660, %v659
      %v674 = vpack.c.b16 %v662, %v661
      %v675 = vpack.c.b16 %v664, %v663
      %v676 = vpack.c.b16 %v666, %v665
      %v677 = vpack.c.b16 %v668, %v667
      %v678 = vpack.c.b16 %v670, %v669
      %687 = vmatprep.subr.bf16.mxu0 0
      %688 = vmatpush1.bf16.msra.mxu0 %v671
      %689 = vmatprep.subr.bf16.mxu0 0
      %690 = vmatpush1.bf16.msra.mxu0 %v672
      %691 = vmatprep.subr.bf16.mxu0 0
      %692 = vmatpush1.bf16.msra.mxu0 %v673
      %693 = vmatprep.subr.bf16.mxu0 0
      %694 = vmatpush1.bf16.msra.mxu0 %v674
      %695 = vmatprep.subr.bf16.mxu0 0
      %696 = vmatpush1.bf16.msra.mxu0 %v675
      %697 = vmatprep.subr.bf16.mxu0 0
      %698 = vmatpush1.bf16.msra.mxu0 %v676
      %699 = vmatprep.subr.bf16.mxu0 0
      %700 = vmatpush1.bf16.msra.mxu0 %v677
      %701 = vmatprep.subr.bf16.mxu0 0
      %702 = vmatpush1.bf16.msra.mxu0 %v678
      %703 = vmatprep.subr.bf16.mxu0 0
      %704 = vmatpush1.bf16.msra.mxu0 0
      %705 = vmatprep.subr.bf16.mxu0 0
      %706 = vmatpush1.bf16.msra.mxu0 0
      %707 = vmatprep.subr.bf16.mxu0 0
      %708 = vmatpush1.bf16.msra.mxu0 0
      %709 = vmatprep.subr.bf16.mxu0 0
      %710 = vmatpush1.bf16.msra.mxu0 0
      %711 = vmatprep.subr.bf16.mxu0 0
      %712 = vmatpush1.bf16.msra.mxu0 0
      %713 = vmatprep.subr.bf16.mxu0 0
      %714 = vmatpush1.bf16.msra.mxu0 0
      %715 = vmatprep.subr.bf16.mxu0 0
      %716 = vmatpush1.bf16.msra.mxu0 0
      %717 = vmatprep.subr.bf16.mxu0 0
      %718 = vmatpush1.bf16.msra.mxu0 0
      %719 = vmatprep.mubr.bf16.mxu0 0
      %720 = vmatmul.mubr.bf16.gmra.mrb[0].mxu0 %v395
      %v721 = vpop.f32.mrb[0].mxu0
      %v722 = vadd.f32 %v638, %v721
      %v723 = vpop.f32.mrb[0].mxu0
      %v724 = vpop.f32.mrb[0].mxu0
      %v725 = vadd.f32 %v637, %v724
      %v726 = vpop.f32.mrb[0].mxu0
      %727 = vmatprep.mubr.bf16.mxu0 0
      %728 = vmatmul.mubr.bf16.gmra.mrb[0].mxu0 %v396
      %v729 = vpop.f32.mrb[0].mxu0
      %v730 = vpop.f32.mrb[0].mxu0
      %v731 = vpop.f32.mrb[0].mxu0
      %v732 = vadd.f32 %v636, %v731
      %v733 = vpop.f32.mrb[0].mxu0
      %734 = vmatprep.mubr.bf16.mxu0 0
      %735 = vmatmul.mubr.bf16.gmra.mrb[0].mxu0 %v397
      %v736 = vpop.f32.mrb[0].mxu0
      %v737 = vadd.f32 %v635, %v736
      %v738 = vpop.f32.mrb[0].mxu0
      %v739 = vpop.f32.mrb[0].mxu0
      %v740 = vpop.f32.mrb[0].mxu0
      %741 = vmatprep.mubr.bf16.mxu0 0
      %742 = vmatmul.mubr.bf16.gmra.mrb[0].mxu0 %v398
      %v743 = vpop.f32.mrb[0].mxu0
      %v744 = vadd.f32 %v634, %v743
      %v745 = vpop.f32.mrb[0].mxu0
      %v746 = vpop.f32.mrb[0].mxu0
      %v747 = vadd.f32 %v633, %v746
      %v748 = vpop.f32.mrb[0].mxu0
      %749 = vmatprep.mubr.bf16.mxu0 0
      %750 = vmatmul.mubr.bf16.gmra.mrb[0].mxu0 %v399
      %v751 = vpop.f32.mrb[0].mxu0
      %v752 = vpop.f32.mrb[0].mxu0
      %v753 = vpop.f32.mrb[0].mxu0
      %v754 = vadd.f32 %v632, %v753
      %v755 = vpop.f32.mrb[0].mxu0
      %756 = vmatprep.mubr.bf16.mxu0 0
      %757 = vmatmul.mubr.bf16.gmra.mrb[0].mxu0 %v400
      %v758 = vpop.f32.mrb[0].mxu0
      %v759 = vadd.f32 %v631, %v758
      %v760 = vpop.f32.mrb[0].mxu0
      %v761 = vpop.f32.mrb[0].mxu0
      %v762 = vpop.f32.mrb[0].mxu0
      %763 = vmatprep.mubr.bf16.mxu0 0
      %764 = vmatmul.mubr.bf16.gmra.mrb[0].mxu0 %v401
      %v765 = vpop.f32.mrb[0].mxu0
      %v766 = vadd.f32 %v630, %v765
      %v767 = vpop.f32.mrb[0].mxu0
      %v768 = vpop.f32.mrb[0].mxu0
      %v769 = vadd.f32 %v629, %v768
      %v770 = vpop.f32.mrb[0].mxu0
      %771 = vmatprep.mubr.bf16.mxu0 0
      %772 = vmatmul.mubr.bf16.gmra.mrb[0].mxu0 %v402
      %v773 = vpop.f32.mrb[0].mxu0
      %v774 = vpop.f32.mrb[0].mxu0
      %v775 = vpop.f32.mrb[0].mxu0
      %v776 = vadd.f32 %v628, %v775
      %v777 = vpop.f32.mrb[0].mxu0
      %778 = vmatprep.mubr.bf16.mxu0 0
      %779 = vmatmul.mubr.bf16.gmra.mrb[0].mxu0 %v403
      %v780 = vpop.f32.mrb[0].mxu0
      %v781 = vadd.f32 %v627, %v780
      %v782 = vpop.f32.mrb[0].mxu0
      %v783 = vpop.f32.mrb[0].mxu0
      %v784 = vpop.f32.mrb[0].mxu0
      %785 = vmatprep.mubr.bf16.mxu0 0
      %786 = vmatmul.mubr.bf16.gmra.mrb[0].mxu0 %v404
      %v787 = vpop.f32.mrb[0].mxu0
      %v788 = vadd.f32 %v626, %v787
      %v789 = vpop.f32.mrb[0].mxu0
      %v790 = vpop.f32.mrb[0].mxu0
      %v791 = vadd.f32 %v625, %v790
      %v792 = vpop.f32.mrb[0].mxu0
      %793 = vmatprep.mubr.bf16.mxu0 0
      %794 = vmatmul.mubr.bf16.gmra.mrb[0].mxu0 %v405
      %v795 = vpop.f32.mrb[0].mxu0
      %v796 = vpop.f32.mrb[0].mxu0
      %v797 = vpop.f32.mrb[0].mxu0
      %v798 = vadd.f32 %v624, %v797
      %v799 = vpop.f32.mrb[0].mxu0
      %800 = vmatprep.mubr.bf16.mxu0 0
      %801 = vmatmul.mubr.bf16.gmra.mrb[0].mxu0 %v406
      %v802 = vpop.f32.mrb[0].mxu0
      %v803 = vadd.f32 %v623, %v802
      %v804 = vpop.f32.mrb[0].mxu0
      %v805 = vpop.f32.mrb[0].mxu0
      %v806 = vpop.f32.mrb[0].mxu0
      %807 = vdwg.mxu0
      %s808 = scalar_lea.vmem %s262, 128
      %v809 = vld [vmem:[%s808] sm:$0xf]
      %v810 = vld [vmem:[%s808 + $0x4] sm:$0xf]
      %v811 = vld [vmem:[%s808 + $0x8] sm:$0xf]
      %v812 = vld [vmem:[%s808 + $0xc] sm:$0xf]
      %v813 = vld [vmem:[%s808 + $0x10] sm:$0xf]
      %v814 = vld [vmem:[%s808 + $0x14] sm:$0xf]
      %v815 = vld [vmem:[%s808 + $0x18] sm:$0xf]
      %v816 = vld [vmem:[%s808 + $0x1c] sm:$0xf]
      %v817 = vld [vmem:[%s808 + $0x20] sm:$0xf]
      %v818 = vld [vmem:[%s808 + $0x24] sm:$0xf]
      %v819 = vld [vmem:[%s808 + $0x28] sm:$0xf]
      %v820 = vld [vmem:[%s808 + $0x2c] sm:$0xf]
      %v821 = vld [vmem:[%s808 + $0x30] sm:$0xf]
      %v822 = vld [vmem:[%s808 + $0x34] sm:$0xf]
      %v823 = vld [vmem:[%s808 + $0x38] sm:$0xf]
      %v824 = vld [vmem:[%s808 + $0x3c] sm:$0xf]
      %v841 = vunpack.c.l.b16 %v809
      %v842 = vunpack.c.l.b16 %v810
      %v843 = vunpack.c.l.b16 %v811
      %v844 = vunpack.c.l.b16 %v812
      %v845 = vunpack.c.l.b16 %v813
      %v846 = vunpack.c.l.b16 %v814
      %v847 = vunpack.c.l.b16 %v815
      %v848 = vunpack.c.l.b16 %v816
      %v849 = vunpack.c.l.b16 %v817
      %v850 = vunpack.c.l.b16 %v818
      %v851 = vunpack.c.l.b16 %v819
      %v852 = vunpack.c.l.b16 %v820
      %v853 = vunpack.c.l.b16 %v821
      %v854 = vunpack.c.l.b16 %v822
      %v855 = vunpack.c.l.b16 %v823
      %v856 = vunpack.c.l.b16 %v824
      %v857 = vpack.c.b16 %v842, %v841
      %v858 = vpack.c.b16 %v844, %v843
      %v859 = vpack.c.b16 %v846, %v845
      %v860 = vpack.c.b16 %v848, %v847
      %v861 = vpack.c.b16 %v850, %v849
      %v862 = vpack.c.b16 %v852, %v851
      %v863 = vpack.c.b16 %v854, %v853
      %v864 = vpack.c.b16 %v856, %v855
      %873 = vmatprep.subr.bf16.mxu0 0
      %874 = vmatpush1.bf16.msra.mxu0 %v857
      %875 = vmatprep.subr.bf16.mxu0 0
      %876 = vmatpush1.bf16.msra.mxu0 %v858
      %877 = vmatprep.subr.bf16.mxu0 0
      %878 = vmatpush1.bf16.msra.mxu0 %v859
      %879 = vmatprep.subr.bf16.mxu0 0
      %880 = vmatpush1.bf16.msra.mxu0 %v860
      %881 = vmatprep.subr.bf16.mxu0 0
      %882 = vmatpush1.bf16.msra.mxu0 %v861
      %883 = vmatprep.subr.bf16.mxu0 0
      %884 = vmatpush1.bf16.msra.mxu0 %v862
      %885 = vmatprep.subr.bf16.mxu0 0
      %886 = vmatpush1.bf16.msra.mxu0 %v863
      %887 = vmatprep.subr.bf16.mxu0 0
      %888 = vmatpush1.bf16.msra.mxu0 %v864
      %889 = vmatprep.subr.bf16.mxu0 0
      %890 = vmatpush1.bf16.msra.mxu0 0
      %891 = vmatprep.subr.bf16.mxu0 0
      %892 = vmatpush1.bf16.msra.mxu0 0
      %893 = vmatprep.subr.bf16.mxu0 0
      %894 = vmatpush1.bf16.msra.mxu0 0
      %895 = vmatprep.subr.bf16.mxu0 0
      %896 = vmatpush1.bf16.msra.mxu0 0
      %897 = vmatprep.subr.bf16.mxu0 0
      %898 = vmatpush1.bf16.msra.mxu0 0
      %899 = vmatprep.subr.bf16.mxu0 0
      %900 = vmatpush1.bf16.msra.mxu0 0
      %901 = vmatprep.subr.bf16.mxu0 0
      %902 = vmatpush1.bf16.msra.mxu0 0
      %903 = vmatprep.subr.bf16.mxu0 0
      %904 = vmatpush1.bf16.msra.mxu0 0
      %905 = vmatprep.mubr.bf16.mxu0 0
      %906 = vmatmul.mubr.bf16.gmra.mrb[0].mxu0 %v395
      %v907 = vpop.f32.mrb[0].mxu0
      %v908 = vadd.f32 0.0, %v907
      %v909 = vpop.f32.mrb[0].mxu0
      %v910 = vpop.f32.mrb[0].mxu0
      %v911 = vadd.f32 0.0, %v910
      %v912 = vpop.f32.mrb[0].mxu0
      %913 = vmatprep.mubr.bf16.mxu0 0
      %914 = vmatmul.mubr.bf16.gmra.mrb[0].mxu0 %v396
      %v915 = vpop.f32.mrb[0].mxu0
      %v916 = vadd.f32 0.0, %v915
      %v917 = vpop.f32.mrb[0].mxu0
      %v918 = vpop.f32.mrb[0].mxu0
      %v919 = vadd.f32 0.0, %v918
      %v920 = vpop.f32.mrb[0].mxu0
      %921 = vmatprep.mubr.bf16.mxu0 0
      %922 = vmatmul.mubr.bf16.gmra.mrb[0].mxu0 %v397
      %v923 = vpop.f32.mrb[0].mxu0
      %v924 = vadd.f32 0.0, %v923
      %v925 = vpop.f32.mrb[0].mxu0
      %v926 = vpop.f32.mrb[0].mxu0
      %v927 = vadd.f32 0.0, %v926
      %v928 = vpop.f32.mrb[0].mxu0
      %929 = vmatprep.mubr.bf16.mxu0 0
      %930 = vmatmul.mubr.bf16.gmra.mrb[0].mxu0 %v398
      %v931 = vpop.f32.mrb[0].mxu0
      %v932 = vadd.f32 0.0, %v931
      %v933 = vpop.f32.mrb[0].mxu0
      %v934 = vpop.f32.mrb[0].mxu0
      %v935 = vadd.f32 0.0, %v934
      %v936 = vpop.f32.mrb[0].mxu0
      %937 = vmatprep.mubr.bf16.mxu0 0
      %938 = vmatmul.mubr.bf16.gmra.mrb[0].mxu0 %v399
      %v939 = vpop.f32.mrb[0].mxu0
      %v940 = vadd.f32 0.0, %v939
      %v941 = vpop.f32.mrb[0].mxu0
      %v942 = vpop.f32.mrb[0].mxu0
      %v943 = vadd.f32 0.0, %v942
      %v944 = vpop.f32.mrb[0].mxu0
      %945 = vmatprep.mubr.bf16.mxu0 0
      %946 = vmatmul.mubr.bf16.gmra.mrb[0].mxu0 %v400
      %v947 = vpop.f32.mrb[0].mxu0
      %v948 = vadd.f32 0.0, %v947
      %v949 = vpop.f32.mrb[0].mxu0
      %v950 = vpop.f32.mrb[0].mxu0
      %v951 = vadd.f32 0.0, %v950
      %v952 = vpop.f32.mrb[0].mxu0
      %953 = vmatprep.mubr.bf16.mxu0 0
      %954 = vmatmul.mubr.bf16.gmra.mrb[0].mxu0 %v401
      %v955 = vpop.f32.mrb[0].mxu0
      %v956 = vadd.f32 0.0, %v955
      %v957 = vpop.f32.mrb[0].mxu0
      %v958 = vpop.f32.mrb[0].mxu0
      %v959 = vadd.f32 0.0, %v958
      %v960 = vpop.f32.mrb[0].mxu0
      %961 = vmatprep.mubr.bf16.mxu0 0
      %962 = vmatmul.mubr.bf16.gmra.mrb[0].mxu0 %v402
      %v963 = vpop.f32.mrb[0].mxu0
      %v964 = vadd.f32 0.0, %v963
      %v965 = vpop.f32.mrb[0].mxu0
      %v966 = vpop.f32.mrb[0].mxu0
      %v967 = vadd.f32 0.0, %v966
      %v968 = vpop.f32.mrb[0].mxu0
      %969 = vmatprep.mubr.bf16.mxu0 0
      %970 = vmatmul.mubr.bf16.gmra.mrb[0].mxu0 %v403
      %v971 = vpop.f32.mrb[0].mxu0
      %v972 = vadd.f32 0.0, %v971
      %v973 = vpop.f32.mrb[0].mxu0
      %v974 = vpop.f32.mrb[0].mxu0
      %v975 = vadd.f32 0.0, %v974
      %v976 = vpop.f32.mrb[0].mxu0
      %977 = vmatprep.mubr.bf16.mxu0 0
      %978 = vmatmul.mubr.bf16.gmra.mrb[0].mxu0 %v404
      %v979 = vpop.f32.mrb[0].mxu0
      %v980 = vadd.f32 0.0, %v979
      %v981 = vpop.f32.mrb[0].mxu0
      %v982 = vpop.f32.mrb[0].mxu0
      %v983 = vadd.f32 0.0, %v982
      %v984 = vpop.f32.mrb[0].mxu0
      %985 = vmatprep.mubr.bf16.mxu0 0
      %986 = vmatmul.mubr.bf16.gmra.mrb[0].mxu0 %v405
      %v987 = vpop.f32.mrb[0].mxu0
      %v988 = vadd.f32 0.0, %v987
      %v989 = vpop.f32.mrb[0].mxu0
      %v990 = vpop.f32.mrb[0].mxu0
      %v991 = vadd.f32 0.0, %v990
      %v992 = vpop.f32.mrb[0].mxu0
      %993 = vmatprep.mubr.bf16.mxu0 0
      %994 = vmatmul.mubr.bf16.gmra.mrb[0].mxu0 %v406
      %v995 = vpop.f32.mrb[0].mxu0
      %v996 = vadd.f32 0.0, %v995
      %v997 = vpop.f32.mrb[0].mxu0
      %v998 = vpop.f32.mrb[0].mxu0
      %v999 = vadd.f32 0.0, %v998
      %v1000 = vpop.f32.mrb[0].mxu0
      %1001 = vdwg.mxu0
      %v1002 = vrot.slane %v908, 2
      %v1003 = vrot.slane %v911, 2
      %v1004 = vrot.slane %v916, 2
      %v1005 = vrot.slane %v919, 2
      %v1006 = vrot.slane %v924, 2
      %v1007 = vrot.slane %v927, 2
      %v1008 = vrot.slane %v932, 2
      %v1009 = vrot.slane %v935, 2
      %v1010 = vrot.slane %v940, 2
      %v1011 = vrot.slane %v943, 2
      %v1012 = vrot.slane %v948, 2
      %v1013 = vrot.slane %v951, 2
      %v1014 = vrot.slane %v956, 2
      %v1015 = vrot.slane %v959, 2
      %v1016 = vrot.slane %v964, 2
      %v1017 = vrot.slane %v967, 2
      %v1018 = vrot.slane %v972, 2
      %v1019 = vrot.slane %v975, 2
      %v1020 = vrot.slane %v980, 2
      %v1021 = vrot.slane %v983, 2
      %v1022 = vrot.slane %v988, 2
      %v1023 = vrot.slane %v991, 2
      %v1024 = vrot.slane %v996, 2
      %v1025 = vrot.slane %v999, 2
      %vm1026 = vcmp.lt.s32.totalorder %v621, 6
      %v1027 = vsel %vm1026, %v1024, %v1025
      %v1028 = vsel %vm1026, %v1023, %v1024
      %v1029 = vsel %vm1026, %v1021, %v1022
      %v1030 = vsel %vm1026, %v1020, %v1021
      %v1031 = vsel %vm1026, %v1018, %v1019
      %v1032 = vsel %vm1026, %v1017, %v1018
      %v1033 = vsel %vm1026, %v1015, %v1016
      %v1034 = vsel %vm1026, %v1014, %v1015
      %v1035 = vsel %vm1026, %v1012, %v1013
      %v1036 = vsel %vm1026, %v1011, %v1012
      %v1037 = vsel %vm1026, %v1009, %v1010
      %v1038 = vsel %vm1026, %v1008, %v1009
      %v1039 = vsel %vm1026, %v1006, %v1007
      %v1040 = vsel %vm1026, %v1005, %v1006
      %v1041 = vsel %vm1026, %v1003, %v1004
      %v1042 = vsel %vm1026, %v1002, %v1003
      %v1043 = vadd.f32 %v722, %v1042
      %v1044 = vadd.f32 %v725, %v1041
      %v1045 = vadd.f32 %v732, %v1040
      %v1046 = vadd.f32 %v737, %v1039
      %v1047 = vadd.f32 %v744, %v1038
      %v1048 = vadd.f32 %v747, %v1037
      %v1049 = vadd.f32 %v754, %v1036
      %v1050 = vadd.f32 %v759, %v1035
      %v1051 = vadd.f32 %v766, %v1034
      %v1052 = vadd.f32 %v769, %v1033
      %v1053 = vadd.f32 %v776, %v1032
      %v1054 = vadd.f32 %v781, %v1031
      %v1055 = vadd.f32 %v788, %v1030
      %v1056 = vadd.f32 %v791, %v1029
      %v1057 = vadd.f32 %v798, %v1028
      %v1058 = vadd.f32 %v803, %v1027
      %s1059 = sadd.s32 %s284, 1
      %s1060 = smul.u32 %s1059, 24
      %s1061 = sshra.s32 %s1060, 3
      %s1062 = sand.u32 %s1060, 7
      %s1063 = smul.addr %s1061, 4
      %s1064 = scalar_lea.vmem %s258, %s1063
      %v1065 = vld [vmem:[%s1064] sm:$0xf]
      %v1066 = vld [vmem:[%s1064 + $0x4] sm:$0xf]
      %v1067 = vld [vmem:[%s1064 + $0x8] sm:$0xf]
      %v1068 = vld [vmem:[%s1064 + $0xc] sm:$0xf]
      %v1069 = vld [vmem:[%s1064 + $0x10] sm:$0xf]
      %v1070 = vld [vmem:[%s1064 + $0x14] sm:$0xf]
      %v1071 = vld [vmem:[%s1064 + $0x18] sm:$0xf]
      %v1072 = vld [vmem:[%s1064 + $0x1c] sm:$0xf]
      %v1073 = vld [vmem:[%s1064 + $0x20] sm:$0xf]
      %v1074 = vld [vmem:[%s1064 + $0x24] sm:$0xf]
      %v1075 = vld [vmem:[%s1064 + $0x28] sm:$0xf]
      %v1076 = vld [vmem:[%s1064 + $0x2c] sm:$0xf]
      %v1077 = vld [vmem:[%s1064 + $0x30] sm:$0xf]
      %v1078 = vld [vmem:[%s1064 + $0x34] sm:$0xf]
      %v1079 = vld [vmem:[%s1064 + $0x38] sm:$0xf]
      %v1080 = vld [vmem:[%s1064 + $0x3c] sm:$0xf]
      %v1081 = vld [vmem:[%s1064 + $0x40] sm:$0xf]
      %v1082 = vld [vmem:[%s1064 + $0x44] sm:$0xf]
      %v1083 = vld [vmem:[%s1064 + $0x48] sm:$0xf]
      %v1084 = vld [vmem:[%s1064 + $0x4c] sm:$0xf]
      %v1085 = vld [vmem:[%s1064 + $0x50] sm:$0xf]
      %v1086 = vld [vmem:[%s1064 + $0x54] sm:$0xf]
      %v1087 = vld [vmem:[%s1064 + $0x58] sm:$0xf]
      %v1088 = vld [vmem:[%s1064 + $0x5c] sm:$0xf]
      %s1089 = scalar_lea.vmem %s262, 192
      %v1090 = vld [vmem:[%s1089] sm:$0xf]
      %v1091 = vld [vmem:[%s1089 + $0x4] sm:$0xf]
      %v1092 = vld [vmem:[%s1089 + $0x8] sm:$0xf]
      %v1093 = vld [vmem:[%s1089 + $0xc] sm:$0xf]
      %v1094 = vld [vmem:[%s1089 + $0x10] sm:$0xf]
      %v1095 = vld [vmem:[%s1089 + $0x14] sm:$0xf]
      %v1096 = vld [vmem:[%s1089 + $0x18] sm:$0xf]
      %v1097 = vld [vmem:[%s1089 + $0x1c] sm:$0xf]
      %v1098 = vld [vmem:[%s1089 + $0x20] sm:$0xf]
      %v1099 = vld [vmem:[%s1089 + $0x24] sm:$0xf]
      %v1100 = vld [vmem:[%s1089 + $0x28] sm:$0xf]
      %v1101 = vld [vmem:[%s1089 + $0x2c] sm:$0xf]
      %v1102 = vld [vmem:[%s1089 + $0x30] sm:$0xf]
      %v1103 = vld [vmem:[%s1089 + $0x34] sm:$0xf]
      %v1104 = vld [vmem:[%s1089 + $0x38] sm:$0xf]
      %v1105 = vld [vmem:[%s1089 + $0x3c] sm:$0xf]
      %v1130 = vunpack.c.l.b16 %v1065
      %v1131 = vunpack.c.l.b16 %v1066
      %v1132 = vunpack.c.l.b16 %v1067
      %v1133 = vunpack.c.l.b16 %v1068
      %v1134 = vunpack.c.l.b16 %v1069
      %v1135 = vunpack.c.l.b16 %v1070
      %v1136 = vunpack.c.l.b16 %v1071
      %v1137 = vunpack.c.l.b16 %v1072
      %v1138 = vunpack.c.l.b16 %v1073
      %v1139 = vunpack.c.l.b16 %v1074
      %v1140 = vunpack.c.l.b16 %v1075
      %v1141 = vunpack.c.l.b16 %v1076
      %v1142 = vunpack.c.l.b16 %v1077
      %v1143 = vunpack.c.l.b16 %v1078
      %v1144 = vunpack.c.l.b16 %v1079
      %v1145 = vunpack.c.l.b16 %v1080
      %v1146 = vunpack.c.l.b16 %v1081
      %v1147 = vunpack.c.l.b16 %v1082
      %v1148 = vunpack.c.l.b16 %v1083
      %v1149 = vunpack.c.l.b16 %v1084
      %v1150 = vunpack.c.l.b16 %v1085
      %v1151 = vunpack.c.l.b16 %v1086
      %v1152 = vunpack.c.l.b16 %v1087
      %v1153 = vunpack.c.l.b16 %v1088
      %v1154 = vpack.c.b16 %v1131, %v1130
      %v1155 = vpack.c.b16 %v1133, %v1132
      %v1156 = vpack.c.b16 %v1135, %v1134
      %v1157 = vpack.c.b16 %v1137, %v1136
      %v1158 = vpack.c.b16 %v1139, %v1138
      %v1159 = vpack.c.b16 %v1141, %v1140
      %v1160 = vpack.c.b16 %v1143, %v1142
      %v1161 = vpack.c.b16 %v1145, %v1144
      %v1162 = vpack.c.b16 %v1147, %v1146
      %v1163 = vpack.c.b16 %v1149, %v1148
      %v1164 = vpack.c.b16 %v1151, %v1150
      %v1165 = vpack.c.b16 %v1153, %v1152
      %v1194 = vunpack.c.l.b16 %v1090
      %v1195 = vunpack.c.l.b16 %v1091
      %v1196 = vunpack.c.l.b16 %v1092
      %v1197 = vunpack.c.l.b16 %v1093
      %v1198 = vunpack.c.l.b16 %v1094
      %v1199 = vunpack.c.l.b16 %v1095
      %v1200 = vunpack.c.l.b16 %v1096
      %v1201 = vunpack.c.l.b16 %v1097
      %v1202 = vunpack.c.l.b16 %v1098
      %v1203 = vunpack.c.l.b16 %v1099
      %v1204 = vunpack.c.l.b16 %v1100
      %v1205 = vunpack.c.l.b16 %v1101
      %v1206 = vunpack.c.l.b16 %v1102
      %v1207 = vunpack.c.l.b16 %v1103
      %v1208 = vunpack.c.l.b16 %v1104
      %v1209 = vunpack.c.l.b16 %v1105
      %v1210 = vpack.c.b16 %v1195, %v1194
      %v1211 = vpack.c.b16 %v1197, %v1196
      %v1212 = vpack.c.b16 %v1199, %v1198
      %v1213 = vpack.c.b16 %v1201, %v1200
      %v1214 = vpack.c.b16 %v1203, %v1202
      %v1215 = vpack.c.b16 %v1205, %v1204
      %v1216 = vpack.c.b16 %v1207, %v1206
      %v1217 = vpack.c.b16 %v1209, %v1208
      %1226 = vmatprep.subr.bf16.mxu0 0
      %1227 = vmatpush1.bf16.msra.mxu0 %v1210
      %1228 = vmatprep.subr.bf16.mxu0 0
      %1229 = vmatpush1.bf16.msra.mxu0 %v1211
      %1230 = vmatprep.subr.bf16.mxu0 0
      %1231 = vmatpush1.bf16.msra.mxu0 %v1212
      %1232 = vmatprep.subr.bf16.mxu0 0
      %1233 = vmatpush1.bf16.msra.mxu0 %v1213
      %1234 = vmatprep.subr.bf16.mxu0 0
      %1235 = vmatpush1.bf16.msra.mxu0 %v1214
      %1236 = vmatprep.subr.bf16.mxu0 0
      %1237 = vmatpush1.bf16.msra.mxu0 %v1215
      %1238 = vmatprep.subr.bf16.mxu0 0
      %1239 = vmatpush1.bf16.msra.mxu0 %v1216
      %1240 = vmatprep.subr.bf16.mxu0 0
      %1241 = vmatpush1.bf16.msra.mxu0 %v1217
      %1242 = vmatprep.subr.bf16.mxu0 0
      %1243 = vmatpush1.bf16.msra.mxu0 0
      %1244 = vmatprep.subr.bf16.mxu0 0
      %1245 = vmatpush1.bf16.msra.mxu0 0
      %1246 = vmatprep.subr.bf16.mxu0 0
      %1247 = vmatpush1.bf16.msra.mxu0 0
      %1248 = vmatprep.subr.bf16.mxu0 0
      %1249 = vmatpush1.bf16.msra.mxu0 0
      %1250 = vmatprep.subr.bf16.mxu0 0
      %1251 = vmatpush1.bf16.msra.mxu0 0
      %1252 = vmatprep.subr.bf16.mxu0 0
      %1253 = vmatpush1.bf16.msra.mxu0 0
      %1254 = vmatprep.subr.bf16.mxu0 0
      %1255 = vmatpush1.bf16.msra.mxu0 0
      %1256 = vmatprep.subr.bf16.mxu0 0
      %1257 = vmatpush1.bf16.msra.mxu0 0
      %1258 = vmatprep.mubr.bf16.mxu0 0
      %1259 = vmatmul.mubr.bf16.gmra.mrb[0].mxu0 %v1154
      %v1260 = vpop.f32.mrb[0].mxu0
      %v1261 = vadd.f32 0.0, %v1260
      %v1262 = vpop.f32.mrb[0].mxu0
      %v1263 = vpop.f32.mrb[0].mxu0
      %v1264 = vadd.f32 0.0, %v1263
      %v1265 = vpop.f32.mrb[0].mxu0
      %1266 = vmatprep.mubr.bf16.mxu0 0
      %1267 = vmatmul.mubr.bf16.gmra.mrb[0].mxu0 %v1155
      %v1268 = vpop.f32.mrb[0].mxu0
      %v1269 = vpop.f32.mrb[0].mxu0
      %v1270 = vpop.f32.mrb[0].mxu0
      %v1271 = vadd.f32 0.0, %v1270
      %v1272 = vpop.f32.mrb[0].mxu0
      %1273 = vmatprep.mubr.bf16.mxu0 0
      %1274 = vmatmul.mubr.bf16.gmra.mrb[0].mxu0 %v1156
      %v1275 = vpop.f32.mrb[0].mxu0
      %v1276 = vadd.f32 0.0, %v1275
      %v1277 = vpop.f32.mrb[0].mxu0
      %v1278 = vpop.f32.mrb[0].mxu0
      %v1279 = vpop.f32.mrb[0].mxu0
      %1280 = vmatprep.mubr.bf16.mxu0 0
      %1281 = vmatmul.mubr.bf16.gmra.mrb[0].mxu0 %v1157
      %v1282 = vpop.f32.mrb[0].mxu0
      %v1283 = vadd.f32 0.0, %v1282
      %v1284 = vpop.f32.mrb[0].mxu0
      %v1285 = vpop.f32.mrb[0].mxu0
      %v1286 = vadd.f32 0.0, %v1285
      %v1287 = vpop.f32.mrb[0].mxu0
      %1288 = vmatprep.mubr.bf16.mxu0 0
      %1289 = vmatmul.mubr.bf16.gmra.mrb[0].mxu0 %v1158
      %v1290 = vpop.f32.mrb[0].mxu0
      %v1291 = vpop.f32.mrb[0].mxu0
      %v1292 = vpop.f32.mrb[0].mxu0
      %v1293 = vadd.f32 0.0, %v1292
      %v1294 = vpop.f32.mrb[0].mxu0
      %1295 = vmatprep.mubr.bf16.mxu0 0
      %1296 = vmatmul.mubr.bf16.gmra.mrb[0].mxu0 %v1159
      %v1297 = vpop.f32.mrb[0].mxu0
      %v1298 = vadd.f32 0.0, %v1297
      %v1299 = vpop.f32.mrb[0].mxu0
      %v1300 = vpop.f32.mrb[0].mxu0
      %v1301 = vpop.f32.mrb[0].mxu0
      %1302 = vmatprep.mubr.bf16.mxu0 0
      %1303 = vmatmul.mubr.bf16.gmra.mrb[0].mxu0 %v1160
      %v1304 = vpop.f32.mrb[0].mxu0
      %v1305 = vadd.f32 0.0, %v1304
      %v1306 = vpop.f32.mrb[0].mxu0
      %v1307 = vpop.f32.mrb[0].mxu0
      %v1308 = vadd.f32 0.0, %v1307
      %v1309 = vpop.f32.mrb[0].mxu0
      %1310 = vmatprep.mubr.bf16.mxu0 0
      %1311 = vmatmul.mubr.bf16.gmra.mrb[0].mxu0 %v1161
      %v1312 = vpop.f32.mrb[0].mxu0
      %v1313 = vpop.f32.mrb[0].mxu0
      %v1314 = vpop.f32.mrb[0].mxu0
      %v1315 = vadd.f32 0.0, %v1314
      %v1316 = vpop.f32.mrb[0].mxu0
      %1317 = vmatprep.mubr.bf16.mxu0 0
      %1318 = vmatmul.mubr.bf16.gmra.mrb[0].mxu0 %v1162
      %v1319 = vpop.f32.mrb[0].mxu0
      %v1320 = vadd.f32 0.0, %v1319
      %v1321 = vpop.f32.mrb[0].mxu0
      %v1322 = vpop.f32.mrb[0].mxu0
      %v1323 = vpop.f32.mrb[0].mxu0
      %1324 = vmatprep.mubr.bf16.mxu0 0
      %1325 = vmatmul.mubr.bf16.gmra.mrb[0].mxu0 %v1163
      %v1326 = vpop.f32.mrb[0].mxu0
      %v1327 = vadd.f32 0.0, %v1326
      %v1328 = vpop.f32.mrb[0].mxu0
      %v1329 = vpop.f32.mrb[0].mxu0
      %v1330 = vadd.f32 0.0, %v1329
      %v1331 = vpop.f32.mrb[0].mxu0
      %1332 = vmatprep.mubr.bf16.mxu0 0
      %1333 = vmatmul.mubr.bf16.gmra.mrb[0].mxu0 %v1164
      %v1334 = vpop.f32.mrb[0].mxu0
      %v1335 = vpop.f32.mrb[0].mxu0
      %v1336 = vpop.f32.mrb[0].mxu0
      %v1337 = vadd.f32 0.0, %v1336
      %v1338 = vpop.f32.mrb[0].mxu0
      %1339 = vmatprep.mubr.bf16.mxu0 0
      %1340 = vmatmul.mubr.bf16.gmra.mrb[0].mxu0 %v1165
      %v1341 = vpop.f32.mrb[0].mxu0
      %v1342 = vadd.f32 0.0, %v1341
      %v1343 = vpop.f32.mrb[0].mxu0
      %v1344 = vpop.f32.mrb[0].mxu0
      %v1345 = vpop.f32.mrb[0].mxu0
      %1346 = vdwg.mxu0
      %v1347 = vadd.f32 %v1043, %v1261
      %v1348 = vadd.f32 %v1044, %v1264
      %v1349 = vadd.f32 %v1045, %v1271
      %v1350 = vadd.f32 %v1046, %v1276
      %v1351 = vadd.f32 %v1047, %v1283
      %v1352 = vadd.f32 %v1048, %v1286
      %v1353 = vadd.f32 %v1049, %v1293
      %v1354 = vadd.f32 %v1050, %v1298
      %v1355 = vadd.f32 %v1051, %v1305
      %v1356 = vadd.f32 %v1052, %v1308
      %v1357 = vadd.f32 %v1053, %v1315
      %v1358 = vadd.f32 %v1054, %v1320
      %v1359 = vadd.f32 %v1055, %v1327
      %v1360 = vadd.f32 %v1056, %v1330
      %v1361 = vadd.f32 %v1057, %v1337
      %v1362 = vadd.f32 %v1058, %v1342
      %s1363 = scalar_lea.vmem %s262, 256
      %v1364 = vld [vmem:[%s1363] sm:$0xf]
      %v1365 = vld [vmem:[%s1363 + $0x4] sm:$0xf]
      %v1366 = vld [vmem:[%s1363 + $0x8] sm:$0xf]
      %v1367 = vld [vmem:[%s1363 + $0xc] sm:$0xf]
      %v1368 = vld [vmem:[%s1363 + $0x10] sm:$0xf]
      %v1369 = vld [vmem:[%s1363 + $0x14] sm:$0xf]
      %v1370 = vld [vmem:[%s1363 + $0x18] sm:$0xf]
      %v1371 = vld [vmem:[%s1363 + $0x1c] sm:$0xf]
      %v1372 = vld [vmem:[%s1363 + $0x20] sm:$0xf]
      %v1373 = vld [vmem:[%s1363 + $0x24] sm:$0xf]
      %v1374 = vld [vmem:[%s1363 + $0x28] sm:$0xf]
      %v1375 = vld [vmem:[%s1363 + $0x2c] sm:$0xf]
      %v1376 = vld [vmem:[%s1363 + $0x30] sm:$0xf]
      %v1377 = vld [vmem:[%s1363 + $0x34] sm:$0xf]
      %v1378 = vld [vmem:[%s1363 + $0x38] sm:$0xf]
      %v1379 = vld [vmem:[%s1363 + $0x3c] sm:$0xf]
      %v1396 = vunpack.c.l.b16 %v1364
      %v1397 = vunpack.c.l.b16 %v1365
      %v1398 = vunpack.c.l.b16 %v1366
      %v1399 = vunpack.c.l.b16 %v1367
      %v1400 = vunpack.c.l.b16 %v1368
      %v1401 = vunpack.c.l.b16 %v1369
      %v1402 = vunpack.c.l.b16 %v1370
      %v1403 = vunpack.c.l.b16 %v1371
      %v1404 = vunpack.c.l.b16 %v1372
      %v1405 = vunpack.c.l.b16 %v1373
      %v1406 = vunpack.c.l.b16 %v1374
      %v1407 = vunpack.c.l.b16 %v1375
      %v1408 = vunpack.c.l.b16 %v1376
      %v1409 = vunpack.c.l.b16 %v1377
      %v1410 = vunpack.c.l.b16 %v1378
      %v1411 = vunpack.c.l.b16 %v1379
      %v1412 = vpack.c.b16 %v1397, %v1396
      %v1413 = vpack.c.b16 %v1399, %v1398
      %v1414 = vpack.c.b16 %v1401, %v1400
      %v1415 = vpack.c.b16 %v1403, %v1402
      %v1416 = vpack.c.b16 %v1405, %v1404
      %v1417 = vpack.c.b16 %v1407, %v1406
      %v1418 = vpack.c.b16 %v1409, %v1408
      %v1419 = vpack.c.b16 %v1411, %v1410
      %1428 = vmatprep.subr.bf16.mxu0 0
      %1429 = vmatpush1.bf16.msra.mxu0 %v1412
      %1430 = vmatprep.subr.bf16.mxu0 0
      %1431 = vmatpush1.bf16.msra.mxu0 %v1413
      %1432 = vmatprep.subr.bf16.mxu0 0
      %1433 = vmatpush1.bf16.msra.mxu0 %v1414
      %1434 = vmatprep.subr.bf16.mxu0 0
      %1435 = vmatpush1.bf16.msra.mxu0 %v1415
      %1436 = vmatprep.subr.bf16.mxu0 0
      %1437 = vmatpush1.bf16.msra.mxu0 %v1416
      %1438 = vmatprep.subr.bf16.mxu0 0
      %1439 = vmatpush1.bf16.msra.mxu0 %v1417
      %1440 = vmatprep.subr.bf16.mxu0 0
      %1441 = vmatpush1.bf16.msra.mxu0 %v1418
      %1442 = vmatprep.subr.bf16.mxu0 0
      %1443 = vmatpush1.bf16.msra.mxu0 %v1419
      %1444 = vmatprep.subr.bf16.mxu0 0
      %1445 = vmatpush1.bf16.msra.mxu0 0
      %1446 = vmatprep.subr.bf16.mxu0 0
      %1447 = vmatpush1.bf16.msra.mxu0 0
      %1448 = vmatprep.subr.bf16.mxu0 0
      %1449 = vmatpush1.bf16.msra.mxu0 0
      %1450 = vmatprep.subr.bf16.mxu0 0
      %1451 = vmatpush1.bf16.msra.mxu0 0
      %1452 = vmatprep.subr.bf16.mxu0 0
      %1453 = vmatpush1.bf16.msra.mxu0 0
      %1454 = vmatprep.subr.bf16.mxu0 0
      %1455 = vmatpush1.bf16.msra.mxu0 0
      %1456 = vmatprep.subr.bf16.mxu0 0
      %1457 = vmatpush1.bf16.msra.mxu0 0
      %1458 = vmatprep.subr.bf16.mxu0 0
      %1459 = vmatpush1.bf16.msra.mxu0 0
      %1460 = vmatprep.mubr.bf16.mxu0 0
      %1461 = vmatmul.mubr.bf16.gmra.mrb[0].mxu0 %v1154
      %v1462 = vpop.f32.mrb[0].mxu0
      %v1463 = vadd.f32 0.0, %v1462
      %v1464 = vpop.f32.mrb[0].mxu0
      %v1465 = vpop.f32.mrb[0].mxu0
      %v1466 = vadd.f32 0.0, %v1465
      %v1467 = vpop.f32.mrb[0].mxu0
      %1468 = vmatprep.mubr.bf16.mxu0 0
      %1469 = vmatmul.mubr.bf16.gmra.mrb[0].mxu0 %v1155
      %v1470 = vpop.f32.mrb[0].mxu0
      %v1471 = vadd.f32 0.0, %v1470
      %v1472 = vpop.f32.mrb[0].mxu0
      %v1473 = vpop.f32.mrb[0].mxu0
      %v1474 = vadd.f32 0.0, %v1473
      %v1475 = vpop.f32.mrb[0].mxu0
      %1476 = vmatprep.mubr.bf16.mxu0 0
      %1477 = vmatmul.mubr.bf16.gmra.mrb[0].mxu0 %v1156
      %v1478 = vpop.f32.mrb[0].mxu0
      %v1479 = vadd.f32 0.0, %v1478
      %v1480 = vpop.f32.mrb[0].mxu0
      %v1481 = vpop.f32.mrb[0].mxu0
      %v1482 = vadd.f32 0.0, %v1481
      %v1483 = vpop.f32.mrb[0].mxu0
      %1484 = vmatprep.mubr.bf16.mxu0 0
      %1485 = vmatmul.mubr.bf16.gmra.mrb[0].mxu0 %v1157
      %v1486 = vpop.f32.mrb[0].mxu0
      %v1487 = vadd.f32 0.0, %v1486
      %v1488 = vpop.f32.mrb[0].mxu0
      %v1489 = vpop.f32.mrb[0].mxu0
      %v1490 = vadd.f32 0.0, %v1489
      %v1491 = vpop.f32.mrb[0].mxu0
      %1492 = vmatprep.mubr.bf16.mxu0 0
      %1493 = vmatmul.mubr.bf16.gmra.mrb[0].mxu0 %v1158
      %v1494 = vpop.f32.mrb[0].mxu0
      %v1495 = vadd.f32 0.0, %v1494
      %v1496 = vpop.f32.mrb[0].mxu0
      %v1497 = vpop.f32.mrb[0].mxu0
      %v1498 = vadd.f32 0.0, %v1497
      %v1499 = vpop.f32.mrb[0].mxu0
      %1500 = vmatprep.mubr.bf16.mxu0 0
      %1501 = vmatmul.mubr.bf16.gmra.mrb[0].mxu0 %v1159
      %v1502 = vpop.f32.mrb[0].mxu0
      %v1503 = vadd.f32 0.0, %v1502
      %v1504 = vpop.f32.mrb[0].mxu0
      %v1505 = vpop.f32.mrb[0].mxu0
      %v1506 = vadd.f32 0.0, %v1505
      %v1507 = vpop.f32.mrb[0].mxu0
      %1508 = vmatprep.mubr.bf16.mxu0 0
      %1509 = vmatmul.mubr.bf16.gmra.mrb[0].mxu0 %v1160
      %v1510 = vpop.f32.mrb[0].mxu0
      %v1511 = vadd.f32 0.0, %v1510
      %v1512 = vpop.f32.mrb[0].mxu0
      %v1513 = vpop.f32.mrb[0].mxu0
      %v1514 = vadd.f32 0.0, %v1513
      %v1515 = vpop.f32.mrb[0].mxu0
      %1516 = vmatprep.mubr.bf16.mxu0 0
      %1517 = vmatmul.mubr.bf16.gmra.mrb[0].mxu0 %v1161
      %v1518 = vpop.f32.mrb[0].mxu0
      %v1519 = vadd.f32 0.0, %v1518
      %v1520 = vpop.f32.mrb[0].mxu0
      %v1521 = vpop.f32.mrb[0].mxu0
      %v1522 = vadd.f32 0.0, %v1521
      %v1523 = vpop.f32.mrb[0].mxu0
      %1524 = vmatprep.mubr.bf16.mxu0 0
      %1525 = vmatmul.mubr.bf16.gmra.mrb[0].mxu0 %v1162
      %v1526 = vpop.f32.mrb[0].mxu0
      %v1527 = vadd.f32 0.0, %v1526
      %v1528 = vpop.f32.mrb[0].mxu0
      %v1529 = vpop.f32.mrb[0].mxu0
      %v1530 = vadd.f32 0.0, %v1529
      %v1531 = vpop.f32.mrb[0].mxu0
      %1532 = vmatprep.mubr.bf16.mxu0 0
      %1533 = vmatmul.mubr.bf16.gmra.mrb[0].mxu0 %v1163
      %v1534 = vpop.f32.mrb[0].mxu0
      %v1535 = vadd.f32 0.0, %v1534
      %v1536 = vpop.f32.mrb[0].mxu0
      %v1537 = vpop.f32.mrb[0].mxu0
      %v1538 = vadd.f32 0.0, %v1537
      %v1539 = vpop.f32.mrb[0].mxu0
      %1540 = vmatprep.mubr.bf16.mxu0 0
      %1541 = vmatmul.mubr.bf16.gmra.mrb[0].mxu0 %v1164
      %v1542 = vpop.f32.mrb[0].mxu0
      %v1543 = vadd.f32 0.0, %v1542
      %v1544 = vpop.f32.mrb[0].mxu0
      %v1545 = vpop.f32.mrb[0].mxu0
      %v1546 = vadd.f32 0.0, %v1545
      %v1547 = vpop.f32.mrb[0].mxu0
      %1548 = vmatprep.mubr.bf16.mxu0 0
      %1549 = vmatmul.mubr.bf16.gmra.mrb[0].mxu0 %v1165
      %v1550 = vpop.f32.mrb[0].mxu0
      %v1551 = vadd.f32 0.0, %v1550
      %v1552 = vpop.f32.mrb[0].mxu0
      %v1553 = vpop.f32.mrb[0].mxu0
      %v1554 = vadd.f32 0.0, %v1553
      %v1555 = vpop.f32.mrb[0].mxu0
      %1556 = vdwg.mxu0
      %v1557 = vrot.slane %v1463, 1
      %v1558 = vrot.slane %v1466, 1
      %v1559 = vrot.slane %v1471, 1
      %v1560 = vrot.slane %v1474, 1
      %v1561 = vrot.slane %v1479, 1
      %v1562 = vrot.slane %v1482, 1
      %v1563 = vrot.slane %v1487, 1
      %v1564 = vrot.slane %v1490, 1
      %v1565 = vrot.slane %v1495, 1
      %v1566 = vrot.slane %v1498, 1
      %v1567 = vrot.slane %v1503, 1
      %v1568 = vrot.slane %v1506, 1
      %v1569 = vrot.slane %v1511, 1
      %v1570 = vrot.slane %v1514, 1
      %v1571 = vrot.slane %v1519, 1
      %v1572 = vrot.slane %v1522, 1
      %v1573 = vrot.slane %v1527, 1
      %v1574 = vrot.slane %v1530, 1
      %v1575 = vrot.slane %v1535, 1
      %v1576 = vrot.slane %v1538, 1
      %v1577 = vrot.slane %v1543, 1
      %v1578 = vrot.slane %v1546, 1
      %v1579 = vrot.slane %v1551, 1
      %v1580 = vrot.slane %v1554, 1
      %v1581 = vsel %vm622, %v1579, %v1580
      %v1582 = vsel %vm622, %v1578, %v1579
      %v1583 = vsel %vm622, %v1576, %v1577
      %v1584 = vsel %vm622, %v1575, %v1576
      %v1585 = vsel %vm622, %v1573, %v1574
      %v1586 = vsel %vm622, %v1572, %v1573
      %v1587 = vsel %vm622, %v1570, %v1571
      %v1588 = vsel %vm622, %v1569, %v1570
      %v1589 = vsel %vm622, %v1567, %v1568
      %v1590 = vsel %vm622, %v1566, %v1567
      %v1591 = vsel %vm622, %v1564, %v1565
      %v1592 = vsel %vm622, %v1563, %v1564
      %v1593 = vsel %vm622, %v1561, %v1562
      %v1594 = vsel %vm622, %v1560, %v1561
      %v1595 = vsel %vm622, %v1558, %v1559
      %v1596 = vsel %vm622, %v1557, %v1558
      %v1597 = vadd.f32 %v1347, %v1596
      %v1598 = vadd.f32 %v1348, %v1595
      %v1599 = vadd.f32 %v1349, %v1594
      %v1600 = vadd.f32 %v1350, %v1593
      %v1601 = vadd.f32 %v1351, %v1592
      %v1602 = vadd.f32 %v1352, %v1591
      %v1603 = vadd.f32 %v1353, %v1590
      %v1604 = vadd.f32 %v1354, %v1589
      %v1605 = vadd.f32 %v1355, %v1588
      %v1606 = vadd.f32 %v1356, %v1587
      %v1607 = vadd.f32 %v1357, %v1586
      %v1608 = vadd.f32 %v1358, %v1585
      %v1609 = vadd.f32 %v1359, %v1584
      %v1610 = vadd.f32 %v1360, %v1583
      %v1611 = vadd.f32 %v1361, %v1582
      %v1612 = vadd.f32 %v1362, %v1581
      %s1613 = scalar_lea.vmem %s262, 320
      %v1614 = vld [vmem:[%s1613] sm:$0xf]
      %v1615 = vld [vmem:[%s1613 + $0x4] sm:$0xf]
      %v1616 = vld [vmem:[%s1613 + $0x8] sm:$0xf]
      %v1617 = vld [vmem:[%s1613 + $0xc] sm:$0xf]
      %v1618 = vld [vmem:[%s1613 + $0x10] sm:$0xf]
      %v1619 = vld [vmem:[%s1613 + $0x14] sm:$0xf]
      %v1620 = vld [vmem:[%s1613 + $0x18] sm:$0xf]
      %v1621 = vld [vmem:[%s1613 + $0x1c] sm:$0xf]
      %v1622 = vld [vmem:[%s1613 + $0x20] sm:$0xf]
      %v1623 = vld [vmem:[%s1613 + $0x24] sm:$0xf]
      %v1624 = vld [vmem:[%s1613 + $0x28] sm:$0xf]
      %v1625 = vld [vmem:[%s1613 + $0x2c] sm:$0xf]
      %v1626 = vld [vmem:[%s1613 + $0x30] sm:$0xf]
      %v1627 = vld [vmem:[%s1613 + $0x34] sm:$0xf]
      %v1628 = vld [vmem:[%s1613 + $0x38] sm:$0xf]
      %v1629 = vld [vmem:[%s1613 + $0x3c] sm:$0xf]
      %v1646 = vunpack.c.l.b16 %v1614
      %v1647 = vunpack.c.l.b16 %v1615
      %v1648 = vunpack.c.l.b16 %v1616
      %v1649 = vunpack.c.l.b16 %v1617
      %v1650 = vunpack.c.l.b16 %v1618
      %v1651 = vunpack.c.l.b16 %v1619
      %v1652 = vunpack.c.l.b16 %v1620
      %v1653 = vunpack.c.l.b16 %v1621
      %v1654 = vunpack.c.l.b16 %v1622
      %v1655 = vunpack.c.l.b16 %v1623
      %v1656 = vunpack.c.l.b16 %v1624
      %v1657 = vunpack.c.l.b16 %v1625
      %v1658 = vunpack.c.l.b16 %v1626
      %v1659 = vunpack.c.l.b16 %v1627
      %v1660 = vunpack.c.l.b16 %v1628
      %v1661 = vunpack.c.l.b16 %v1629
      %v1662 = vpack.c.b16 %v1647, %v1646
      %v1663 = vpack.c.b16 %v1649, %v1648
      %v1664 = vpack.c.b16 %v1651, %v1650
      %v1665 = vpack.c.b16 %v1653, %v1652
      %v1666 = vpack.c.b16 %v1655, %v1654
      %v1667 = vpack.c.b16 %v1657, %v1656
      %v1668 = vpack.c.b16 %v1659, %v1658
      %v1669 = vpack.c.b16 %v1661, %v1660
      %1678 = vmatprep.subr.bf16.mxu0 0
      %1679 = vmatpush1.bf16.msra.mxu0 %v1662
      %1680 = vmatprep.subr.bf16.mxu0 0
      %1681 = vmatpush1.bf16.msra.mxu0 %v1663
      %1682 = vmatprep.subr.bf16.mxu0 0
      %1683 = vmatpush1.bf16.msra.mxu0 %v1664
      %1684 = vmatprep.subr.bf16.mxu0 0
      %1685 = vmatpush1.bf16.msra.mxu0 %v1665
      %1686 = vmatprep.subr.bf16.mxu0 0
      %1687 = vmatpush1.bf16.msra.mxu0 %v1666
      %1688 = vmatprep.subr.bf16.mxu0 0
      %1689 = vmatpush1.bf16.msra.mxu0 %v1667
      %1690 = vmatprep.subr.bf16.mxu0 0
      %1691 = vmatpush1.bf16.msra.mxu0 %v1668
      %1692 = vmatprep.subr.bf16.mxu0 0
      %1693 = vmatpush1.bf16.msra.mxu0 %v1669
      %1694 = vmatprep.subr.bf16.mxu0 0
      %1695 = vmatpush1.bf16.msra.mxu0 0
      %1696 = vmatprep.subr.bf16.mxu0 0
      %1697 = vmatpush1.bf16.msra.mxu0 0
      %1698 = vmatprep.subr.bf16.mxu0 0
      %1699 = vmatpush1.bf16.msra.mxu0 0
      %1700 = vmatprep.subr.bf16.mxu0 0
      %1701 = vmatpush1.bf16.msra.mxu0 0
      %1702 = vmatprep.subr.bf16.mxu0 0
      %1703 = vmatpush1.bf16.msra.mxu0 0
      %1704 = vmatprep.subr.bf16.mxu0 0
      %1705 = vmatpush1.bf16.msra.mxu0 0
      %1706 = vmatprep.subr.bf16.mxu0 0
      %1707 = vmatpush1.bf16.msra.mxu0 0
      %1708 = vmatprep.subr.bf16.mxu0 0
      %1709 = vmatpush1.bf16.msra.mxu0 0
      %1710 = vmatprep.mubr.bf16.mxu0 0
      %1711 = vmatmul.mubr.bf16.gmra.mrb[0].mxu0 %v1154
      %v1712 = vpop.f32.mrb[0].mxu0
      %v1713 = vadd.f32 0.0, %v1712
      %v1714 = vpop.f32.mrb[0].mxu0
      %v1715 = vpop.f32.mrb[0].mxu0
      %v1716 = vadd.f32 0.0, %v1715
      %v1717 = vpop.f32.mrb[0].mxu0
      %1718 = vmatprep.mubr.bf16.mxu0 0
      %1719 = vmatmul.mubr.bf16.gmra.mrb[0].mxu0 %v1155
      %v1720 = vpop.f32.mrb[0].mxu0
      %v1721 = vadd.f32 0.0, %v1720
      %v1722 = vpop.f32.mrb[0].mxu0
      %v1723 = vpop.f32.mrb[0].mxu0
      %v1724 = vadd.f32 0.0, %v1723
      %v1725 = vpop.f32.mrb[0].mxu0
      %1726 = vmatprep.mubr.bf16.mxu0 0
      %1727 = vmatmul.mubr.bf16.gmra.mrb[0].mxu0 %v1156
      %v1728 = vpop.f32.mrb[0].mxu0
      %v1729 = vadd.f32 0.0, %v1728
      %v1730 = vpop.f32.mrb[0].mxu0
      %v1731 = vpop.f32.mrb[0].mxu0
      %v1732 = vadd.f32 0.0, %v1731
      %v1733 = vpop.f32.mrb[0].mxu0
      %1734 = vmatprep.mubr.bf16.mxu0 0
      %1735 = vmatmul.mubr.bf16.gmra.mrb[0].mxu0 %v1157
      %v1736 = vpop.f32.mrb[0].mxu0
      %v1737 = vadd.f32 0.0, %v1736
      %v1738 = vpop.f32.mrb[0].mxu0
      %v1739 = vpop.f32.mrb[0].mxu0
      %v1740 = vadd.f32 0.0, %v1739
      %v1741 = vpop.f32.mrb[0].mxu0
      %1742 = vmatprep.mubr.bf16.mxu0 0
      %1743 = vmatmul.mubr.bf16.gmra.mrb[0].mxu0 %v1158
      %v1744 = vpop.f32.mrb[0].mxu0
      %v1745 = vadd.f32 0.0, %v1744
      %v1746 = vpop.f32.mrb[0].mxu0
      %v1747 = vpop.f32.mrb[0].mxu0
      %v1748 = vadd.f32 0.0, %v1747
      %v1749 = vpop.f32.mrb[0].mxu0
      %1750 = vmatprep.mubr.bf16.mxu0 0
      %1751 = vmatmul.mubr.bf16.gmra.mrb[0].mxu0 %v1159
      %v1752 = vpop.f32.mrb[0].mxu0
      %v1753 = vadd.f32 0.0, %v1752
      %v1754 = vpop.f32.mrb[0].mxu0
      %v1755 = vpop.f32.mrb[0].mxu0
      %v1756 = vadd.f32 0.0, %v1755
      %v1757 = vpop.f32.mrb[0].mxu0
      %1758 = vmatprep.mubr.bf16.mxu0 0
      %1759 = vmatmul.mubr.bf16.gmra.mrb[0].mxu0 %v1160
      %v1760 = vpop.f32.mrb[0].mxu0
      %v1761 = vadd.f32 0.0, %v1760
      %v1762 = vpop.f32.mrb[0].mxu0
      %v1763 = vpop.f32.mrb[0].mxu0
      %v1764 = vadd.f32 0.0, %v1763
      %v1765 = vpop.f32.mrb[0].mxu0
      %1766 = vmatprep.mubr.bf16.mxu0 0
      %1767 = vmatmul.mubr.bf16.gmra.mrb[0].mxu0 %v1161
      %v1768 = vpop.f32.mrb[0].mxu0
      %v1769 = vadd.f32 0.0, %v1768
      %v1770 = vpop.f32.mrb[0].mxu0
      %v1771 = vpop.f32.mrb[0].mxu0
      %v1772 = vadd.f32 0.0, %v1771
      %v1773 = vpop.f32.mrb[0].mxu0
      %1774 = vmatprep.mubr.bf16.mxu0 0
      %1775 = vmatmul.mubr.bf16.gmra.mrb[0].mxu0 %v1162
      %v1776 = vpop.f32.mrb[0].mxu0
      %v1777 = vadd.f32 0.0, %v1776
      %v1778 = vpop.f32.mrb[0].mxu0
      %v1779 = vpop.f32.mrb[0].mxu0
      %v1780 = vadd.f32 0.0, %v1779
      %v1781 = vpop.f32.mrb[0].mxu0
      %1782 = vmatprep.mubr.bf16.mxu0 0
      %1783 = vmatmul.mubr.bf16.gmra.mrb[0].mxu0 %v1163
      %v1784 = vpop.f32.mrb[0].mxu0
      %v1785 = vadd.f32 0.0, %v1784
      %v1786 = vpop.f32.mrb[0].mxu0
      %v1787 = vpop.f32.mrb[0].mxu0
      %v1788 = vadd.f32 0.0, %v1787
      %v1789 = vpop.f32.mrb[0].mxu0
      %1790 = vmatprep.mubr.bf16.mxu0 0
      %1791 = vmatmul.mubr.bf16.gmra.mrb[0].mxu0 %v1164
      %v1792 = vpop.f32.mrb[0].mxu0
      %v1793 = vadd.f32 0.0, %v1792
      %v1794 = vpop.f32.mrb[0].mxu0
      %v1795 = vpop.f32.mrb[0].mxu0
      %v1796 = vadd.f32 0.0, %v1795
      %v1797 = vpop.f32.mrb[0].mxu0
      %1798 = vmatprep.mubr.bf16.mxu0 0
      %1799 = vmatmul.mubr.bf16.gmra.mrb[0].mxu0 %v1165
      %v1800 = vpop.f32.mrb[0].mxu0
      %v1801 = vadd.f32 0.0, %v1800
      %v1802 = vpop.f32.mrb[0].mxu0
      %v1803 = vpop.f32.mrb[0].mxu0
      %v1804 = vadd.f32 0.0, %v1803
      %v1805 = vpop.f32.mrb[0].mxu0
      %1806 = vdwg.mxu0
      %v1807 = vrot.slane %v1713, 2
      %v1808 = vrot.slane %v1716, 2
      %v1809 = vrot.slane %v1721, 2
      %v1810 = vrot.slane %v1724, 2
      %v1811 = vrot.slane %v1729, 2
      %v1812 = vrot.slane %v1732, 2
      %v1813 = vrot.slane %v1737, 2
      %v1814 = vrot.slane %v1740, 2
      %v1815 = vrot.slane %v1745, 2
      %v1816 = vrot.slane %v1748, 2
      %v1817 = vrot.slane %v1753, 2
      %v1818 = vrot.slane %v1756, 2
      %v1819 = vrot.slane %v1761, 2
      %v1820 = vrot.slane %v1764, 2
      %v1821 = vrot.slane %v1769, 2
      %v1822 = vrot.slane %v1772, 2
      %v1823 = vrot.slane %v1777, 2
      %v1824 = vrot.slane %v1780, 2
      %v1825 = vrot.slane %v1785, 2
      %v1826 = vrot.slane %v1788, 2
      %v1827 = vrot.slane %v1793, 2
      %v1828 = vrot.slane %v1796, 2
      %v1829 = vrot.slane %v1801, 2
      %v1830 = vrot.slane %v1804, 2
      %v1831 = vsel %vm1026, %v1829, %v1830
      %v1832 = vsel %vm1026, %v1828, %v1829
      %v1833 = vsel %vm1026, %v1826, %v1827
      %v1834 = vsel %vm1026, %v1825, %v1826
      %v1835 = vsel %vm1026, %v1823, %v1824
      %v1836 = vsel %vm1026, %v1822, %v1823
      %v1837 = vsel %vm1026, %v1820, %v1821
      %v1838 = vsel %vm1026, %v1819, %v1820
      %v1839 = vsel %vm1026, %v1817, %v1818
      %v1840 = vsel %vm1026, %v1816, %v1817
      %v1841 = vsel %vm1026, %v1814, %v1815
      %v1842 = vsel %vm1026, %v1813, %v1814
      %v1843 = vsel %vm1026, %v1811, %v1812
      %v1844 = vsel %vm1026, %v1810, %v1811
      %v1845 = vsel %vm1026, %v1808, %v1809
      %v1846 = vsel %vm1026, %v1807, %v1808
      %v1847 = vadd.f32 %v1597, %v1846
      %v1848 = vadd.f32 %v1598, %v1845
      %v1849 = vadd.f32 %v1599, %v1844
      %v1850 = vadd.f32 %v1600, %v1843
      %v1851 = vadd.f32 %v1601, %v1842
      %v1852 = vadd.f32 %v1602, %v1841
      %v1853 = vadd.f32 %v1603, %v1840
      %v1854 = vadd.f32 %v1604, %v1839
      %v1855 = vadd.f32 %v1605, %v1838
      %v1856 = vadd.f32 %v1606, %v1837
      %v1857 = vadd.f32 %v1607, %v1836
      %v1858 = vadd.f32 %v1608, %v1835
      %v1859 = vadd.f32 %v1609, %v1834
      %v1860 = vadd.f32 %v1610, %v1833
      %v1861 = vadd.f32 %v1611, %v1832
      %v1862 = vadd.f32 %v1612, %v1831
      %s1863 = sadd.s32 %s284, 2
      %s1864 = smul.u32 %s1863, 24
      %s1865 = sshra.s32 %s1864, 3
      %s1866 = sand.u32 %s1864, 7
      %s1867 = smul.addr %s1865, 4
      %s1868 = scalar_lea.vmem %s258, %s1867
      %v1869 = vld [vmem:[%s1868] sm:$0xf]
      %v1870 = vld [vmem:[%s1868 + $0x4] sm:$0xf]
      %v1871 = vld [vmem:[%s1868 + $0x8] sm:$0xf]
      %v1872 = vld [vmem:[%s1868 + $0xc] sm:$0xf]
      %v1873 = vld [vmem:[%s1868 + $0x10] sm:$0xf]
      %v1874 = vld [vmem:[%s1868 + $0x14] sm:$0xf]
      %v1875 = vld [vmem:[%s1868 + $0x18] sm:$0xf]
      %v1876 = vld [vmem:[%s1868 + $0x1c] sm:$0xf]
      %v1877 = vld [vmem:[%s1868 + $0x20] sm:$0xf]
      %v1878 = vld [vmem:[%s1868 + $0x24] sm:$0xf]
      %v1879 = vld [vmem:[%s1868 + $0x28] sm:$0xf]
      %v1880 = vld [vmem:[%s1868 + $0x2c] sm:$0xf]
      %v1881 = vld [vmem:[%s1868 + $0x30] sm:$0xf]
      %v1882 = vld [vmem:[%s1868 + $0x34] sm:$0xf]
      %v1883 = vld [vmem:[%s1868 + $0x38] sm:$0xf]
      %v1884 = vld [vmem:[%s1868 + $0x3c] sm:$0xf]
      %v1885 = vld [vmem:[%s1868 + $0x40] sm:$0xf]
      %v1886 = vld [vmem:[%s1868 + $0x44] sm:$0xf]
      %v1887 = vld [vmem:[%s1868 + $0x48] sm:$0xf]
      %v1888 = vld [vmem:[%s1868 + $0x4c] sm:$0xf]
      %v1889 = vld [vmem:[%s1868 + $0x50] sm:$0xf]
      %v1890 = vld [vmem:[%s1868 + $0x54] sm:$0xf]
      %v1891 = vld [vmem:[%s1868 + $0x58] sm:$0xf]
      %v1892 = vld [vmem:[%s1868 + $0x5c] sm:$0xf]
      %s1893 = scalar_lea.vmem %s262, 384
      %v1894 = vld [vmem:[%s1893] sm:$0xf]
      %v1895 = vld [vmem:[%s1893 + $0x4] sm:$0xf]
      %v1896 = vld [vmem:[%s1893 + $0x8] sm:$0xf]
      %v1897 = vld [vmem:[%s1893 + $0xc] sm:$0xf]
      %v1898 = vld [vmem:[%s1893 + $0x10] sm:$0xf]
      %v1899 = vld [vmem:[%s1893 + $0x14] sm:$0xf]
      %v1900 = vld [vmem:[%s1893 + $0x18] sm:$0xf]
      %v1901 = vld [vmem:[%s1893 + $0x1c] sm:$0xf]
      %v1902 = vld [vmem:[%s1893 + $0x20] sm:$0xf]
      %v1903 = vld [vmem:[%s1893 + $0x24] sm:$0xf]
      %v1904 = vld [vmem:[%s1893 + $0x28] sm:$0xf]
      %v1905 = vld [vmem:[%s1893 + $0x2c] sm:$0xf]
      %v1906 = vld [vmem:[%s1893 + $0x30] sm:$0xf]
      %v1907 = vld [vmem:[%s1893 + $0x34] sm:$0xf]
      %v1908 = vld [vmem:[%s1893 + $0x38] sm:$0xf]
      %v1909 = vld [vmem:[%s1893 + $0x3c] sm:$0xf]
      %v1934 = vunpack.c.l.b16 %v1869
      %v1935 = vunpack.c.l.b16 %v1870
      %v1936 = vunpack.c.l.b16 %v1871
      %v1937 = vunpack.c.l.b16 %v1872
      %v1938 = vunpack.c.l.b16 %v1873
      %v1939 = vunpack.c.l.b16 %v1874
      %v1940 = vunpack.c.l.b16 %v1875
      %v1941 = vunpack.c.l.b16 %v1876
      %v1942 = vunpack.c.l.b16 %v1877
      %v1943 = vunpack.c.l.b16 %v1878
      %v1944 = vunpack.c.l.b16 %v1879
      %v1945 = vunpack.c.l.b16 %v1880
      %v1946 = vunpack.c.l.b16 %v1881
      %v1947 = vunpack.c.l.b16 %v1882
      %v1948 = vunpack.c.l.b16 %v1883
      %v1949 = vunpack.c.l.b16 %v1884
      %v1950 = vunpack.c.l.b16 %v1885
      %v1951 = vunpack.c.l.b16 %v1886
      %v1952 = vunpack.c.l.b16 %v1887
      %v1953 = vunpack.c.l.b16 %v1888
      %v1954 = vunpack.c.l.b16 %v1889
      %v1955 = vunpack.c.l.b16 %v1890
      %v1956 = vunpack.c.l.b16 %v1891
      %v1957 = vunpack.c.l.b16 %v1892
      %v1958 = vpack.c.b16 %v1935, %v1934
      %v1959 = vpack.c.b16 %v1937, %v1936
      %v1960 = vpack.c.b16 %v1939, %v1938
      %v1961 = vpack.c.b16 %v1941, %v1940
      %v1962 = vpack.c.b16 %v1943, %v1942
      %v1963 = vpack.c.b16 %v1945, %v1944
      %v1964 = vpack.c.b16 %v1947, %v1946
      %v1965 = vpack.c.b16 %v1949, %v1948
      %v1966 = vpack.c.b16 %v1951, %v1950
      %v1967 = vpack.c.b16 %v1953, %v1952
      %v1968 = vpack.c.b16 %v1955, %v1954
      %v1969 = vpack.c.b16 %v1957, %v1956
      %v1998 = vunpack.c.l.b16 %v1894
      %v1999 = vunpack.c.l.b16 %v1895
      %v2000 = vunpack.c.l.b16 %v1896
      %v2001 = vunpack.c.l.b16 %v1897
      %v2002 = vunpack.c.l.b16 %v1898
      %v2003 = vunpack.c.l.b16 %v1899
      %v2004 = vunpack.c.l.b16 %v1900
      %v2005 = vunpack.c.l.b16 %v1901
      %v2006 = vunpack.c.l.b16 %v1902
      %v2007 = vunpack.c.l.b16 %v1903
      %v2008 = vunpack.c.l.b16 %v1904
      %v2009 = vunpack.c.l.b16 %v1905
      %v2010 = vunpack.c.l.b16 %v1906
      %v2011 = vunpack.c.l.b16 %v1907
      %v2012 = vunpack.c.l.b16 %v1908
      %v2013 = vunpack.c.l.b16 %v1909
      %v2014 = vpack.c.b16 %v1999, %v1998
      %v2015 = vpack.c.b16 %v2001, %v2000
      %v2016 = vpack.c.b16 %v2003, %v2002
      %v2017 = vpack.c.b16 %v2005, %v2004
      %v2018 = vpack.c.b16 %v2007, %v2006
      %v2019 = vpack.c.b16 %v2009, %v2008
      %v2020 = vpack.c.b16 %v2011, %v2010
      %v2021 = vpack.c.b16 %v2013, %v2012
      %2030 = vmatprep.subr.bf16.mxu0 0
      %2031 = vmatpush1.bf16.msra.mxu0 %v2014
      %2032 = vmatprep.subr.bf16.mxu0 0
      %2033 = vmatpush1.bf16.msra.mxu0 %v2015
      %2034 = vmatprep.subr.bf16.mxu0 0
      %2035 = vmatpush1.bf16.msra.mxu0 %v2016
      %2036 = vmatprep.subr.bf16.mxu0 0
      %2037 = vmatpush1.bf16.msra.mxu0 %v2017
      %2038 = vmatprep.subr.bf16.mxu0 0
      %2039 = vmatpush1.bf16.msra.mxu0 %v2018
      %2040 = vmatprep.subr.bf16.mxu0 0
      %2041 = vmatpush1.bf16.msra.mxu0 %v2019
      %2042 = vmatprep.subr.bf16.mxu0 0
      %2043 = vmatpush1.bf16.msra.mxu0 %v2020
      %2044 = vmatprep.subr.bf16.mxu0 0
      %2045 = vmatpush1.bf16.msra.mxu0 %v2021
      %2046 = vmatprep.subr.bf16.mxu0 0
      %2047 = vmatpush1.bf16.msra.mxu0 0
      %2048 = vmatprep.subr.bf16.mxu0 0
      %2049 = vmatpush1.bf16.msra.mxu0 0
      %2050 = vmatprep.subr.bf16.mxu0 0
      %2051 = vmatpush1.bf16.msra.mxu0 0
      %2052 = vmatprep.subr.bf16.mxu0 0
      %2053 = vmatpush1.bf16.msra.mxu0 0
      %2054 = vmatprep.subr.bf16.mxu0 0
      %2055 = vmatpush1.bf16.msra.mxu0 0
      %2056 = vmatprep.subr.bf16.mxu0 0
      %2057 = vmatpush1.bf16.msra.mxu0 0
      %2058 = vmatprep.subr.bf16.mxu0 0
      %2059 = vmatpush1.bf16.msra.mxu0 0
      %2060 = vmatprep.subr.bf16.mxu0 0
      %2061 = vmatpush1.bf16.msra.mxu0 0
      %2062 = vmatprep.mubr.bf16.mxu0 0
      %2063 = vmatmul.mubr.bf16.gmra.mrb[0].mxu0 %v1958
      %v2064 = vpop.f32.mrb[0].mxu0
      %v2065 = vadd.f32 0.0, %v2064
      %v2066 = vpop.f32.mrb[0].mxu0
      %v2067 = vpop.f32.mrb[0].mxu0
      %v2068 = vadd.f32 0.0, %v2067
      %v2069 = vpop.f32.mrb[0].mxu0
      %2070 = vmatprep.mubr.bf16.mxu0 0
      %2071 = vmatmul.mubr.bf16.gmra.mrb[0].mxu0 %v1959
      %v2072 = vpop.f32.mrb[0].mxu0
      %v2073 = vpop.f32.mrb[0].mxu0
      %v2074 = vpop.f32.mrb[0].mxu0
      %v2075 = vadd.f32 0.0, %v2074
      %v2076 = vpop.f32.mrb[0].mxu0
      %2077 = vmatprep.mubr.bf16.mxu0 0
      %2078 = vmatmul.mubr.bf16.gmra.mrb[0].mxu0 %v1960
      %v2079 = vpop.f32.mrb[0].mxu0
      %v2080 = vadd.f32 0.0, %v2079
      %v2081 = vpop.f32.mrb[0].mxu0
      %v2082 = vpop.f32.mrb[0].mxu0
      %v2083 = vpop.f32.mrb[0].mxu0
      %2084 = vmatprep.mubr.bf16.mxu0 0
      %2085 = vmatmul.mubr.bf16.gmra.mrb[0].mxu0 %v1961
      %v2086 = vpop.f32.mrb[0].mxu0
      %v2087 = vadd.f32 0.0, %v2086
      %v2088 = vpop.f32.mrb[0].mxu0
      %v2089 = vpop.f32.mrb[0].mxu0
      %v2090 = vadd.f32 0.0, %v2089
      %v2091 = vpop.f32.mrb[0].mxu0
      %2092 = vmatprep.mubr.bf16.mxu0 0
      %2093 = vmatmul.mubr.bf16.gmra.mrb[0].mxu0 %v1962
      %v2094 = vpop.f32.mrb[0].mxu0
      %v2095 = vpop.f32.mrb[0].mxu0
      %v2096 = vpop.f32.mrb[0].mxu0
      %v2097 = vadd.f32 0.0, %v2096
      %v2098 = vpop.f32.mrb[0].mxu0
      %2099 = vmatprep.mubr.bf16.mxu0 0
      %2100 = vmatmul.mubr.bf16.gmra.mrb[0].mxu0 %v1963
      %v2101 = vpop.f32.mrb[0].mxu0
      %v2102 = vadd.f32 0.0, %v2101
      %v2103 = vpop.f32.mrb[0].mxu0
      %v2104 = vpop.f32.mrb[0].mxu0
      %v2105 = vpop.f32.mrb[0].mxu0
      %2106 = vmatprep.mubr.bf16.mxu0 0
      %2107 = vmatmul.mubr.bf16.gmra.mrb[0].mxu0 %v1964
      %v2108 = vpop.f32.mrb[0].mxu0
      %v2109 = vadd.f32 0.0, %v2108
      %v2110 = vpop.f32.mrb[0].mxu0
      %v2111 = vpop.f32.mrb[0].mxu0
      %v2112 = vadd.f32 0.0, %v2111
      %v2113 = vpop.f32.mrb[0].mxu0
      %2114 = vmatprep.mubr.bf16.mxu0 0
      %2115 = vmatmul.mubr.bf16.gmra.mrb[0].mxu0 %v1965
      %v2116 = vpop.f32.mrb[0].mxu0
      %v2117 = vpop.f32.mrb[0].mxu0
      %v2118 = vpop.f32.mrb[0].mxu0
      %v2119 = vadd.f32 0.0, %v2118
      %v2120 = vpop.f32.mrb[0].mxu0
      %2121 = vmatprep.mubr.bf16.mxu0 0
      %2122 = vmatmul.mubr.bf16.gmra.mrb[0].mxu0 %v1966
      %v2123 = vpop.f32.mrb[0].mxu0
      %v2124 = vadd.f32 0.0, %v2123
      %v2125 = vpop.f32.mrb[0].mxu0
      %v2126 = vpop.f32.mrb[0].mxu0
      %v2127 = vpop.f32.mrb[0].mxu0
      %2128 = vmatprep.mubr.bf16.mxu0 0
      %2129 = vmatmul.mubr.bf16.gmra.mrb[0].mxu0 %v1967
      %v2130 = vpop.f32.mrb[0].mxu0
      %v2131 = vadd.f32 0.0, %v2130
      %v2132 = vpop.f32.mrb[0].mxu0
      %v2133 = vpop.f32.mrb[0].mxu0
      %v2134 = vadd.f32 0.0, %v2133
      %v2135 = vpop.f32.mrb[0].mxu0
      %2136 = vmatprep.mubr.bf16.mxu0 0
      %2137 = vmatmul.mubr.bf16.gmra.mrb[0].mxu0 %v1968
      %v2138 = vpop.f32.mrb[0].mxu0
      %v2139 = vpop.f32.mrb[0].mxu0
      %v2140 = vpop.f32.mrb[0].mxu0
      %v2141 = vadd.f32 0.0, %v2140
      %v2142 = vpop.f32.mrb[0].mxu0
      %2143 = vmatprep.mubr.bf16.mxu0 0
      %2144 = vmatmul.mubr.bf16.gmra.mrb[0].mxu0 %v1969
      %v2145 = vpop.f32.mrb[0].mxu0
      %v2146 = vadd.f32 0.0, %v2145
      %v2147 = vpop.f32.mrb[0].mxu0
      %v2148 = vpop.f32.mrb[0].mxu0
      %v2149 = vpop.f32.mrb[0].mxu0
      %2150 = vdwg.mxu0
      %v2151 = vadd.f32 %v1847, %v2065
      %v2152 = vadd.f32 %v1848, %v2068
      %v2153 = vadd.f32 %v1849, %v2075
      %v2154 = vadd.f32 %v1850, %v2080
      %v2155 = vadd.f32 %v1851, %v2087
      %v2156 = vadd.f32 %v1852, %v2090
      %v2157 = vadd.f32 %v1853, %v2097
      %v2158 = vadd.f32 %v1854, %v2102
      %v2159 = vadd.f32 %v1855, %v2109
      %v2160 = vadd.f32 %v1856, %v2112
      %v2161 = vadd.f32 %v1857, %v2119
      %v2162 = vadd.f32 %v1858, %v2124
      %v2163 = vadd.f32 %v1859, %v2131
      %v2164 = vadd.f32 %v1860, %v2134
      %v2165 = vadd.f32 %v1861, %v2141
      %v2166 = vadd.f32 %v1862, %v2146
      %s2167 = scalar_lea.vmem %s262, 448
      %v2168 = vld [vmem:[%s2167] sm:$0xf]
      %v2169 = vld [vmem:[%s2167 + $0x4] sm:$0xf]
      %v2170 = vld [vmem:[%s2167 + $0x8] sm:$0xf]
      %v2171 = vld [vmem:[%s2167 + $0xc] sm:$0xf]
      %v2172 = vld [vmem:[%s2167 + $0x10] sm:$0xf]
      %v2173 = vld [vmem:[%s2167 + $0x14] sm:$0xf]
      %v2174 = vld [vmem:[%s2167 + $0x18] sm:$0xf]
      %v2175 = vld [vmem:[%s2167 + $0x1c] sm:$0xf]
      %v2176 = vld [vmem:[%s2167 + $0x20] sm:$0xf]
      %v2177 = vld [vmem:[%s2167 + $0x24] sm:$0xf]
      %v2178 = vld [vmem:[%s2167 + $0x28] sm:$0xf]
      %v2179 = vld [vmem:[%s2167 + $0x2c] sm:$0xf]
      %v2180 = vld [vmem:[%s2167 + $0x30] sm:$0xf]
      %v2181 = vld [vmem:[%s2167 + $0x34] sm:$0xf]
      %v2182 = vld [vmem:[%s2167 + $0x38] sm:$0xf]
      %v2183 = vld [vmem:[%s2167 + $0x3c] sm:$0xf]
      %v2200 = vunpack.c.l.b16 %v2168
      %v2201 = vunpack.c.l.b16 %v2169
      %v2202 = vunpack.c.l.b16 %v2170
      %v2203 = vunpack.c.l.b16 %v2171
      %v2204 = vunpack.c.l.b16 %v2172
      %v2205 = vunpack.c.l.b16 %v2173
      %v2206 = vunpack.c.l.b16 %v2174
      %v2207 = vunpack.c.l.b16 %v2175
      %v2208 = vunpack.c.l.b16 %v2176
      %v2209 = vunpack.c.l.b16 %v2177
      %v2210 = vunpack.c.l.b16 %v2178
      %v2211 = vunpack.c.l.b16 %v2179
      %v2212 = vunpack.c.l.b16 %v2180
      %v2213 = vunpack.c.l.b16 %v2181
      %v2214 = vunpack.c.l.b16 %v2182
      %v2215 = vunpack.c.l.b16 %v2183
      %v2216 = vpack.c.b16 %v2201, %v2200
      %v2217 = vpack.c.b16 %v2203, %v2202
      %v2218 = vpack.c.b16 %v2205, %v2204
      %v2219 = vpack.c.b16 %v2207, %v2206
      %v2220 = vpack.c.b16 %v2209, %v2208
      %v2221 = vpack.c.b16 %v2211, %v2210
      %v2222 = vpack.c.b16 %v2213, %v2212
      %v2223 = vpack.c.b16 %v2215, %v2214
      %2232 = vmatprep.subr.bf16.mxu0 0
      %2233 = vmatpush1.bf16.msra.mxu0 %v2216
      %2234 = vmatprep.subr.bf16.mxu0 0
      %2235 = vmatpush1.bf16.msra.mxu0 %v2217
      %2236 = vmatprep.subr.bf16.mxu0 0
      %2237 = vmatpush1.bf16.msra.mxu0 %v2218
      %2238 = vmatprep.subr.bf16.mxu0 0
      %2239 = vmatpush1.bf16.msra.mxu0 %v2219
      %2240 = vmatprep.subr.bf16.mxu0 0
      %2241 = vmatpush1.bf16.msra.mxu0 %v2220
      %2242 = vmatprep.subr.bf16.mxu0 0
      %2243 = vmatpush1.bf16.msra.mxu0 %v2221
      %2244 = vmatprep.subr.bf16.mxu0 0
      %2245 = vmatpush1.bf16.msra.mxu0 %v2222
      %2246 = vmatprep.subr.bf16.mxu0 0
      %2247 = vmatpush1.bf16.msra.mxu0 %v2223
      %2248 = vmatprep.subr.bf16.mxu0 0
      %2249 = vmatpush1.bf16.msra.mxu0 0
      %2250 = vmatprep.subr.bf16.mxu0 0
      %2251 = vmatpush1.bf16.msra.mxu0 0
      %2252 = vmatprep.subr.bf16.mxu0 0
      %2253 = vmatpush1.bf16.msra.mxu0 0
      %2254 = vmatprep.subr.bf16.mxu0 0
      %2255 = vmatpush1.bf16.msra.mxu0 0
      %2256 = vmatprep.subr.bf16.mxu0 0
      %2257 = vmatpush1.bf16.msra.mxu0 0
      %2258 = vmatprep.subr.bf16.mxu0 0
      %2259 = vmatpush1.bf16.msra.mxu0 0
      %2260 = vmatprep.subr.bf16.mxu0 0
      %2261 = vmatpush1.bf16.msra.mxu0 0
      %2262 = vmatprep.subr.bf16.mxu0 0
      %2263 = vmatpush1.bf16.msra.mxu0 0
      %2264 = vmatprep.mubr.bf16.mxu0 0
      %2265 = vmatmul.mubr.bf16.gmra.mrb[0].mxu0 %v1958
      %v2266 = vpop.f32.mrb[0].mxu0
      %v2267 = vadd.f32 0.0, %v2266
      %v2268 = vpop.f32.mrb[0].mxu0
      %v2269 = vpop.f32.mrb[0].mxu0
      %v2270 = vadd.f32 0.0, %v2269
      %v2271 = vpop.f32.mrb[0].mxu0
      %2272 = vmatprep.mubr.bf16.mxu0 0
      %2273 = vmatmul.mubr.bf16.gmra.mrb[0].mxu0 %v1959
      %v2274 = vpop.f32.mrb[0].mxu0
      %v2275 = vadd.f32 0.0, %v2274
      %v2276 = vpop.f32.mrb[0].mxu0
      %v2277 = vpop.f32.mrb[0].mxu0
      %v2278 = vadd.f32 0.0, %v2277
      %v2279 = vpop.f32.mrb[0].mxu0
      %2280 = vmatprep.mubr.bf16.mxu0 0
      %2281 = vmatmul.mubr.bf16.gmra.mrb[0].mxu0 %v1960
      %v2282 = vpop.f32.mrb[0].mxu0
      %v2283 = vadd.f32 0.0, %v2282
      %v2284 = vpop.f32.mrb[0].mxu0
      %v2285 = vpop.f32.mrb[0].mxu0
      %v2286 = vadd.f32 0.0, %v2285
      %v2287 = vpop.f32.mrb[0].mxu0
      %2288 = vmatprep.mubr.bf16.mxu0 0
      %2289 = vmatmul.mubr.bf16.gmra.mrb[0].mxu0 %v1961
      %v2290 = vpop.f32.mrb[0].mxu0
      %v2291 = vadd.f32 0.0, %v2290
      %v2292 = vpop.f32.mrb[0].mxu0
      %v2293 = vpop.f32.mrb[0].mxu0
      %v2294 = vadd.f32 0.0, %v2293
      %v2295 = vpop.f32.mrb[0].mxu0
      %2296 = vmatprep.mubr.bf16.mxu0 0
      %2297 = vmatmul.mubr.bf16.gmra.mrb[0].mxu0 %v1962
      %v2298 = vpop.f32.mrb[0].mxu0
      %v2299 = vadd.f32 0.0, %v2298
      %v2300 = vpop.f32.mrb[0].mxu0
      %v2301 = vpop.f32.mrb[0].mxu0
      %v2302 = vadd.f32 0.0, %v2301
      %v2303 = vpop.f32.mrb[0].mxu0
      %2304 = vmatprep.mubr.bf16.mxu0 0
      %2305 = vmatmul.mubr.bf16.gmra.mrb[0].mxu0 %v1963
      %v2306 = vpop.f32.mrb[0].mxu0
      %v2307 = vadd.f32 0.0, %v2306
      %v2308 = vpop.f32.mrb[0].mxu0
      %v2309 = vpop.f32.mrb[0].mxu0
      %v2310 = vadd.f32 0.0, %v2309
      %v2311 = vpop.f32.mrb[0].mxu0
      %2312 = vmatprep.mubr.bf16.mxu0 0
      %2313 = vmatmul.mubr.bf16.gmra.mrb[0].mxu0 %v1964
      %v2314 = vpop.f32.mrb[0].mxu0
      %v2315 = vadd.f32 0.0, %v2314
      %v2316 = vpop.f32.mrb[0].mxu0
      %v2317 = vpop.f32.mrb[0].mxu0
      %v2318 = vadd.f32 0.0, %v2317
      %v2319 = vpop.f32.mrb[0].mxu0
      %2320 = vmatprep.mubr.bf16.mxu0 0
      %2321 = vmatmul.mubr.bf16.gmra.mrb[0].mxu0 %v1965
      %v2322 = vpop.f32.mrb[0].mxu0
      %v2323 = vadd.f32 0.0, %v2322
      %v2324 = vpop.f32.mrb[0].mxu0
      %v2325 = vpop.f32.mrb[0].mxu0
      %v2326 = vadd.f32 0.0, %v2325
      %v2327 = vpop.f32.mrb[0].mxu0
      %2328 = vmatprep.mubr.bf16.mxu0 0
      %2329 = vmatmul.mubr.bf16.gmra.mrb[0].mxu0 %v1966
      %v2330 = vpop.f32.mrb[0].mxu0
      %v2331 = vadd.f32 0.0, %v2330
      %v2332 = vpop.f32.mrb[0].mxu0
      %v2333 = vpop.f32.mrb[0].mxu0
      %v2334 = vadd.f32 0.0, %v2333
      %v2335 = vpop.f32.mrb[0].mxu0
      %2336 = vmatprep.mubr.bf16.mxu0 0
      %2337 = vmatmul.mubr.bf16.gmra.mrb[0].mxu0 %v1967
      %v2338 = vpop.f32.mrb[0].mxu0
      %v2339 = vadd.f32 0.0, %v2338
      %v2340 = vpop.f32.mrb[0].mxu0
      %v2341 = vpop.f32.mrb[0].mxu0
      %v2342 = vadd.f32 0.0, %v2341
      %v2343 = vpop.f32.mrb[0].mxu0
      %2344 = vmatprep.mubr.bf16.mxu0 0
      %2345 = vmatmul.mubr.bf16.gmra.mrb[0].mxu0 %v1968
      %v2346 = vpop.f32.mrb[0].mxu0
      %v2347 = vadd.f32 0.0, %v2346
      %v2348 = vpop.f32.mrb[0].mxu0
      %v2349 = vpop.f32.mrb[0].mxu0
      %v2350 = vadd.f32 0.0, %v2349
      %v2351 = vpop.f32.mrb[0].mxu0
      %2352 = vmatprep.mubr.bf16.mxu0 0
      %2353 = vmatmul.mubr.bf16.gmra.mrb[0].mxu0 %v1969
      %v2354 = vpop.f32.mrb[0].mxu0
      %v2355 = vadd.f32 0.0, %v2354
      %v2356 = vpop.f32.mrb[0].mxu0
      %v2357 = vpop.f32.mrb[0].mxu0
      %v2358 = vadd.f32 0.0, %v2357
      %v2359 = vpop.f32.mrb[0].mxu0
      %2360 = vdwg.mxu0
      %v2361 = vrot.slane %v2267, 1
      %v2362 = vrot.slane %v2270, 1
      %v2363 = vrot.slane %v2275, 1
      %v2364 = vrot.slane %v2278, 1
      %v2365 = vrot.slane %v2283, 1
      %v2366 = vrot.slane %v2286, 1
      %v2367 = vrot.slane %v2291, 1
      %v2368 = vrot.slane %v2294, 1
      %v2369 = vrot.slane %v2299, 1
      %v2370 = vrot.slane %v2302, 1
      %v2371 = vrot.slane %v2307, 1
      %v2372 = vrot.slane %v2310, 1
      %v2373 = vrot.slane %v2315, 1
      %v2374 = vrot.slane %v2318, 1
      %v2375 = vrot.slane %v2323, 1
      %v2376 = vrot.slane %v2326, 1
      %v2377 = vrot.slane %v2331, 1
      %v2378 = vrot.slane %v2334, 1
      %v2379 = vrot.slane %v2339, 1
      %v2380 = vrot.slane %v2342, 1
      %v2381 = vrot.slane %v2347, 1
      %v2382 = vrot.slane %v2350, 1
      %v2383 = vrot.slane %v2355, 1
      %v2384 = vrot.slane %v2358, 1
      %v2385 = vsel %vm622, %v2383, %v2384
      %v2386 = vsel %vm622, %v2382, %v2383
      %v2387 = vsel %vm622, %v2380, %v2381
      %v2388 = vsel %vm622, %v2379, %v2380
      %v2389 = vsel %vm622, %v2377, %v2378
      %v2390 = vsel %vm622, %v2376, %v2377
      %v2391 = vsel %vm622, %v2374, %v2375
      %v2392 = vsel %vm622, %v2373, %v2374
      %v2393 = vsel %vm622, %v2371, %v2372
      %v2394 = vsel %vm622, %v2370, %v2371
      %v2395 = vsel %vm622, %v2368, %v2369
      %v2396 = vsel %vm622, %v2367, %v2368
      %v2397 = vsel %vm622, %v2365, %v2366
      %v2398 = vsel %vm622, %v2364, %v2365
      %v2399 = vsel %vm622, %v2362, %v2363
      %v2400 = vsel %vm622, %v2361, %v2362
      %v2401 = vadd.f32 %v2151, %v2400
      %v2402 = vadd.f32 %v2152, %v2399
      %v2403 = vadd.f32 %v2153, %v2398
      %v2404 = vadd.f32 %v2154, %v2397
      %v2405 = vadd.f32 %v2155, %v2396
      %v2406 = vadd.f32 %v2156, %v2395
      %v2407 = vadd.f32 %v2157, %v2394
      %v2408 = vadd.f32 %v2158, %v2393
      %v2409 = vadd.f32 %v2159, %v2392
      %v2410 = vadd.f32 %v2160, %v2391
      %v2411 = vadd.f32 %v2161, %v2390
      %v2412 = vadd.f32 %v2162, %v2389
      %v2413 = vadd.f32 %v2163, %v2388
      %v2414 = vadd.f32 %v2164, %v2387
      %v2415 = vadd.f32 %v2165, %v2386
      %v2416 = vadd.f32 %v2166, %v2385
      %s2417 = scalar_lea.vmem %s262, 512
      %v2418 = vld [vmem:[%s2417] sm:$0xf]
      %v2419 = vld [vmem:[%s2417 + $0x4] sm:$0xf]
      %v2420 = vld [vmem:[%s2417 + $0x8] sm:$0xf]
      %v2421 = vld [vmem:[%s2417 + $0xc] sm:$0xf]
      %v2422 = vld [vmem:[%s2417 + $0x10] sm:$0xf]
      %v2423 = vld [vmem:[%s2417 + $0x14] sm:$0xf]
      %v2424 = vld [vmem:[%s2417 + $0x18] sm:$0xf]
      %v2425 = vld [vmem:[%s2417 + $0x1c] sm:$0xf]
      %v2426 = vld [vmem:[%s2417 + $0x20] sm:$0xf]
      %v2427 = vld [vmem:[%s2417 + $0x24] sm:$0xf]
      %v2428 = vld [vmem:[%s2417 + $0x28] sm:$0xf]
      %v2429 = vld [vmem:[%s2417 + $0x2c] sm:$0xf]
      %v2430 = vld [vmem:[%s2417 + $0x30] sm:$0xf]
      %v2431 = vld [vmem:[%s2417 + $0x34] sm:$0xf]
      %v2432 = vld [vmem:[%s2417 + $0x38] sm:$0xf]
      %v2433 = vld [vmem:[%s2417 + $0x3c] sm:$0xf]
      %v2450 = vunpack.c.l.b16 %v2418
      %v2451 = vunpack.c.l.b16 %v2419
      %v2452 = vunpack.c.l.b16 %v2420
      %v2453 = vunpack.c.l.b16 %v2421
      %v2454 = vunpack.c.l.b16 %v2422
      %v2455 = vunpack.c.l.b16 %v2423
      %v2456 = vunpack.c.l.b16 %v2424
      %v2457 = vunpack.c.l.b16 %v2425
      %v2458 = vunpack.c.l.b16 %v2426
      %v2459 = vunpack.c.l.b16 %v2427
      %v2460 = vunpack.c.l.b16 %v2428
      %v2461 = vunpack.c.l.b16 %v2429
      %v2462 = vunpack.c.l.b16 %v2430
      %v2463 = vunpack.c.l.b16 %v2431
      %v2464 = vunpack.c.l.b16 %v2432
      %v2465 = vunpack.c.l.b16 %v2433
      %v2466 = vpack.c.b16 %v2451, %v2450
      %v2467 = vpack.c.b16 %v2453, %v2452
      %v2468 = vpack.c.b16 %v2455, %v2454
      %v2469 = vpack.c.b16 %v2457, %v2456
      %v2470 = vpack.c.b16 %v2459, %v2458
      %v2471 = vpack.c.b16 %v2461, %v2460
      %v2472 = vpack.c.b16 %v2463, %v2462
      %v2473 = vpack.c.b16 %v2465, %v2464
      %2482 = vmatprep.subr.bf16.mxu0 0
      %2483 = vmatpush1.bf16.msra.mxu0 %v2466
      %2484 = vmatprep.subr.bf16.mxu0 0
      %2485 = vmatpush1.bf16.msra.mxu0 %v2467
      %2486 = vmatprep.subr.bf16.mxu0 0
      %2487 = vmatpush1.bf16.msra.mxu0 %v2468
      %2488 = vmatprep.subr.bf16.mxu0 0
      %2489 = vmatpush1.bf16.msra.mxu0 %v2469
      %2490 = vmatprep.subr.bf16.mxu0 0
      %2491 = vmatpush1.bf16.msra.mxu0 %v2470
      %2492 = vmatprep.subr.bf16.mxu0 0
      %2493 = vmatpush1.bf16.msra.mxu0 %v2471
      %2494 = vmatprep.subr.bf16.mxu0 0
      %2495 = vmatpush1.bf16.msra.mxu0 %v2472
      %2496 = vmatprep.subr.bf16.mxu0 0
      %2497 = vmatpush1.bf16.msra.mxu0 %v2473
      %2498 = vmatprep.subr.bf16.mxu0 0
      %2499 = vmatpush1.bf16.msra.mxu0 0
      %2500 = vmatprep.subr.bf16.mxu0 0
      %2501 = vmatpush1.bf16.msra.mxu0 0
      %2502 = vmatprep.subr.bf16.mxu0 0
      %2503 = vmatpush1.bf16.msra.mxu0 0
      %2504 = vmatprep.subr.bf16.mxu0 0
      %2505 = vmatpush1.bf16.msra.mxu0 0
      %2506 = vmatprep.subr.bf16.mxu0 0
      %2507 = vmatpush1.bf16.msra.mxu0 0
      %2508 = vmatprep.subr.bf16.mxu0 0
      %2509 = vmatpush1.bf16.msra.mxu0 0
      %2510 = vmatprep.subr.bf16.mxu0 0
      %2511 = vmatpush1.bf16.msra.mxu0 0
      %2512 = vmatprep.subr.bf16.mxu0 0
      %2513 = vmatpush1.bf16.msra.mxu0 0
      %2514 = vmatprep.mubr.bf16.mxu0 0
      %2515 = vmatmul.mubr.bf16.gmra.mrb[0].mxu0 %v1958
      %v2516 = vpop.f32.mrb[0].mxu0
      %v2517 = vadd.f32 0.0, %v2516
      %v2518 = vpop.f32.mrb[0].mxu0
      %v2519 = vpop.f32.mrb[0].mxu0
      %v2520 = vadd.f32 0.0, %v2519
      %v2521 = vpop.f32.mrb[0].mxu0
      %2522 = vmatprep.mubr.bf16.mxu0 0
      %2523 = vmatmul.mubr.bf16.gmra.mrb[0].mxu0 %v1959
      %v2524 = vpop.f32.mrb[0].mxu0
      %v2525 = vadd.f32 0.0, %v2524
      %v2526 = vpop.f32.mrb[0].mxu0
      %v2527 = vpop.f32.mrb[0].mxu0
      %v2528 = vadd.f32 0.0, %v2527
      %v2529 = vpop.f32.mrb[0].mxu0
      %2530 = vmatprep.mubr.bf16.mxu0 0
      %2531 = vmatmul.mubr.bf16.gmra.mrb[0].mxu0 %v1960
      %v2532 = vpop.f32.mrb[0].mxu0
      %v2533 = vadd.f32 0.0, %v2532
      %v2534 = vpop.f32.mrb[0].mxu0
      %v2535 = vpop.f32.mrb[0].mxu0
      %v2536 = vadd.f32 0.0, %v2535
      %v2537 = vpop.f32.mrb[0].mxu0
      %2538 = vmatprep.mubr.bf16.mxu0 0
      %2539 = vmatmul.mubr.bf16.gmra.mrb[0].mxu0 %v1961
      %v2540 = vpop.f32.mrb[0].mxu0
      %v2541 = vadd.f32 0.0, %v2540
      %v2542 = vpop.f32.mrb[0].mxu0
      %v2543 = vpop.f32.mrb[0].mxu0
      %v2544 = vadd.f32 0.0, %v2543
      %v2545 = vpop.f32.mrb[0].mxu0
      %2546 = vmatprep.mubr.bf16.mxu0 0
      %2547 = vmatmul.mubr.bf16.gmra.mrb[0].mxu0 %v1962
      %v2548 = vpop.f32.mrb[0].mxu0
      %v2549 = vadd.f32 0.0, %v2548
      %v2550 = vpop.f32.mrb[0].mxu0
      %v2551 = vpop.f32.mrb[0].mxu0
      %v2552 = vadd.f32 0.0, %v2551
      %v2553 = vpop.f32.mrb[0].mxu0
      %2554 = vmatprep.mubr.bf16.mxu0 0
      %2555 = vmatmul.mubr.bf16.gmra.mrb[0].mxu0 %v1963
      %v2556 = vpop.f32.mrb[0].mxu0
      %v2557 = vadd.f32 0.0, %v2556
      %v2558 = vpop.f32.mrb[0].mxu0
      %v2559 = vpop.f32.mrb[0].mxu0
      %v2560 = vadd.f32 0.0, %v2559
      %v2561 = vpop.f32.mrb[0].mxu0
      %2562 = vmatprep.mubr.bf16.mxu0 0
      %2563 = vmatmul.mubr.bf16.gmra.mrb[0].mxu0 %v1964
      %v2564 = vpop.f32.mrb[0].mxu0
      %v2565 = vadd.f32 0.0, %v2564
      %v2566 = vpop.f32.mrb[0].mxu0
      %v2567 = vpop.f32.mrb[0].mxu0
      %v2568 = vadd.f32 0.0, %v2567
      %v2569 = vpop.f32.mrb[0].mxu0
      %2570 = vmatprep.mubr.bf16.mxu0 0
      %2571 = vmatmul.mubr.bf16.gmra.mrb[0].mxu0 %v1965
      %v2572 = vpop.f32.mrb[0].mxu0
      %v2573 = vadd.f32 0.0, %v2572
      %v2574 = vpop.f32.mrb[0].mxu0
      %v2575 = vpop.f32.mrb[0].mxu0
      %v2576 = vadd.f32 0.0, %v2575
      %v2577 = vpop.f32.mrb[0].mxu0
      %2578 = vmatprep.mubr.bf16.mxu0 0
      %2579 = vmatmul.mubr.bf16.gmra.mrb[0].mxu0 %v1966
      %v2580 = vpop.f32.mrb[0].mxu0
      %v2581 = vadd.f32 0.0, %v2580
      %v2582 = vpop.f32.mrb[0].mxu0
      %v2583 = vpop.f32.mrb[0].mxu0
      %v2584 = vadd.f32 0.0, %v2583
      %v2585 = vpop.f32.mrb[0].mxu0
      %2586 = vmatprep.mubr.bf16.mxu0 0
      %2587 = vmatmul.mubr.bf16.gmra.mrb[0].mxu0 %v1967
      %v2588 = vpop.f32.mrb[0].mxu0
      %v2589 = vadd.f32 0.0, %v2588
      %v2590 = vpop.f32.mrb[0].mxu0
      %v2591 = vpop.f32.mrb[0].mxu0
      %v2592 = vadd.f32 0.0, %v2591
      %v2593 = vpop.f32.mrb[0].mxu0
      %2594 = vmatprep.mubr.bf16.mxu0 0
      %2595 = vmatmul.mubr.bf16.gmra.mrb[0].mxu0 %v1968
      %v2596 = vpop.f32.mrb[0].mxu0
      %v2597 = vadd.f32 0.0, %v2596
      %v2598 = vpop.f32.mrb[0].mxu0
      %v2599 = vpop.f32.mrb[0].mxu0
      %v2600 = vadd.f32 0.0, %v2599
      %v2601 = vpop.f32.mrb[0].mxu0
      %2602 = vmatprep.mubr.bf16.mxu0 0
      %2603 = vmatmul.mubr.bf16.gmra.mrb[0].mxu0 %v1969
      %v2604 = vpop.f32.mrb[0].mxu0
      %v2605 = vadd.f32 0.0, %v2604
      %v2606 = vpop.f32.mrb[0].mxu0
      %v2607 = vpop.f32.mrb[0].mxu0
      %v2608 = vadd.f32 0.0, %v2607
      %v2609 = vpop.f32.mrb[0].mxu0
      %2610 = vdwg.mxu0
      %v2611 = vrot.slane %v2517, 2
      %v2612 = vrot.slane %v2520, 2
      %v2613 = vrot.slane %v2525, 2
      %v2614 = vrot.slane %v2528, 2
      %v2615 = vrot.slane %v2533, 2
      %v2616 = vrot.slane %v2536, 2
      %v2617 = vrot.slane %v2541, 2
      %v2618 = vrot.slane %v2544, 2
      %v2619 = vrot.slane %v2549, 2
      %v2620 = vrot.slane %v2552, 2
      %v2621 = vrot.slane %v2557, 2
      %v2622 = vrot.slane %v2560, 2
      %v2623 = vrot.slane %v2565, 2
      %v2624 = vrot.slane %v2568, 2
      %v2625 = vrot.slane %v2573, 2
      %v2626 = vrot.slane %v2576, 2
      %v2627 = vrot.slane %v2581, 2
      %v2628 = vrot.slane %v2584, 2
      %v2629 = vrot.slane %v2589, 2
      %v2630 = vrot.slane %v2592, 2
      %v2631 = vrot.slane %v2597, 2
      %v2632 = vrot.slane %v2600, 2
      %v2633 = vrot.slane %v2605, 2
      %v2634 = vrot.slane %v2608, 2
      %v2635 = vsel %vm1026, %v2633, %v2634
      %v2636 = vsel %vm1026, %v2632, %v2633
      %v2637 = vsel %vm1026, %v2630, %v2631
      %v2638 = vsel %vm1026, %v2629, %v2630
      %v2639 = vsel %vm1026, %v2627, %v2628
      %v2640 = vsel %vm1026, %v2626, %v2627
      %v2641 = vsel %vm1026, %v2624, %v2625
      %v2642 = vsel %vm1026, %v2623, %v2624
      %v2643 = vsel %vm1026, %v2621, %v2622
      %v2644 = vsel %vm1026, %v2620, %v2621
      %v2645 = vsel %vm1026, %v2618, %v2619
      %v2646 = vsel %vm1026, %v2617, %v2618
      %v2647 = vsel %vm1026, %v2615, %v2616
      %v2648 = vsel %vm1026, %v2614, %v2615
      %v2649 = vsel %vm1026, %v2612, %v2613
      %v2650 = vsel %vm1026, %v2611, %v2612
      %v2651 = vadd.f32 %v2401, %v2650
      %v2652 = vadd.f32 %v2402, %v2649
      %v2653 = vadd.f32 %v2403, %v2648
      %v2654 = vadd.f32 %v2404, %v2647
      %v2655 = vadd.f32 %v2405, %v2646
      %v2656 = vadd.f32 %v2406, %v2645
      %v2657 = vadd.f32 %v2407, %v2644
      %v2658 = vadd.f32 %v2408, %v2643
      %v2659 = vadd.f32 %v2409, %v2642
      %v2660 = vadd.f32 %v2410, %v2641
      %v2661 = vadd.f32 %v2411, %v2640
      %v2662 = vadd.f32 %v2412, %v2639
      %v2663 = vadd.f32 %v2413, %v2638
      %v2664 = vadd.f32 %v2414, %v2637
      %v2665 = vadd.f32 %v2415, %v2636
      %v2666 = vadd.f32 %v2416, %v2635
      %v2667 = vld [vmem:[%s265] sm:$0x1]
      %v2669 = vlaneseq
      %v2670 = vshrl.u32 %v2669, 7
      %v2671 = vsub.s32 0, %v2670
      %v2672 = vrot.slane %v2667, %v2671
      %v2674 = vmul.f32 %v2651, %v2672
      %v2675 = vmul.f32 %v2652, %v2672
      %v2676 = vmul.f32 %v2653, %v2672
      %v2677 = vmul.f32 %v2654, %v2672
      %v2678 = vmul.f32 %v2655, %v2672
      %v2679 = vmul.f32 %v2656, %v2672
      %v2680 = vmul.f32 %v2657, %v2672
      %v2681 = vmul.f32 %v2658, %v2672
      %v2682 = vmul.f32 %v2659, %v2672
      %v2683 = vmul.f32 %v2660, %v2672
      %v2684 = vmul.f32 %v2661, %v2672
      %v2685 = vmul.f32 %v2662, %v2672
      %v2686 = vmul.f32 %v2663, %v2672
      %v2687 = vmul.f32 %v2664, %v2672
      %v2688 = vmul.f32 %v2665, %v2672
      %v2689 = vmul.f32 %v2666, %v2672
      %v2690 = vld [vmem:[%s268] sm:$0x1]
      %v2692 = vlaneseq
      %v2693 = vshrl.u32 %v2692, 7
      %v2694 = vsub.s32 0, %v2693
      %v2695 = vrot.slane %v2690, %v2694
      %v2697 = vadd.f32 %v2674, %v2695
      %v2698 = vadd.f32 %v2675, %v2695
      %v2699 = vadd.f32 %v2676, %v2695
      %v2700 = vadd.f32 %v2677, %v2695
      %v2701 = vadd.f32 %v2678, %v2695
      %v2702 = vadd.f32 %v2679, %v2695
      %v2703 = vadd.f32 %v2680, %v2695
      %v2704 = vadd.f32 %v2681, %v2695
      %v2705 = vadd.f32 %v2682, %v2695
      %v2706 = vadd.f32 %v2683, %v2695
      %v2707 = vadd.f32 %v2684, %v2695
      %v2708 = vadd.f32 %v2685, %v2695
      %v2709 = vadd.f32 %v2686, %v2695
      %v2710 = vadd.f32 %v2687, %v2695
      %v2711 = vadd.f32 %v2688, %v2695
      %v2712 = vadd.f32 %v2689, %v2695
      %v2713 = vmax.f32 %v2697, 0.0
      %v2714 = vmax.f32 %v2698, 0.0
      %v2715 = vmax.f32 %v2699, 0.0
      %v2716 = vmax.f32 %v2700, 0.0
      %v2717 = vmax.f32 %v2701, 0.0
      %v2718 = vmax.f32 %v2702, 0.0
      %v2719 = vmax.f32 %v2703, 0.0
      %v2720 = vmax.f32 %v2704, 0.0
      %v2721 = vmax.f32 %v2705, 0.0
      %v2722 = vmax.f32 %v2706, 0.0
      %v2723 = vmax.f32 %v2707, 0.0
      %v2724 = vmax.f32 %v2708, 0.0
      %v2725 = vmax.f32 %v2709, 0.0
      %v2726 = vmax.f32 %v2710, 0.0
      %v2727 = vmax.f32 %v2711, 0.0
      %v2728 = vmax.f32 %v2712, 0.0
      %v2729 = vpack.c.bf16 %v2714, %v2713
      %v2730 = vpack.c.bf16 %v2716, %v2715
      %v2731 = vpack.c.bf16 %v2718, %v2717
      %v2732 = vpack.c.bf16 %v2720, %v2719
      %v2733 = vpack.c.bf16 %v2722, %v2721
      %v2734 = vpack.c.bf16 %v2724, %v2723
      %v2735 = vpack.c.bf16 %v2726, %v2725
      %v2736 = vpack.c.bf16 %v2728, %v2727
      %v2745 = vunpack.c.l.b16 %v2729
      %v2746 = vunpack.c.h.b16 %v2729
      %v2747 = vunpack.c.l.b16 %v2730
      %v2748 = vunpack.c.h.b16 %v2730
      %v2749 = vunpack.c.l.b16 %v2731
      %v2750 = vunpack.c.h.b16 %v2731
      %v2751 = vunpack.c.l.b16 %v2732
      %v2752 = vunpack.c.h.b16 %v2732
      %v2753 = vunpack.c.l.b16 %v2733
      %v2754 = vunpack.c.h.b16 %v2733
      %v2755 = vunpack.c.l.b16 %v2734
      %v2756 = vunpack.c.h.b16 %v2734
      %v2757 = vunpack.c.l.b16 %v2735
      %v2758 = vunpack.c.h.b16 %v2735
      %v2759 = vunpack.c.l.b16 %v2736
      %v2760 = vunpack.c.h.b16 %v2736
      %v2761 = vpack.c.b16 %v2745, %v2745
      %v2762 = vpack.c.b16 %v2746, %v2746
      %v2763 = vpack.c.b16 %v2747, %v2747
      %v2764 = vpack.c.b16 %v2748, %v2748
      %v2765 = vpack.c.b16 %v2749, %v2749
      %v2766 = vpack.c.b16 %v2750, %v2750
      %v2767 = vpack.c.b16 %v2751, %v2751
      %v2768 = vpack.c.b16 %v2752, %v2752
      %v2769 = vpack.c.b16 %v2753, %v2753
      %v2770 = vpack.c.b16 %v2754, %v2754
      %v2771 = vpack.c.b16 %v2755, %v2755
      %v2772 = vpack.c.b16 %v2756, %v2756
      %v2773 = vpack.c.b16 %v2757, %v2757
      %v2774 = vpack.c.b16 %v2758, %v2758
      %v2775 = vpack.c.b16 %v2759, %v2759
      %v2776 = vpack.c.b16 %v2760, %v2760
      %2793 = vst [vmem:[%s281] sm:$0xf] %v2761
      %2794 = vst [vmem:[%s281 + $0x4] sm:$0xf] %v2762
      %2795 = vst [vmem:[%s281 + $0x8] sm:$0xf] %v2763
      %2796 = vst [vmem:[%s281 + $0xc] sm:$0xf] %v2764
      %2797 = vst [vmem:[%s281 + $0x10] sm:$0xf] %v2765
      %2798 = vst [vmem:[%s281 + $0x14] sm:$0xf] %v2766
      %2799 = vst [vmem:[%s281 + $0x18] sm:$0xf] %v2767
      %2800 = vst [vmem:[%s281 + $0x1c] sm:$0xf] %v2768
      %2801 = vst [vmem:[%s281 + $0x20] sm:$0xf] %v2769
      %2802 = vst [vmem:[%s281 + $0x24] sm:$0xf] %v2770
      %2803 = vst [vmem:[%s281 + $0x28] sm:$0xf] %v2771
      %2804 = vst [vmem:[%s281 + $0x2c] sm:$0xf] %v2772
      %2805 = vst [vmem:[%s281 + $0x30] sm:$0xf] %v2773
      %2806 = vst [vmem:[%s281 + $0x34] sm:$0xf] %v2774
      %2807 = vst [vmem:[%s281 + $0x38] sm:$0xf] %v2775
      %2808 = vst [vmem:[%s281 + $0x3c] sm:$0xf] %v2776
      %s2809 = smul.u32 8, %s22
      %p2810 = scmp.lt.s32.totalorder %s21, 1
      %s2811 = scalar_select %p2810, %s21, 1
      %p2812 = scmp.lt.s32.totalorder %s2809, 15
      %s2813 = scalar_select %p2812, %s2809, 15
      %p2814 = scmp.lt.s32.totalorder %s20, 0
      %s2815 = scalar_select %p2814, %s20, 0
      %s2816 = smul.addr %s2813, 2
      %s2817 = sadd.s32 %s2815, %s2816
      %s2818 = smul.addr %s2811, 32
      %s2819 = sadd.s32 %s2817, %s2818
      %s2820 = smul.addr %s2819, 4
      %s2821 = scalar_lea.vmem %s4, %s2820
      // Predicated region
      $region37: #{bottleneck_forward.5} parent=35 // pred_check
        %p2822 = pneg %p160
      $region38: #{bottleneck_forward.5} parent=35 // pred_check_branch
        %2824 = sbr.rel (%p2822) target = $region40
      $region39: #{bottleneck_forward.5} parent=35 // pred_region
        %s2825 = smul.u32 8, %s22
      $region40: #{bottleneck_forward.5} parent=35 // pred_fallthru
        _
    $region36: #{bottleneck_forward.5} parent=5 // pred_fallthru
      _
    %p2826 = scmp.le.s32.totalorder 2, %s10
    // Predicated region
    $region41: #{bottleneck_forward.5} parent=5 // pred_check
      %p2827 = pneg %p2826
    $region42: #{bottleneck_forward.5} parent=5 // pred_check_branch
      %2829 = sbr.rel (%p2827) target = $region44
    $region43: #{bottleneck_forward.5} parent=5 // pred_region
      %s2830 = ssub.s32 %s10, 2
      // Predicated region
      $region45: #{bottleneck_forward.5} parent=43 // pred_check
        %p2831 = pneg %p166
      $region46: #{bottleneck_forward.5} parent=43 // pred_check_branch
        %2833 = sbr.rel (%p2831) target = $region48
      $region47: #{bottleneck_forward.5} parent=43 // pred_region
        %s2834 = smul.u32 8, %s25
        %p2835 = scmp.lt.s32.totalorder %s24, 1
        %s2836 = scalar_select %p2835, %s24, 1
        %p2837 = scmp.lt.s32.totalorder %s2834, 15
        %s2838 = scalar_select %p2837, %s2834, 15
        %p2839 = scmp.lt.s32.totalorder %s23, 0
        %s2840 = scalar_select %p2839, %s23, 0
        %s2841 = smul.addr %s2838, 2
        %s2842 = sadd.s32 %s2840, %s2841
        %s2843 = smul.addr %s2836, 32
        %s2844 = sadd.s32 %s2842, %s2843
        %s2845 = smul.addr %s2844, 4
        %s2846 = scalar_lea.vmem %s4, %s2845
      $region48: #{bottleneck_forward.5} parent=43 // pred_fallthru
        _
    $region44: #{bottleneck_forward.5} parent=5 // pred_fallthru
      _
  $region6: #{bottleneck_forward.5} parent=0 // loop_footer
    %s14 = sadd.s32 1, %s10
  $region7: #{bottleneck_forward.5} parent=0 // loop_footer_branch
    %9 = sbr.rel target = $region3
  $region8: #{bottleneck_forward.5} parent=0 // loop_exit
    _

</llo_original>
